<compile_context>
chip_gen: v5e
topology: v5e:2x2
jax: 0.10.0
libtpu: 0.0.40
codegen_flags: <defaults>
</compile_context>

<pallas_src>
import functools

import numpy as np
import jax
import jax.numpy as jnp
from jax.experimental import pallas as pl
from jax.experimental.pallas import tpu as pltpu


def _relu6(x):
    return jnp.clip(x, 0.0, 6.0)


def _dwconv5(y, dw_ref, conv_idx, W, HW):
    """Depthwise 5x5 (stride 1, pad 2) in (Cmax, HW) layout.

    dw_ref[conv_idx, tap] is a (Cmax, HW) BN-folded, boundary-masked weight
    plane; tap = (di+2)*5 + (dj+2).  Out-of-image taps have weight 0, so the
    cyclic roll wrap-around is harmless.  Four independent partial accumulators
    break the serial add chain (4 VALU slots, no f32 FMA on v5e/v6e).
    """
    parts = [None, None, None, None]
    for t in range(25):
        di = t // 5 - 2
        dj = t % 5 - 2
        off = di * W + dj
        # shifted[p] = y[p + off] (cyclic; wrapped lanes are zeroed by the
        # mask that is folded into the weight plane).
        shifted = y if off == 0 else pltpu.roll(y, (-off) % HW, axis=1)
        term = shifted * dw_ref[conv_idx, t]
        k = t & 3
        parts[k] = term if parts[k] is None else parts[k] + term
    return (parts[0] + parts[1]) + (parts[2] + parts[3])


def _shortcut_kernel(x_ref, dw_ref, small_ref, o_ref, *, H, W, num_layers, cmax):
    """Fused ShortCut: all LiteConv layers for one batch element, (Cmax, HW)."""
    HW = H * W
    boff = 2 * cmax

    y = x_ref[...]                                    # (Cmax, HW) float32
    for li in range(num_layers):
        small = small_ref[li]                         # (Cmax, slab_w)
        w2 = small[:, 0:cmax]                         # (Cmax, Cmax) pw1, BN folded
        w3 = small[:, cmax:2 * cmax]                  # (Cmax, Cmax) pw2, BN folded
        b1 = small[:, boff + 0:boff + 1]              # (Cmax, 1)
        b2 = small[:, boff + 1:boff + 2]
        b3 = small[:, boff + 2:boff + 3]
        b4 = small[:, boff + 3:boff + 4]
        with_act = li < num_layers - 1

        y = _relu6(_dwconv5(y, dw_ref, 2 * li + 0, W, HW) + b1)
        # Pointwise 1x1 convs on the MXU (vector-extended slot, idle otherwise).
        y = _relu6(jnp.dot(w2, y, preferred_element_type=jnp.float32) + b2)
        y = _relu6(jnp.dot(w3, y, preferred_element_type=jnp.float32) + b3)
        y = _dwconv5(y, dw_ref, 2 * li + 1, W, HW) + b4
        if with_act:
            y = _relu6(y)

    o_ref[...] = y.astype(o_ref.dtype)


def _build_tap_masks(H, W):
    """(25, HW) 0/1 boundary-validity masks (static numpy, folded into weights)."""
    HW = H * W
    r = np.arange(HW) // W
    c = np.arange(HW) % W
    masks = np.zeros((25, HW), np.float32)
    for t in range(25):
        di = t // 5 - 2
        dj = t % 5 - 2
        masks[t] = ((r + di >= 0) & (r + di < H) &
                    (c + dj >= 0) & (c + dj < W)).astype(np.float32)
    return masks


def _pack_params(layer_params, cmax, H, W, slab_w):
    """Fold BN into weights, fold masks into dw weights, pack into two slabs."""
    HW = H * W
    masks = jnp.asarray(_build_tap_masks(H, W))       # (25, HW)
    dw_blocks = []
    small_blocks = []
    for p in layer_params:
        dw1, s1, b1, pw2, s2, b2, pw3, s3, b3, dw4, s4, b4 = p
        cin = dw1.shape[2]
        cout = dw4.shape[2]

        # Depthwise weights: BN-scale folded, zero-padded to Cmax channels,
        # boundary masks folded per tap -> (25, Cmax, HW).
        w1 = jnp.pad(dw1.reshape(25, cin) * s1.reshape(1, cin),
                     ((0, 0), (0, cmax - cin)))
        w4 = jnp.pad(dw4.reshape(25, cout) * s4.reshape(1, cout),
                     ((0, 0), (0, cmax - cout)))
        dw_blocks.append(w1[:, :, None] * masks[:, None, :])
        dw_blocks.append(w4[:, :, None] * masks[:, None, :])

        # Small slab: pointwise matrices (rows = out-channel) + the 4 biases.
        w2 = pw2.T * s2.reshape(cout, 1)              # (cout, cin)
        w3 = pw3.T * s3.reshape(cout, 1)              # (cout, cout)
        small = jnp.zeros((cmax, slab_w), jnp.float32)
        small = small.at[:cout, 0:cin].set(w2)
        small = small.at[:cout, cmax:cmax + cout].set(w3)
        small = small.at[:cin, 2 * cmax + 0].set(b1.reshape(cin))
        small = small.at[:cout, 2 * cmax + 1].set(b2.reshape(cout))
        small = small.at[:cout, 2 * cmax + 2].set(b3.reshape(cout))
        small = small.at[:cout, 2 * cmax + 3].set(b4.reshape(cout))
        small_blocks.append(small)

    dw_slab = jnp.stack(dw_blocks)                    # (2*L, 25, Cmax, HW)
    small_slab = jnp.stack(small_blocks)              # (L, Cmax, slab_w)
    return dw_slab, small_slab


@jax.jit
def shortcut_forward(x_nchw, layer_params):
    """x: (N, C, H, W) NCHW. layer_params: list of LiteConv parameter tuples."""
    N, c0, H, W = x_nchw.shape
    HW = H * W
    num_layers = len(layer_params)
    cout_last = layer_params[-1][9].shape[2]          # dw4 channels of last layer

    # Uniform, sublane-aligned channel count for the whole kernel.
    cmax = c0
    for p in layer_params:
        cmax = max(cmax, p[0].shape[2], p[9].shape[2])
    cmax = ((cmax + 7) // 8) * 8
    slab_w = max(128, ((2 * cmax + 4 + 127) // 128) * 128)

    dw_slab, small_slab = _pack_params(layer_params, cmax, H, W, slab_w)

    # NCHW flattened already is the (C, HW) lane-dense working layout.
    x_p = jnp.pad(x_nchw.reshape(N, c0, HW), ((0, 0), (0, cmax - c0), (0, 0)))

    kern = functools.partial(_shortcut_kernel, H=H, W=W,
                             num_layers=num_layers, cmax=cmax)
    out = pl.pallas_call(
        kern,
        out_shape=jax.ShapeDtypeStruct((N, cmax, HW), x_nchw.dtype),
        grid=(N,),
        in_specs=[
            pl.BlockSpec((None, cmax, HW), lambda b: (b, 0, 0)),
            # Constant block index -> weight slabs are DMA'd once and stay
            # resident in VMEM across the whole batch grid.
            pl.BlockSpec(dw_slab.shape, lambda b: (0, 0, 0, 0)),
            pl.BlockSpec(small_slab.shape, lambda b: (0, 0, 0)),
        ],
        out_specs=pl.BlockSpec((None, cmax, HW), lambda b: (b, 0, 0)),
        compiler_params=pltpu.CompilerParams(dimension_semantics=("parallel",)),
    )(x_p, dw_slab, small_slab)

    return out.reshape(N, cmax, H, W)[:, :cout_last]


# ----------------------------------------------------------------------------
# Deterministic synthetic parameters (BN folded into per-channel scale/bias),
# kept in the original "spec" format of the PyTorch module.
# ----------------------------------------------------------------------------
def init_lite_conv_params(key, cin, cout):
    ks = jax.random.split(key, 8)
    dw1 = 0.05 * jax.random.normal(ks[0], (5, 5, cin), jnp.float32)
    pw2 = 0.10 * jax.random.normal(ks[1], (cin, cout), jnp.float32)
    pw3 = 0.10 * jax.random.normal(ks[2], (cout, cout), jnp.float32)
    dw4 = 0.05 * jax.random.normal(ks[3], (5, 5, cout), jnp.float32)
    s1 = 1.0 + 0.01 * jax.random.normal(ks[4], (1, cin), jnp.float32)
    b1 = 0.01 * jnp.arange(cin, dtype=jnp.float32).reshape(1, cin)
    s2 = 1.0 + 0.01 * jax.random.normal(ks[5], (1, cout), jnp.float32)
    b2 = 0.01 * jnp.arange(cout, dtype=jnp.float32).reshape(1, cout)
    s3 = 1.0 + 0.01 * jax.random.normal(ks[6], (1, cout), jnp.float32)
    b3 = -0.01 * jnp.arange(cout, dtype=jnp.float32).reshape(1, cout)
    s4 = 1.0 + 0.01 * jax.random.normal(ks[7], (1, cout), jnp.float32)
    b4 = 0.02 * jnp.arange(cout, dtype=jnp.float32).reshape(1, cout)
    return (dw1, s1, b1, pw2, s2, b2, pw3, s3, b3, dw4, s4, b4)


def init_shortcut_params(key, ch_in, ch_out, layer_num):
    keys = jax.random.split(key, layer_num)
    params = []
    for i in range(layer_num):
        cin = ch_in if i == 0 else ch_out
        params.append(init_lite_conv_params(keys[i], cin, ch_out))
    return params


# ----------------------------------------------------------------------------
# Pure-JAX NCHW reference (elementwise f32 only) for validation.
# ----------------------------------------------------------------------------
def _ref_lite_conv(x, params, with_act):
    dw1, s1, b1, pw2, s2, b2, pw3, s3, b3, dw4, s4, b4 = params

    def dwconv(v, wt):
        _, cc, hh, ww = v.shape
        vp = jnp.pad(v, ((0, 0), (0, 0), (2, 2), (2, 2)))
        acc = jnp.zeros_like(v)
        for ki in range(5):
            for kj in range(5):
                acc = acc + vp[:, :, ki:ki + hh, kj:kj + ww] * wt[ki, kj, :].reshape(1, cc, 1, 1)
        return acc

    def pwconv(v, wt):
        cc, co = wt.shape
        acc = jnp.zeros((v.shape[0], co, v.shape[2], v.shape[3]), jnp.float32)
        for ci in range(cc):
            acc = acc + v[:, ci:ci + 1] * wt[ci].reshape(1, co, 1, 1)
        return acc

    def bn(v, s, b):
        return v * s.reshape(1, -1, 1, 1) + b.reshape(1, -1, 1, 1)

    y = jnp.clip(bn(dwconv(x, dw1), s1, b1), 0.0, 6.0)
    y = jnp.clip(bn(pwconv(y, pw2), s2, b2), 0.0, 6.0)
    y = jnp.clip(bn(pwconv(y, pw3), s3, b3), 0.0, 6.0)
    y = bn(dwconv(y, dw4), s4, b4)
    if with_act:
        y = jnp.clip(y, 0.0, 6.0)
    return y


if __name__ == "__main__":
    key = jax.random.PRNGKey(0)
    k_x, k_p = jax.random.split(key)

    batch, ch_in, ch_out, layer_num, spatial = 2, 4, 8, 2, 16
    x = jax.random.normal(k_x, (batch, ch_in, spatial, spatial), jnp.float32)
    params = init_shortcut_params(k_p, ch_in, ch_out, layer_num)

    out = shortcut_forward(x, params)
    out = jax.block_until_ready(out)

    assert out.shape == (batch, ch_out, spatial, spatial), out.shape
    assert jnp.all(jnp.isfinite(out))

    # Validate against the pure-JAX reference of the original module semantics.
    ref = x
    for i, p in enumerate(params):
        ref = _ref_lite_conv(ref, p, with_act=(i < layer_num - 1))
    max_err = float(jnp.max(jnp.abs(out - ref)))
    assert jnp.allclose(out, ref, atol=1e-3, rtol=1e-3), max_err

    print("KERNEL_OK")
</pallas_src>

<mosaic_0001>
module attributes {stable_mosaic.version = 11 : i64} {
  func.func @_shortcut_kernel(%arg0: i32, %arg1: memref<1x8x256xf32, #tpu.memory_space<vmem>>, %arg2: memref<4x25x8x256xf32, #tpu.memory_space<vmem>>, %arg3: memref<2x8x128xf32, #tpu.memory_space<vmem>>, %arg4: memref<1x8x256xf32, #tpu.memory_space<vmem>>) attributes {dimension_semantics = [#tpu.dimension_semantics<parallel>], iteration_bounds = array<i64: 2>, scalar_prefetch = 0 : i64, scratch_operands = 0 : i64, tpu.core_type = #tpu.core_type<tc>, window_params = [{transform_indices = @transform_0, window_bounds = array<i64: 1, 8, 256>}, {pipeline_mode = #tpu.pipeline_mode<synchronous>, transform_indices = @transform_1, window_bounds = array<i64: 4, 25, 8, 256>}, {pipeline_mode = #tpu.pipeline_mode<synchronous>, transform_indices = @transform_2, window_bounds = array<i64: 2, 8, 128>}, {transform_indices = @transform_3, window_bounds = array<i64: 1, 8, 256>}]} {
    %c0 = arith.constant 0 : index
    %c0_0 = arith.constant 0 : index
    %c0_1 = arith.constant 0 : index
    %0 = vector.load %arg1[%c0, %c0_0, %c0_1] : memref<1x8x256xf32, #tpu.memory_space<vmem>>, vector<1x8x256xf32>
    %1 = vector.shape_cast %0 : vector<1x8x256xf32> to vector<8x256xf32>
    %c0_2 = arith.constant 0 : index
    %c0_3 = arith.constant 0 : index
    %c0_4 = arith.constant 0 : index
    %2 = vector.load %arg3[%c0_2, %c0_3, %c0_4] : memref<2x8x128xf32, #tpu.memory_space<vmem>>, vector<1x8x128xf32>
    %3 = vector.shape_cast %2 : vector<1x8x128xf32> to vector<8x128xf32>
    %4 = vector.extract_strided_slice %3 {offsets = [0, 0], sizes = [8, 8], strides = [1, 1]} : vector<8x128xf32> to vector<8x8xf32>
    %5 = vector.extract_strided_slice %3 {offsets = [0, 8], sizes = [8, 8], strides = [1, 1]} : vector<8x128xf32> to vector<8x8xf32>
    %6 = vector.extract_strided_slice %3 {offsets = [0, 16], sizes = [8, 1], strides = [1, 1]} : vector<8x128xf32> to vector<8x1xf32>
    %7 = vector.extract_strided_slice %3 {offsets = [0, 17], sizes = [8, 1], strides = [1, 1]} : vector<8x128xf32> to vector<8x1xf32>
    %8 = vector.extract_strided_slice %3 {offsets = [0, 18], sizes = [8, 1], strides = [1, 1]} : vector<8x128xf32> to vector<8x1xf32>
    %9 = vector.extract_strided_slice %3 {offsets = [0, 19], sizes = [8, 1], strides = [1, 1]} : vector<8x128xf32> to vector<8x1xf32>
    %c34_i32 = arith.constant 34 : i32
    %10 = tpu.dynamic_rotate %1 by %c34_i32 dim 1 : vector<8x256xf32>, i32 -> vector<8x256xf32>
    %c0_5 = arith.constant 0 : index
    %c0_6 = arith.constant 0 : index
    %c0_7 = arith.constant 0 : index
    %c0_8 = arith.constant 0 : index
    %11 = vector.load %arg2[%c0_5, %c0_6, %c0_7, %c0_8] : memref<4x25x8x256xf32, #tpu.memory_space<vmem>>, vector<1x1x8x256xf32>
    %12 = vector.shape_cast %11 : vector<1x1x8x256xf32> to vector<8x256xf32>
    %13 = arith.mulf %10, %12 : vector<8x256xf32>
    %c33_i32 = arith.constant 33 : i32
    %14 = tpu.dynamic_rotate %1 by %c33_i32 dim 1 : vector<8x256xf32>, i32 -> vector<8x256xf32>
    %c0_9 = arith.constant 0 : index
    %c1 = arith.constant 1 : index
    %c0_10 = arith.constant 0 : index
    %c0_11 = arith.constant 0 : index
    %15 = vector.load %arg2[%c0_9, %c1, %c0_10, %c0_11] : memref<4x25x8x256xf32, #tpu.memory_space<vmem>>, vector<1x1x8x256xf32>
    %16 = vector.shape_cast %15 : vector<1x1x8x256xf32> to vector<8x256xf32>
    %17 = arith.mulf %14, %16 : vector<8x256xf32>
    %c32_i32 = arith.constant 32 : i32
    %18 = tpu.dynamic_rotate %1 by %c32_i32 dim 1 : vector<8x256xf32>, i32 -> vector<8x256xf32>
    %c0_12 = arith.constant 0 : index
    %c2 = arith.constant 2 : index
    %c0_13 = arith.constant 0 : index
    %c0_14 = arith.constant 0 : index
    %19 = vector.load %arg2[%c0_12, %c2, %c0_13, %c0_14] : memref<4x25x8x256xf32, #tpu.memory_space<vmem>>, vector<1x1x8x256xf32>
    %20 = vector.shape_cast %19 : vector<1x1x8x256xf32> to vector<8x256xf32>
    %21 = arith.mulf %18, %20 : vector<8x256xf32>
    %c31_i32 = arith.constant 31 : i32
    %22 = tpu.dynamic_rotate %1 by %c31_i32 dim 1 : vector<8x256xf32>, i32 -> vector<8x256xf32>
    %c0_15 = arith.constant 0 : index
    %c3 = arith.constant 3 : index
    %c0_16 = arith.constant 0 : index
    %c0_17 = arith.constant 0 : index
    %23 = vector.load %arg2[%c0_15, %c3, %c0_16, %c0_17] : memref<4x25x8x256xf32, #tpu.memory_space<vmem>>, vector<1x1x8x256xf32>
    %24 = vector.shape_cast %23 : vector<1x1x8x256xf32> to vector<8x256xf32>
    %25 = arith.mulf %22, %24 : vector<8x256xf32>
    %c30_i32 = arith.constant 30 : i32
    %26 = tpu.dynamic_rotate %1 by %c30_i32 dim 1 : vector<8x256xf32>, i32 -> vector<8x256xf32>
    %c0_18 = arith.constant 0 : index
    %c4 = arith.constant 4 : index
    %c0_19 = arith.constant 0 : index
    %c0_20 = arith.constant 0 : index
    %27 = vector.load %arg2[%c0_18, %c4, %c0_19, %c0_20] : memref<4x25x8x256xf32, #tpu.memory_space<vmem>>, vector<1x1x8x256xf32>
    %28 = vector.shape_cast %27 : vector<1x1x8x256xf32> to vector<8x256xf32>
    %29 = arith.mulf %26, %28 : vector<8x256xf32>
    %30 = arith.addf %13, %29 : vector<8x256xf32>
    %c18_i32 = arith.constant 18 : i32
    %31 = tpu.dynamic_rotate %1 by %c18_i32 dim 1 : vector<8x256xf32>, i32 -> vector<8x256xf32>
    %c0_21 = arith.constant 0 : index
    %c5 = arith.constant 5 : index
    %c0_22 = arith.constant 0 : index
    %c0_23 = arith.constant 0 : index
    %32 = vector.load %arg2[%c0_21, %c5, %c0_22, %c0_23] : memref<4x25x8x256xf32, #tpu.memory_space<vmem>>, vector<1x1x8x256xf32>
    %33 = vector.shape_cast %32 : vector<1x1x8x256xf32> to vector<8x256xf32>
    %34 = arith.mulf %31, %33 : vector<8x256xf32>
    %35 = arith.addf %17, %34 : vector<8x256xf32>
    %c17_i32 = arith.constant 17 : i32
    %36 = tpu.dynamic_rotate %1 by %c17_i32 dim 1 : vector<8x256xf32>, i32 -> vector<8x256xf32>
    %c0_24 = arith.constant 0 : index
    %c6 = arith.constant 6 : index
    %c0_25 = arith.constant 0 : index
    %c0_26 = arith.constant 0 : index
    %37 = vector.load %arg2[%c0_24, %c6, %c0_25, %c0_26] : memref<4x25x8x256xf32, #tpu.memory_space<vmem>>, vector<1x1x8x256xf32>
    %38 = vector.shape_cast %37 : vector<1x1x8x256xf32> to vector<8x256xf32>
    %39 = arith.mulf %36, %38 : vector<8x256xf32>
    %40 = arith.addf %21, %39 : vector<8x256xf32>
    %c16_i32 = arith.constant 16 : i32
    %41 = tpu.dynamic_rotate %1 by %c16_i32 dim 1 : vector<8x256xf32>, i32 -> vector<8x256xf32>
    %c0_27 = arith.constant 0 : index
    %c7 = arith.constant 7 : index
    %c0_28 = arith.constant 0 : index
    %c0_29 = arith.constant 0 : index
    %42 = vector.load %arg2[%c0_27, %c7, %c0_28, %c0_29] : memref<4x25x8x256xf32, #tpu.memory_space<vmem>>, vector<1x1x8x256xf32>
    %43 = vector.shape_cast %42 : vector<1x1x8x256xf32> to vector<8x256xf32>
    %44 = arith.mulf %41, %43 : vector<8x256xf32>
    %45 = arith.addf %25, %44 : vector<8x256xf32>
    %c15_i32 = arith.constant 15 : i32
    %46 = tpu.dynamic_rotate %1 by %c15_i32 dim 1 : vector<8x256xf32>, i32 -> vector<8x256xf32>
    %c0_30 = arith.constant 0 : index
    %c8 = arith.constant 8 : index
    %c0_31 = arith.constant 0 : index
    %c0_32 = arith.constant 0 : index
    %47 = vector.load %arg2[%c0_30, %c8, %c0_31, %c0_32] : memref<4x25x8x256xf32, #tpu.memory_space<vmem>>, vector<1x1x8x256xf32>
    %48 = vector.shape_cast %47 : vector<1x1x8x256xf32> to vector<8x256xf32>
    %49 = arith.mulf %46, %48 : vector<8x256xf32>
    %50 = arith.addf %30, %49 : vector<8x256xf32>
    %c14_i32 = arith.constant 14 : i32
    %51 = tpu.dynamic_rotate %1 by %c14_i32 dim 1 : vector<8x256xf32>, i32 -> vector<8x256xf32>
    %c0_33 = arith.constant 0 : index
    %c9 = arith.constant 9 : index
    %c0_34 = arith.constant 0 : index
    %c0_35 = arith.constant 0 : index
    %52 = vector.load %arg2[%c0_33, %c9, %c0_34, %c0_35] : memref<4x25x8x256xf32, #tpu.memory_space<vmem>>, vector<1x1x8x256xf32>
    %53 = vector.shape_cast %52 : vector<1x1x8x256xf32> to vector<8x256xf32>
    %54 = arith.mulf %51, %53 : vector<8x256xf32>
    %55 = arith.addf %35, %54 : vector<8x256xf32>
    %c2_i32 = arith.constant 2 : i32
    %56 = tpu.dynamic_rotate %1 by %c2_i32 dim 1 : vector<8x256xf32>, i32 -> vector<8x256xf32>
    %c0_36 = arith.constant 0 : index
    %c10 = arith.constant 10 : index
    %c0_37 = arith.constant 0 : index
    %c0_38 = arith.constant 0 : index
    %57 = vector.load %arg2[%c0_36, %c10, %c0_37, %c0_38] : memref<4x25x8x256xf32, #tpu.memory_space<vmem>>, vector<1x1x8x256xf32>
    %58 = vector.shape_cast %57 : vector<1x1x8x256xf32> to vector<8x256xf32>
    %59 = arith.mulf %56, %58 : vector<8x256xf32>
    %60 = arith.addf %40, %59 : vector<8x256xf32>
    %c1_i32 = arith.constant 1 : i32
    %61 = tpu.dynamic_rotate %1 by %c1_i32 dim 1 : vector<8x256xf32>, i32 -> vector<8x256xf32>
    %c0_39 = arith.constant 0 : index
    %c11 = arith.constant 11 : index
    %c0_40 = arith.constant 0 : index
    %c0_41 = arith.constant 0 : index
    %62 = vector.load %arg2[%c0_39, %c11, %c0_40, %c0_41] : memref<4x25x8x256xf32, #tpu.memory_space<vmem>>, vector<1x1x8x256xf32>
    %63 = vector.shape_cast %62 : vector<1x1x8x256xf32> to vector<8x256xf32>
    %64 = arith.mulf %61, %63 : vector<8x256xf32>
    %65 = arith.addf %45, %64 : vector<8x256xf32>
    %c0_42 = arith.constant 0 : index
    %c12 = arith.constant 12 : index
    %c0_43 = arith.constant 0 : index
    %c0_44 = arith.constant 0 : index
    %66 = vector.load %arg2[%c0_42, %c12, %c0_43, %c0_44] : memref<4x25x8x256xf32, #tpu.memory_space<vmem>>, vector<1x1x8x256xf32>
    %67 = vector.shape_cast %66 : vector<1x1x8x256xf32> to vector<8x256xf32>
    %68 = arith.mulf %1, %67 : vector<8x256xf32>
    %69 = arith.addf %50, %68 : vector<8x256xf32>
    %c255_i32 = arith.constant 255 : i32
    %70 = tpu.dynamic_rotate %1 by %c255_i32 dim 1 : vector<8x256xf32>, i32 -> vector<8x256xf32>
    %c0_45 = arith.constant 0 : index
    %c13 = arith.constant 13 : index
    %c0_46 = arith.constant 0 : index
    %c0_47 = arith.constant 0 : index
    %71 = vector.load %arg2[%c0_45, %c13, %c0_46, %c0_47] : memref<4x25x8x256xf32, #tpu.memory_space<vmem>>, vector<1x1x8x256xf32>
    %72 = vector.shape_cast %71 : vector<1x1x8x256xf32> to vector<8x256xf32>
    %73 = arith.mulf %70, %72 : vector<8x256xf32>
    %74 = arith.addf %55, %73 : vector<8x256xf32>
    %c254_i32 = arith.constant 254 : i32
    %75 = tpu.dynamic_rotate %1 by %c254_i32 dim 1 : vector<8x256xf32>, i32 -> vector<8x256xf32>
    %c0_48 = arith.constant 0 : index
    %c14 = arith.constant 14 : index
    %c0_49 = arith.constant 0 : index
    %c0_50 = arith.constant 0 : index
    %76 = vector.load %arg2[%c0_48, %c14, %c0_49, %c0_50] : memref<4x25x8x256xf32, #tpu.memory_space<vmem>>, vector<1x1x8x256xf32>
    %77 = vector.shape_cast %76 : vector<1x1x8x256xf32> to vector<8x256xf32>
    %78 = arith.mulf %75, %77 : vector<8x256xf32>
    %79 = arith.addf %60, %78 : vector<8x256xf32>
    %c242_i32 = arith.constant 242 : i32
    %80 = tpu.dynamic_rotate %1 by %c242_i32 dim 1 : vector<8x256xf32>, i32 -> vector<8x256xf32>
    %c0_51 = arith.constant 0 : index
    %c15 = arith.constant 15 : index
    %c0_52 = arith.constant 0 : index
    %c0_53 = arith.constant 0 : index
    %81 = vector.load %arg2[%c0_51, %c15, %c0_52, %c0_53] : memref<4x25x8x256xf32, #tpu.memory_space<vmem>>, vector<1x1x8x256xf32>
    %82 = vector.shape_cast %81 : vector<1x1x8x256xf32> to vector<8x256xf32>
    %83 = arith.mulf %80, %82 : vector<8x256xf32>
    %84 = arith.addf %65, %83 : vector<8x256xf32>
    %c241_i32 = arith.constant 241 : i32
    %85 = tpu.dynamic_rotate %1 by %c241_i32 dim 1 : vector<8x256xf32>, i32 -> vector<8x256xf32>
    %c0_54 = arith.constant 0 : index
    %c16 = arith.constant 16 : index
    %c0_55 = arith.constant 0 : index
    %c0_56 = arith.constant 0 : index
    %86 = vector.load %arg2[%c0_54, %c16, %c0_55, %c0_56] : memref<4x25x8x256xf32, #tpu.memory_space<vmem>>, vector<1x1x8x256xf32>
    %87 = vector.shape_cast %86 : vector<1x1x8x256xf32> to vector<8x256xf32>
    %88 = arith.mulf %85, %87 : vector<8x256xf32>
    %89 = arith.addf %69, %88 : vector<8x256xf32>
    %c240_i32 = arith.constant 240 : i32
    %90 = tpu.dynamic_rotate %1 by %c240_i32 dim 1 : vector<8x256xf32>, i32 -> vector<8x256xf32>
    %c0_57 = arith.constant 0 : index
    %c17 = arith.constant 17 : index
    %c0_58 = arith.constant 0 : index
    %c0_59 = arith.constant 0 : index
    %91 = vector.load %arg2[%c0_57, %c17, %c0_58, %c0_59] : memref<4x25x8x256xf32, #tpu.memory_space<vmem>>, vector<1x1x8x256xf32>
    %92 = vector.shape_cast %91 : vector<1x1x8x256xf32> to vector<8x256xf32>
    %93 = arith.mulf %90, %92 : vector<8x256xf32>
    %94 = arith.addf %74, %93 : vector<8x256xf32>
    %c239_i32 = arith.constant 239 : i32
    %95 = tpu.dynamic_rotate %1 by %c239_i32 dim 1 : vector<8x256xf32>, i32 -> vector<8x256xf32>
    %c0_60 = arith.constant 0 : index
    %c18 = arith.constant 18 : index
    %c0_61 = arith.constant 0 : index
    %c0_62 = arith.constant 0 : index
    %96 = vector.load %arg2[%c0_60, %c18, %c0_61, %c0_62] : memref<4x25x8x256xf32, #tpu.memory_space<vmem>>, vector<1x1x8x256xf32>
    %97 = vector.shape_cast %96 : vector<1x1x8x256xf32> to vector<8x256xf32>
    %98 = arith.mulf %95, %97 : vector<8x256xf32>
    %99 = arith.addf %79, %98 : vector<8x256xf32>
    %c238_i32 = arith.constant 238 : i32
    %100 = tpu.dynamic_rotate %1 by %c238_i32 dim 1 : vector<8x256xf32>, i32 -> vector<8x256xf32>
    %c0_63 = arith.constant 0 : index
    %c19 = arith.constant 19 : index
    %c0_64 = arith.constant 0 : index
    %c0_65 = arith.constant 0 : index
    %101 = vector.load %arg2[%c0_63, %c19, %c0_64, %c0_65] : memref<4x25x8x256xf32, #tpu.memory_space<vmem>>, vector<1x1x8x256xf32>
    %102 = vector.shape_cast %101 : vector<1x1x8x256xf32> to vector<8x256xf32>
    %103 = arith.mulf %100, %102 : vector<8x256xf32>
    %104 = arith.addf %84, %103 : vector<8x256xf32>
    %c226_i32 = arith.constant 226 : i32
    %105 = tpu.dynamic_rotate %1 by %c226_i32 dim 1 : vector<8x256xf32>, i32 -> vector<8x256xf32>
    %c0_66 = arith.constant 0 : index
    %c20 = arith.constant 20 : index
    %c0_67 = arith.constant 0 : index
    %c0_68 = arith.constant 0 : index
    %106 = vector.load %arg2[%c0_66, %c20, %c0_67, %c0_68] : memref<4x25x8x256xf32, #tpu.memory_space<vmem>>, vector<1x1x8x256xf32>
    %107 = vector.shape_cast %106 : vector<1x1x8x256xf32> to vector<8x256xf32>
    %108 = arith.mulf %105, %107 : vector<8x256xf32>
    %109 = arith.addf %89, %108 : vector<8x256xf32>
    %c225_i32 = arith.constant 225 : i32
    %110 = tpu.dynamic_rotate %1 by %c225_i32 dim 1 : vector<8x256xf32>, i32 -> vector<8x256xf32>
    %c0_69 = arith.constant 0 : index
    %c21 = arith.constant 21 : index
    %c0_70 = arith.constant 0 : index
    %c0_71 = arith.constant 0 : index
    %111 = vector.load %arg2[%c0_69, %c21, %c0_70, %c0_71] : memref<4x25x8x256xf32, #tpu.memory_space<vmem>>, vector<1x1x8x256xf32>
    %112 = vector.shape_cast %111 : vector<1x1x8x256xf32> to vector<8x256xf32>
    %113 = arith.mulf %110, %112 : vector<8x256xf32>
    %114 = arith.addf %94, %113 : vector<8x256xf32>
    %c224_i32 = arith.constant 224 : i32
    %115 = tpu.dynamic_rotate %1 by %c224_i32 dim 1 : vector<8x256xf32>, i32 -> vector<8x256xf32>
    %c0_72 = arith.constant 0 : index
    %c22 = arith.constant 22 : index
    %c0_73 = arith.constant 0 : index
    %c0_74 = arith.constant 0 : index
    %116 = vector.load %arg2[%c0_72, %c22, %c0_73, %c0_74] : memref<4x25x8x256xf32, #tpu.memory_space<vmem>>, vector<1x1x8x256xf32>
    %117 = vector.shape_cast %116 : vector<1x1x8x256xf32> to vector<8x256xf32>
    %118 = arith.mulf %115, %117 : vector<8x256xf32>
    %119 = arith.addf %99, %118 : vector<8x256xf32>
    %c223_i32 = arith.constant 223 : i32
    %120 = tpu.dynamic_rotate %1 by %c223_i32 dim 1 : vector<8x256xf32>, i32 -> vector<8x256xf32>
    %c0_75 = arith.constant 0 : index
    %c23 = arith.constant 23 : index
    %c0_76 = arith.constant 0 : index
    %c0_77 = arith.constant 0 : index
    %121 = vector.load %arg2[%c0_75, %c23, %c0_76, %c0_77] : memref<4x25x8x256xf32, #tpu.memory_space<vmem>>, vector<1x1x8x256xf32>
    %122 = vector.shape_cast %121 : vector<1x1x8x256xf32> to vector<8x256xf32>
    %123 = arith.mulf %120, %122 : vector<8x256xf32>
    %124 = arith.addf %104, %123 : vector<8x256xf32>
    %c222_i32 = arith.constant 222 : i32
    %125 = tpu.dynamic_rotate %1 by %c222_i32 dim 1 : vector<8x256xf32>, i32 -> vector<8x256xf32>
    %c0_78 = arith.constant 0 : index
    %c24 = arith.constant 24 : index
    %c0_79 = arith.constant 0 : index
    %c0_80 = arith.constant 0 : index
    %126 = vector.load %arg2[%c0_78, %c24, %c0_79, %c0_80] : memref<4x25x8x256xf32, #tpu.memory_space<vmem>>, vector<1x1x8x256xf32>
    %127 = vector.shape_cast %126 : vector<1x1x8x256xf32> to vector<8x256xf32>
    %128 = arith.mulf %125, %127 : vector<8x256xf32>
    %129 = arith.addf %109, %128 : vector<8x256xf32>
    %130 = arith.addf %129, %114 : vector<8x256xf32>
    %131 = arith.addf %119, %124 : vector<8x256xf32>
    %132 = arith.addf %130, %131 : vector<8x256xf32>
    %133 = vector.broadcast %6 : vector<8x1xf32> to vector<8x256xf32>
    %134 = arith.addf %132, %133 : vector<8x256xf32>
    %cst = arith.constant 0.000000e+00 : f32
    %cst_81 = arith.constant 6.000000e+00 : f32
    %135 = vector.broadcast %cst : f32 to vector<8x256xf32>
    %136 = arith.maximumf %135, %134 : vector<8x256xf32>
    %137 = vector.broadcast %cst_81 : f32 to vector<8x256xf32>
    %138 = arith.minimumf %137, %136 : vector<8x256xf32>
    %cst_82 = arith.constant dense<0.000000e+00> : vector<8x256xf32>
    %139 = tpu.matmul %4, %138, %cst_82 {dimension_numbers = #tpu.dot_dimension_numbers<[1], [0], [0], [1], [0, 0, 1, 1], [], []>} : vector<8x8xf32>, vector<8x256xf32>, vector<8x256xf32> -> vector<8x256xf32>
    %140 = vector.broadcast %7 : vector<8x1xf32> to vector<8x256xf32>
    %141 = arith.addf %139, %140 : vector<8x256xf32>
    %cst_83 = arith.constant 0.000000e+00 : f32
    %cst_84 = arith.constant 6.000000e+00 : f32
    %142 = vector.broadcast %cst_83 : f32 to vector<8x256xf32>
    %143 = arith.maximumf %142, %141 : vector<8x256xf32>
    %144 = vector.broadcast %cst_84 : f32 to vector<8x256xf32>
    %145 = arith.minimumf %144, %143 : vector<8x256xf32>
    %cst_85 = arith.constant dense<0.000000e+00> : vector<8x256xf32>
    %146 = tpu.matmul %5, %145, %cst_85 {dimension_numbers = #tpu.dot_dimension_numbers<[1], [0], [0], [1], [0, 0, 1, 1], [], []>} : vector<8x8xf32>, vector<8x256xf32>, vector<8x256xf32> -> vector<8x256xf32>
    %147 = vector.broadcast %8 : vector<8x1xf32> to vector<8x256xf32>
    %148 = arith.addf %146, %147 : vector<8x256xf32>
    %cst_86 = arith.constant 0.000000e+00 : f32
    %cst_87 = arith.constant 6.000000e+00 : f32
    %149 = vector.broadcast %cst_86 : f32 to vector<8x256xf32>
    %150 = arith.maximumf %149, %148 : vector<8x256xf32>
    %151 = vector.broadcast %cst_87 : f32 to vector<8x256xf32>
    %152 = arith.minimumf %151, %150 : vector<8x256xf32>
    %c34_i32_88 = arith.constant 34 : i32
    %153 = tpu.dynamic_rotate %152 by %c34_i32_88 dim 1 : vector<8x256xf32>, i32 -> vector<8x256xf32>
    %c1_89 = arith.constant 1 : index
    %c0_90 = arith.constant 0 : index
    %c0_91 = arith.constant 0 : index
    %c0_92 = arith.constant 0 : index
    %154 = vector.load %arg2[%c1_89, %c0_90, %c0_91, %c0_92] : memref<4x25x8x256xf32, #tpu.memory_space<vmem>>, vector<1x1x8x256xf32>
    %155 = vector.shape_cast %154 : vector<1x1x8x256xf32> to vector<8x256xf32>
    %156 = arith.mulf %153, %155 : vector<8x256xf32>
    %c33_i32_93 = arith.constant 33 : i32
    %157 = tpu.dynamic_rotate %152 by %c33_i32_93 dim 1 : vector<8x256xf32>, i32 -> vector<8x256xf32>
    %c1_94 = arith.constant 1 : index
    %c1_95 = arith.constant 1 : index
    %c0_96 = arith.constant 0 : index
    %c0_97 = arith.constant 0 : index
    %158 = vector.load %arg2[%c1_94, %c1_95, %c0_96, %c0_97] : memref<4x25x8x256xf32, #tpu.memory_space<vmem>>, vector<1x1x8x256xf32>
    %159 = vector.shape_cast %158 : vector<1x1x8x256xf32> to vector<8x256xf32>
    %160 = arith.mulf %157, %159 : vector<8x256xf32>
    %c32_i32_98 = arith.constant 32 : i32
    %161 = tpu.dynamic_rotate %152 by %c32_i32_98 dim 1 : vector<8x256xf32>, i32 -> vector<8x256xf32>
    %c1_99 = arith.constant 1 : index
    %c2_100 = arith.constant 2 : index
    %c0_101 = arith.constant 0 : index
    %c0_102 = arith.constant 0 : index
    %162 = vector.load %arg2[%c1_99, %c2_100, %c0_101, %c0_102] : memref<4x25x8x256xf32, #tpu.memory_space<vmem>>, vector<1x1x8x256xf32>
    %163 = vector.shape_cast %162 : vector<1x1x8x256xf32> to vector<8x256xf32>
    %164 = arith.mulf %161, %163 : vector<8x256xf32>
    %c31_i32_103 = arith.constant 31 : i32
    %165 = tpu.dynamic_rotate %152 by %c31_i32_103 dim 1 : vector<8x256xf32>, i32 -> vector<8x256xf32>
    %c1_104 = arith.constant 1 : index
    %c3_105 = arith.constant 3 : index
    %c0_106 = arith.constant 0 : index
    %c0_107 = arith.constant 0 : index
    %166 = vector.load %arg2[%c1_104, %c3_105, %c0_106, %c0_107] : memref<4x25x8x256xf32, #tpu.memory_space<vmem>>, vector<1x1x8x256xf32>
    %167 = vector.shape_cast %166 : vector<1x1x8x256xf32> to vector<8x256xf32>
    %168 = arith.mulf %165, %167 : vector<8x256xf32>
    %c30_i32_108 = arith.constant 30 : i32
    %169 = tpu.dynamic_rotate %152 by %c30_i32_108 dim 1 : vector<8x256xf32>, i32 -> vector<8x256xf32>
    %c1_109 = arith.constant 1 : index
    %c4_110 = arith.constant 4 : index
    %c0_111 = arith.constant 0 : index
    %c0_112 = arith.constant 0 : index
    %170 = vector.load %arg2[%c1_109, %c4_110, %c0_111, %c0_112] : memref<4x25x8x256xf32, #tpu.memory_space<vmem>>, vector<1x1x8x256xf32>
    %171 = vector.shape_cast %170 : vector<1x1x8x256xf32> to vector<8x256xf32>
    %172 = arith.mulf %169, %171 : vector<8x256xf32>
    %173 = arith.addf %156, %172 : vector<8x256xf32>
    %c18_i32_113 = arith.constant 18 : i32
    %174 = tpu.dynamic_rotate %152 by %c18_i32_113 dim 1 : vector<8x256xf32>, i32 -> vector<8x256xf32>
    %c1_114 = arith.constant 1 : index
    %c5_115 = arith.constant 5 : index
    %c0_116 = arith.constant 0 : index
    %c0_117 = arith.constant 0 : index
    %175 = vector.load %arg2[%c1_114, %c5_115, %c0_116, %c0_117] : memref<4x25x8x256xf32, #tpu.memory_space<vmem>>, vector<1x1x8x256xf32>
    %176 = vector.shape_cast %175 : vector<1x1x8x256xf32> to vector<8x256xf32>
    %177 = arith.mulf %174, %176 : vector<8x256xf32>
    %178 = arith.addf %160, %177 : vector<8x256xf32>
    %c17_i32_118 = arith.constant 17 : i32
    %179 = tpu.dynamic_rotate %152 by %c17_i32_118 dim 1 : vector<8x256xf32>, i32 -> vector<8x256xf32>
    %c1_119 = arith.constant 1 : index
    %c6_120 = arith.constant 6 : index
    %c0_121 = arith.constant 0 : index
    %c0_122 = arith.constant 0 : index
    %180 = vector.load %arg2[%c1_119, %c6_120, %c0_121, %c0_122] : memref<4x25x8x256xf32, #tpu.memory_space<vmem>>, vector<1x1x8x256xf32>
    %181 = vector.shape_cast %180 : vector<1x1x8x256xf32> to vector<8x256xf32>
    %182 = arith.mulf %179, %181 : vector<8x256xf32>
    %183 = arith.addf %164, %182 : vector<8x256xf32>
    %c16_i32_123 = arith.constant 16 : i32
    %184 = tpu.dynamic_rotate %152 by %c16_i32_123 dim 1 : vector<8x256xf32>, i32 -> vector<8x256xf32>
    %c1_124 = arith.constant 1 : index
    %c7_125 = arith.constant 7 : index
    %c0_126 = arith.constant 0 : index
    %c0_127 = arith.constant 0 : index
    %185 = vector.load %arg2[%c1_124, %c7_125, %c0_126, %c0_127] : memref<4x25x8x256xf32, #tpu.memory_space<vmem>>, vector<1x1x8x256xf32>
    %186 = vector.shape_cast %185 : vector<1x1x8x256xf32> to vector<8x256xf32>
    %187 = arith.mulf %184, %186 : vector<8x256xf32>
    %188 = arith.addf %168, %187 : vector<8x256xf32>
    %c15_i32_128 = arith.constant 15 : i32
    %189 = tpu.dynamic_rotate %152 by %c15_i32_128 dim 1 : vector<8x256xf32>, i32 -> vector<8x256xf32>
    %c1_129 = arith.constant 1 : index
    %c8_130 = arith.constant 8 : index
    %c0_131 = arith.constant 0 : index
    %c0_132 = arith.constant 0 : index
    %190 = vector.load %arg2[%c1_129, %c8_130, %c0_131, %c0_132] : memref<4x25x8x256xf32, #tpu.memory_space<vmem>>, vector<1x1x8x256xf32>
    %191 = vector.shape_cast %190 : vector<1x1x8x256xf32> to vector<8x256xf32>
    %192 = arith.mulf %189, %191 : vector<8x256xf32>
    %193 = arith.addf %173, %192 : vector<8x256xf32>
    %c14_i32_133 = arith.constant 14 : i32
    %194 = tpu.dynamic_rotate %152 by %c14_i32_133 dim 1 : vector<8x256xf32>, i32 -> vector<8x256xf32>
    %c1_134 = arith.constant 1 : index
    %c9_135 = arith.constant 9 : index
    %c0_136 = arith.constant 0 : index
    %c0_137 = arith.constant 0 : index
    %195 = vector.load %arg2[%c1_134, %c9_135, %c0_136, %c0_137] : memref<4x25x8x256xf32, #tpu.memory_space<vmem>>, vector<1x1x8x256xf32>
    %196 = vector.shape_cast %195 : vector<1x1x8x256xf32> to vector<8x256xf32>
    %197 = arith.mulf %194, %196 : vector<8x256xf32>
    %198 = arith.addf %178, %197 : vector<8x256xf32>
    %c2_i32_138 = arith.constant 2 : i32
    %199 = tpu.dynamic_rotate %152 by %c2_i32_138 dim 1 : vector<8x256xf32>, i32 -> vector<8x256xf32>
    %c1_139 = arith.constant 1 : index
    %c10_140 = arith.constant 10 : index
    %c0_141 = arith.constant 0 : index
    %c0_142 = arith.constant 0 : index
    %200 = vector.load %arg2[%c1_139, %c10_140, %c0_141, %c0_142] : memref<4x25x8x256xf32, #tpu.memory_space<vmem>>, vector<1x1x8x256xf32>
    %201 = vector.shape_cast %200 : vector<1x1x8x256xf32> to vector<8x256xf32>
    %202 = arith.mulf %199, %201 : vector<8x256xf32>
    %203 = arith.addf %183, %202 : vector<8x256xf32>
    %c1_i32_143 = arith.constant 1 : i32
    %204 = tpu.dynamic_rotate %152 by %c1_i32_143 dim 1 : vector<8x256xf32>, i32 -> vector<8x256xf32>
    %c1_144 = arith.constant 1 : index
    %c11_145 = arith.constant 11 : index
    %c0_146 = arith.constant 0 : index
    %c0_147 = arith.constant 0 : index
    %205 = vector.load %arg2[%c1_144, %c11_145, %c0_146, %c0_147] : memref<4x25x8x256xf32, #tpu.memory_space<vmem>>, vector<1x1x8x256xf32>
    %206 = vector.shape_cast %205 : vector<1x1x8x256xf32> to vector<8x256xf32>
    %207 = arith.mulf %204, %206 : vector<8x256xf32>
    %208 = arith.addf %188, %207 : vector<8x256xf32>
    %c1_148 = arith.constant 1 : index
    %c12_149 = arith.constant 12 : index
    %c0_150 = arith.constant 0 : index
    %c0_151 = arith.constant 0 : index
    %209 = vector.load %arg2[%c1_148, %c12_149, %c0_150, %c0_151] : memref<4x25x8x256xf32, #tpu.memory_space<vmem>>, vector<1x1x8x256xf32>
    %210 = vector.shape_cast %209 : vector<1x1x8x256xf32> to vector<8x256xf32>
    %211 = arith.mulf %152, %210 : vector<8x256xf32>
    %212 = arith.addf %193, %211 : vector<8x256xf32>
    %c255_i32_152 = arith.constant 255 : i32
    %213 = tpu.dynamic_rotate %152 by %c255_i32_152 dim 1 : vector<8x256xf32>, i32 -> vector<8x256xf32>
    %c1_153 = arith.constant 1 : index
    %c13_154 = arith.constant 13 : index
    %c0_155 = arith.constant 0 : index
    %c0_156 = arith.constant 0 : index
    %214 = vector.load %arg2[%c1_153, %c13_154, %c0_155, %c0_156] : memref<4x25x8x256xf32, #tpu.memory_space<vmem>>, vector<1x1x8x256xf32>
    %215 = vector.shape_cast %214 : vector<1x1x8x256xf32> to vector<8x256xf32>
    %216 = arith.mulf %213, %215 : vector<8x256xf32>
    %217 = arith.addf %198, %216 : vector<8x256xf32>
    %c254_i32_157 = arith.constant 254 : i32
    %218 = tpu.dynamic_rotate %152 by %c254_i32_157 dim 1 : vector<8x256xf32>, i32 -> vector<8x256xf32>
    %c1_158 = arith.constant 1 : index
    %c14_159 = arith.constant 14 : index
    %c0_160 = arith.constant 0 : index
    %c0_161 = arith.constant 0 : index
    %219 = vector.load %arg2[%c1_158, %c14_159, %c0_160, %c0_161] : memref<4x25x8x256xf32, #tpu.memory_space<vmem>>, vector<1x1x8x256xf32>
    %220 = vector.shape_cast %219 : vector<1x1x8x256xf32> to vector<8x256xf32>
    %221 = arith.mulf %218, %220 : vector<8x256xf32>
    %222 = arith.addf %203, %221 : vector<8x256xf32>
    %c242_i32_162 = arith.constant 242 : i32
    %223 = tpu.dynamic_rotate %152 by %c242_i32_162 dim 1 : vector<8x256xf32>, i32 -> vector<8x256xf32>
    %c1_163 = arith.constant 1 : index
    %c15_164 = arith.constant 15 : index
    %c0_165 = arith.constant 0 : index
    %c0_166 = arith.constant 0 : index
    %224 = vector.load %arg2[%c1_163, %c15_164, %c0_165, %c0_166] : memref<4x25x8x256xf32, #tpu.memory_space<vmem>>, vector<1x1x8x256xf32>
    %225 = vector.shape_cast %224 : vector<1x1x8x256xf32> to vector<8x256xf32>
    %226 = arith.mulf %223, %225 : vector<8x256xf32>
    %227 = arith.addf %208, %226 : vector<8x256xf32>
    %c241_i32_167 = arith.constant 241 : i32
    %228 = tpu.dynamic_rotate %152 by %c241_i32_167 dim 1 : vector<8x256xf32>, i32 -> vector<8x256xf32>
    %c1_168 = arith.constant 1 : index
    %c16_169 = arith.constant 16 : index
    %c0_170 = arith.constant 0 : index
    %c0_171 = arith.constant 0 : index
    %229 = vector.load %arg2[%c1_168, %c16_169, %c0_170, %c0_171] : memref<4x25x8x256xf32, #tpu.memory_space<vmem>>, vector<1x1x8x256xf32>
    %230 = vector.shape_cast %229 : vector<1x1x8x256xf32> to vector<8x256xf32>
    %231 = arith.mulf %228, %230 : vector<8x256xf32>
    %232 = arith.addf %212, %231 : vector<8x256xf32>
    %c240_i32_172 = arith.constant 240 : i32
    %233 = tpu.dynamic_rotate %152 by %c240_i32_172 dim 1 : vector<8x256xf32>, i32 -> vector<8x256xf32>
    %c1_173 = arith.constant 1 : index
    %c17_174 = arith.constant 17 : index
    %c0_175 = arith.constant 0 : index
    %c0_176 = arith.constant 0 : index
    %234 = vector.load %arg2[%c1_173, %c17_174, %c0_175, %c0_176] : memref<4x25x8x256xf32, #tpu.memory_space<vmem>>, vector<1x1x8x256xf32>
    %235 = vector.shape_cast %234 : vector<1x1x8x256xf32> to vector<8x256xf32>
    %236 = arith.mulf %233, %235 : vector<8x256xf32>
    %237 = arith.addf %217, %236 : vector<8x256xf32>
    %c239_i32_177 = arith.constant 239 : i32
    %238 = tpu.dynamic_rotate %152 by %c239_i32_177 dim 1 : vector<8x256xf32>, i32 -> vector<8x256xf32>
    %c1_178 = arith.constant 1 : index
    %c18_179 = arith.constant 18 : index
    %c0_180 = arith.constant 0 : index
    %c0_181 = arith.constant 0 : index
    %239 = vector.load %arg2[%c1_178, %c18_179, %c0_180, %c0_181] : memref<4x25x8x256xf32, #tpu.memory_space<vmem>>, vector<1x1x8x256xf32>
    %240 = vector.shape_cast %239 : vector<1x1x8x256xf32> to vector<8x256xf32>
    %241 = arith.mulf %238, %240 : vector<8x256xf32>
    %242 = arith.addf %222, %241 : vector<8x256xf32>
    %c238_i32_182 = arith.constant 238 : i32
    %243 = tpu.dynamic_rotate %152 by %c238_i32_182 dim 1 : vector<8x256xf32>, i32 -> vector<8x256xf32>
    %c1_183 = arith.constant 1 : index
    %c19_184 = arith.constant 19 : index
    %c0_185 = arith.constant 0 : index
    %c0_186 = arith.constant 0 : index
    %244 = vector.load %arg2[%c1_183, %c19_184, %c0_185, %c0_186] : memref<4x25x8x256xf32, #tpu.memory_space<vmem>>, vector<1x1x8x256xf32>
    %245 = vector.shape_cast %244 : vector<1x1x8x256xf32> to vector<8x256xf32>
    %246 = arith.mulf %243, %245 : vector<8x256xf32>
    %247 = arith.addf %227, %246 : vector<8x256xf32>
    %c226_i32_187 = arith.constant 226 : i32
    %248 = tpu.dynamic_rotate %152 by %c226_i32_187 dim 1 : vector<8x256xf32>, i32 -> vector<8x256xf32>
    %c1_188 = arith.constant 1 : index
    %c20_189 = arith.constant 20 : index
    %c0_190 = arith.constant 0 : index
    %c0_191 = arith.constant 0 : index
    %249 = vector.load %arg2[%c1_188, %c20_189, %c0_190, %c0_191] : memref<4x25x8x256xf32, #tpu.memory_space<vmem>>, vector<1x1x8x256xf32>
    %250 = vector.shape_cast %249 : vector<1x1x8x256xf32> to vector<8x256xf32>
    %251 = arith.mulf %248, %250 : vector<8x256xf32>
    %252 = arith.addf %232, %251 : vector<8x256xf32>
    %c225_i32_192 = arith.constant 225 : i32
    %253 = tpu.dynamic_rotate %152 by %c225_i32_192 dim 1 : vector<8x256xf32>, i32 -> vector<8x256xf32>
    %c1_193 = arith.constant 1 : index
    %c21_194 = arith.constant 21 : index
    %c0_195 = arith.constant 0 : index
    %c0_196 = arith.constant 0 : index
    %254 = vector.load %arg2[%c1_193, %c21_194, %c0_195, %c0_196] : memref<4x25x8x256xf32, #tpu.memory_space<vmem>>, vector<1x1x8x256xf32>
    %255 = vector.shape_cast %254 : vector<1x1x8x256xf32> to vector<8x256xf32>
    %256 = arith.mulf %253, %255 : vector<8x256xf32>
    %257 = arith.addf %237, %256 : vector<8x256xf32>
    %c224_i32_197 = arith.constant 224 : i32
    %258 = tpu.dynamic_rotate %152 by %c224_i32_197 dim 1 : vector<8x256xf32>, i32 -> vector<8x256xf32>
    %c1_198 = arith.constant 1 : index
    %c22_199 = arith.constant 22 : index
    %c0_200 = arith.constant 0 : index
    %c0_201 = arith.constant 0 : index
    %259 = vector.load %arg2[%c1_198, %c22_199, %c0_200, %c0_201] : memref<4x25x8x256xf32, #tpu.memory_space<vmem>>, vector<1x1x8x256xf32>
    %260 = vector.shape_cast %259 : vector<1x1x8x256xf32> to vector<8x256xf32>
    %261 = arith.mulf %258, %260 : vector<8x256xf32>
    %262 = arith.addf %242, %261 : vector<8x256xf32>
    %c223_i32_202 = arith.constant 223 : i32
    %263 = tpu.dynamic_rotate %152 by %c223_i32_202 dim 1 : vector<8x256xf32>, i32 -> vector<8x256xf32>
    %c1_203 = arith.constant 1 : index
    %c23_204 = arith.constant 23 : index
    %c0_205 = arith.constant 0 : index
    %c0_206 = arith.constant 0 : index
    %264 = vector.load %arg2[%c1_203, %c23_204, %c0_205, %c0_206] : memref<4x25x8x256xf32, #tpu.memory_space<vmem>>, vector<1x1x8x256xf32>
    %265 = vector.shape_cast %264 : vector<1x1x8x256xf32> to vector<8x256xf32>
    %266 = arith.mulf %263, %265 : vector<8x256xf32>
    %267 = arith.addf %247, %266 : vector<8x256xf32>
    %c222_i32_207 = arith.constant 222 : i32
    %268 = tpu.dynamic_rotate %152 by %c222_i32_207 dim 1 : vector<8x256xf32>, i32 -> vector<8x256xf32>
    %c1_208 = arith.constant 1 : index
    %c24_209 = arith.constant 24 : index
    %c0_210 = arith.constant 0 : index
    %c0_211 = arith.constant 0 : index
    %269 = vector.load %arg2[%c1_208, %c24_209, %c0_210, %c0_211] : memref<4x25x8x256xf32, #tpu.memory_space<vmem>>, vector<1x1x8x256xf32>
    %270 = vector.shape_cast %269 : vector<1x1x8x256xf32> to vector<8x256xf32>
    %271 = arith.mulf %268, %270 : vector<8x256xf32>
    %272 = arith.addf %252, %271 : vector<8x256xf32>
    %273 = arith.addf %272, %257 : vector<8x256xf32>
    %274 = arith.addf %262, %267 : vector<8x256xf32>
    %275 = arith.addf %273, %274 : vector<8x256xf32>
    %276 = vector.broadcast %9 : vector<8x1xf32> to vector<8x256xf32>
    %277 = arith.addf %275, %276 : vector<8x256xf32>
    %cst_212 = arith.constant 0.000000e+00 : f32
    %cst_213 = arith.constant 6.000000e+00 : f32
    %278 = vector.broadcast %cst_212 : f32 to vector<8x256xf32>
    %279 = arith.maximumf %278, %277 : vector<8x256xf32>
    %280 = vector.broadcast %cst_213 : f32 to vector<8x256xf32>
    %281 = arith.minimumf %280, %279 : vector<8x256xf32>
    %c1_214 = arith.constant 1 : index
    %c0_215 = arith.constant 0 : index
    %c0_216 = arith.constant 0 : index
    %282 = vector.load %arg3[%c1_214, %c0_215, %c0_216] : memref<2x8x128xf32, #tpu.memory_space<vmem>>, vector<1x8x128xf32>
    %283 = vector.shape_cast %282 : vector<1x8x128xf32> to vector<8x128xf32>
    %284 = vector.extract_strided_slice %283 {offsets = [0, 0], sizes = [8, 8], strides = [1, 1]} : vector<8x128xf32> to vector<8x8xf32>
    %285 = vector.extract_strided_slice %283 {offsets = [0, 8], sizes = [8, 8], strides = [1, 1]} : vector<8x128xf32> to vector<8x8xf32>
    %286 = vector.extract_strided_slice %283 {offsets = [0, 16], sizes = [8, 1], strides = [1, 1]} : vector<8x128xf32> to vector<8x1xf32>
    %287 = vector.extract_strided_slice %283 {offsets = [0, 17], sizes = [8, 1], strides = [1, 1]} : vector<8x128xf32> to vector<8x1xf32>
    %288 = vector.extract_strided_slice %283 {offsets = [0, 18], sizes = [8, 1], strides = [1, 1]} : vector<8x128xf32> to vector<8x1xf32>
    %289 = vector.extract_strided_slice %283 {offsets = [0, 19], sizes = [8, 1], strides = [1, 1]} : vector<8x128xf32> to vector<8x1xf32>
    %c34_i32_217 = arith.constant 34 : i32
    %290 = tpu.dynamic_rotate %281 by %c34_i32_217 dim 1 : vector<8x256xf32>, i32 -> vector<8x256xf32>
    %c2_218 = arith.constant 2 : index
    %c0_219 = arith.constant 0 : index
    %c0_220 = arith.constant 0 : index
    %c0_221 = arith.constant 0 : index
    %291 = vector.load %arg2[%c2_218, %c0_219, %c0_220, %c0_221] : memref<4x25x8x256xf32, #tpu.memory_space<vmem>>, vector<1x1x8x256xf32>
    %292 = vector.shape_cast %291 : vector<1x1x8x256xf32> to vector<8x256xf32>
    %293 = arith.mulf %290, %292 : vector<8x256xf32>
    %c33_i32_222 = arith.constant 33 : i32
    %294 = tpu.dynamic_rotate %281 by %c33_i32_222 dim 1 : vector<8x256xf32>, i32 -> vector<8x256xf32>
    %c2_223 = arith.constant 2 : index
    %c1_224 = arith.constant 1 : index
    %c0_225 = arith.constant 0 : index
    %c0_226 = arith.constant 0 : index
    %295 = vector.load %arg2[%c2_223, %c1_224, %c0_225, %c0_226] : memref<4x25x8x256xf32, #tpu.memory_space<vmem>>, vector<1x1x8x256xf32>
    %296 = vector.shape_cast %295 : vector<1x1x8x256xf32> to vector<8x256xf32>
    %297 = arith.mulf %294, %296 : vector<8x256xf32>
    %c32_i32_227 = arith.constant 32 : i32
    %298 = tpu.dynamic_rotate %281 by %c32_i32_227 dim 1 : vector<8x256xf32>, i32 -> vector<8x256xf32>
    %c2_228 = arith.constant 2 : index
    %c2_229 = arith.constant 2 : index
    %c0_230 = arith.constant 0 : index
    %c0_231 = arith.constant 0 : index
    %299 = vector.load %arg2[%c2_228, %c2_229, %c0_230, %c0_231] : memref<4x25x8x256xf32, #tpu.memory_space<vmem>>, vector<1x1x8x256xf32>
    %300 = vector.shape_cast %299 : vector<1x1x8x256xf32> to vector<8x256xf32>
    %301 = arith.mulf %298, %300 : vector<8x256xf32>
    %c31_i32_232 = arith.constant 31 : i32
    %302 = tpu.dynamic_rotate %281 by %c31_i32_232 dim 1 : vector<8x256xf32>, i32 -> vector<8x256xf32>
    %c2_233 = arith.constant 2 : index
    %c3_234 = arith.constant 3 : index
    %c0_235 = arith.constant 0 : index
    %c0_236 = arith.constant 0 : index
    %303 = vector.load %arg2[%c2_233, %c3_234, %c0_235, %c0_236] : memref<4x25x8x256xf32, #tpu.memory_space<vmem>>, vector<1x1x8x256xf32>
    %304 = vector.shape_cast %303 : vector<1x1x8x256xf32> to vector<8x256xf32>
    %305 = arith.mulf %302, %304 : vector<8x256xf32>
    %c30_i32_237 = arith.constant 30 : i32
    %306 = tpu.dynamic_rotate %281 by %c30_i32_237 dim 1 : vector<8x256xf32>, i32 -> vector<8x256xf32>
    %c2_238 = arith.constant 2 : index
    %c4_239 = arith.constant 4 : index
    %c0_240 = arith.constant 0 : index
    %c0_241 = arith.constant 0 : index
    %307 = vector.load %arg2[%c2_238, %c4_239, %c0_240, %c0_241] : memref<4x25x8x256xf32, #tpu.memory_space<vmem>>, vector<1x1x8x256xf32>
    %308 = vector.shape_cast %307 : vector<1x1x8x256xf32> to vector<8x256xf32>
    %309 = arith.mulf %306, %308 : vector<8x256xf32>
    %310 = arith.addf %293, %309 : vector<8x256xf32>
    %c18_i32_242 = arith.constant 18 : i32
    %311 = tpu.dynamic_rotate %281 by %c18_i32_242 dim 1 : vector<8x256xf32>, i32 -> vector<8x256xf32>
    %c2_243 = arith.constant 2 : index
    %c5_244 = arith.constant 5 : index
    %c0_245 = arith.constant 0 : index
    %c0_246 = arith.constant 0 : index
    %312 = vector.load %arg2[%c2_243, %c5_244, %c0_245, %c0_246] : memref<4x25x8x256xf32, #tpu.memory_space<vmem>>, vector<1x1x8x256xf32>
    %313 = vector.shape_cast %312 : vector<1x1x8x256xf32> to vector<8x256xf32>
    %314 = arith.mulf %311, %313 : vector<8x256xf32>
    %315 = arith.addf %297, %314 : vector<8x256xf32>
    %c17_i32_247 = arith.constant 17 : i32
    %316 = tpu.dynamic_rotate %281 by %c17_i32_247 dim 1 : vector<8x256xf32>, i32 -> vector<8x256xf32>
    %c2_248 = arith.constant 2 : index
    %c6_249 = arith.constant 6 : index
    %c0_250 = arith.constant 0 : index
    %c0_251 = arith.constant 0 : index
    %317 = vector.load %arg2[%c2_248, %c6_249, %c0_250, %c0_251] : memref<4x25x8x256xf32, #tpu.memory_space<vmem>>, vector<1x1x8x256xf32>
    %318 = vector.shape_cast %317 : vector<1x1x8x256xf32> to vector<8x256xf32>
    %319 = arith.mulf %316, %318 : vector<8x256xf32>
    %320 = arith.addf %301, %319 : vector<8x256xf32>
    %c16_i32_252 = arith.constant 16 : i32
    %321 = tpu.dynamic_rotate %281 by %c16_i32_252 dim 1 : vector<8x256xf32>, i32 -> vector<8x256xf32>
    %c2_253 = arith.constant 2 : index
    %c7_254 = arith.constant 7 : index
    %c0_255 = arith.constant 0 : index
    %c0_256 = arith.constant 0 : index
    %322 = vector.load %arg2[%c2_253, %c7_254, %c0_255, %c0_256] : memref<4x25x8x256xf32, #tpu.memory_space<vmem>>, vector<1x1x8x256xf32>
    %323 = vector.shape_cast %322 : vector<1x1x8x256xf32> to vector<8x256xf32>
    %324 = arith.mulf %321, %323 : vector<8x256xf32>
    %325 = arith.addf %305, %324 : vector<8x256xf32>
    %c15_i32_257 = arith.constant 15 : i32
    %326 = tpu.dynamic_rotate %281 by %c15_i32_257 dim 1 : vector<8x256xf32>, i32 -> vector<8x256xf32>
    %c2_258 = arith.constant 2 : index
    %c8_259 = arith.constant 8 : index
    %c0_260 = arith.constant 0 : index
    %c0_261 = arith.constant 0 : index
    %327 = vector.load %arg2[%c2_258, %c8_259, %c0_260, %c0_261] : memref<4x25x8x256xf32, #tpu.memory_space<vmem>>, vector<1x1x8x256xf32>
    %328 = vector.shape_cast %327 : vector<1x1x8x256xf32> to vector<8x256xf32>
    %329 = arith.mulf %326, %328 : vector<8x256xf32>
    %330 = arith.addf %310, %329 : vector<8x256xf32>
    %c14_i32_262 = arith.constant 14 : i32
    %331 = tpu.dynamic_rotate %281 by %c14_i32_262 dim 1 : vector<8x256xf32>, i32 -> vector<8x256xf32>
    %c2_263 = arith.constant 2 : index
    %c9_264 = arith.constant 9 : index
    %c0_265 = arith.constant 0 : index
    %c0_266 = arith.constant 0 : index
    %332 = vector.load %arg2[%c2_263, %c9_264, %c0_265, %c0_266] : memref<4x25x8x256xf32, #tpu.memory_space<vmem>>, vector<1x1x8x256xf32>
    %333 = vector.shape_cast %332 : vector<1x1x8x256xf32> to vector<8x256xf32>
    %334 = arith.mulf %331, %333 : vector<8x256xf32>
    %335 = arith.addf %315, %334 : vector<8x256xf32>
    %c2_i32_267 = arith.constant 2 : i32
    %336 = tpu.dynamic_rotate %281 by %c2_i32_267 dim 1 : vector<8x256xf32>, i32 -> vector<8x256xf32>
    %c2_268 = arith.constant 2 : index
    %c10_269 = arith.constant 10 : index
    %c0_270 = arith.constant 0 : index
    %c0_271 = arith.constant 0 : index
    %337 = vector.load %arg2[%c2_268, %c10_269, %c0_270, %c0_271] : memref<4x25x8x256xf32, #tpu.memory_space<vmem>>, vector<1x1x8x256xf32>
    %338 = vector.shape_cast %337 : vector<1x1x8x256xf32> to vector<8x256xf32>
    %339 = arith.mulf %336, %338 : vector<8x256xf32>
    %340 = arith.addf %320, %339 : vector<8x256xf32>
    %c1_i32_272 = arith.constant 1 : i32
    %341 = tpu.dynamic_rotate %281 by %c1_i32_272 dim 1 : vector<8x256xf32>, i32 -> vector<8x256xf32>
    %c2_273 = arith.constant 2 : index
    %c11_274 = arith.constant 11 : index
    %c0_275 = arith.constant 0 : index
    %c0_276 = arith.constant 0 : index
    %342 = vector.load %arg2[%c2_273, %c11_274, %c0_275, %c0_276] : memref<4x25x8x256xf32, #tpu.memory_space<vmem>>, vector<1x1x8x256xf32>
    %343 = vector.shape_cast %342 : vector<1x1x8x256xf32> to vector<8x256xf32>
    %344 = arith.mulf %341, %343 : vector<8x256xf32>
    %345 = arith.addf %325, %344 : vector<8x256xf32>
    %c2_277 = arith.constant 2 : index
    %c12_278 = arith.constant 12 : index
    %c0_279 = arith.constant 0 : index
    %c0_280 = arith.constant 0 : index
    %346 = vector.load %arg2[%c2_277, %c12_278, %c0_279, %c0_280] : memref<4x25x8x256xf32, #tpu.memory_space<vmem>>, vector<1x1x8x256xf32>
    %347 = vector.shape_cast %346 : vector<1x1x8x256xf32> to vector<8x256xf32>
    %348 = arith.mulf %281, %347 : vector<8x256xf32>
    %349 = arith.addf %330, %348 : vector<8x256xf32>
    %c255_i32_281 = arith.constant 255 : i32
    %350 = tpu.dynamic_rotate %281 by %c255_i32_281 dim 1 : vector<8x256xf32>, i32 -> vector<8x256xf32>
    %c2_282 = arith.constant 2 : index
    %c13_283 = arith.constant 13 : index
    %c0_284 = arith.constant 0 : index
    %c0_285 = arith.constant 0 : index
    %351 = vector.load %arg2[%c2_282, %c13_283, %c0_284, %c0_285] : memref<4x25x8x256xf32, #tpu.memory_space<vmem>>, vector<1x1x8x256xf32>
    %352 = vector.shape_cast %351 : vector<1x1x8x256xf32> to vector<8x256xf32>
    %353 = arith.mulf %350, %352 : vector<8x256xf32>
    %354 = arith.addf %335, %353 : vector<8x256xf32>
    %c254_i32_286 = arith.constant 254 : i32
    %355 = tpu.dynamic_rotate %281 by %c254_i32_286 dim 1 : vector<8x256xf32>, i32 -> vector<8x256xf32>
    %c2_287 = arith.constant 2 : index
    %c14_288 = arith.constant 14 : index
    %c0_289 = arith.constant 0 : index
    %c0_290 = arith.constant 0 : index
    %356 = vector.load %arg2[%c2_287, %c14_288, %c0_289, %c0_290] : memref<4x25x8x256xf32, #tpu.memory_space<vmem>>, vector<1x1x8x256xf32>
    %357 = vector.shape_cast %356 : vector<1x1x8x256xf32> to vector<8x256xf32>
    %358 = arith.mulf %355, %357 : vector<8x256xf32>
    %359 = arith.addf %340, %358 : vector<8x256xf32>
    %c242_i32_291 = arith.constant 242 : i32
    %360 = tpu.dynamic_rotate %281 by %c242_i32_291 dim 1 : vector<8x256xf32>, i32 -> vector<8x256xf32>
    %c2_292 = arith.constant 2 : index
    %c15_293 = arith.constant 15 : index
    %c0_294 = arith.constant 0 : index
    %c0_295 = arith.constant 0 : index
    %361 = vector.load %arg2[%c2_292, %c15_293, %c0_294, %c0_295] : memref<4x25x8x256xf32, #tpu.memory_space<vmem>>, vector<1x1x8x256xf32>
    %362 = vector.shape_cast %361 : vector<1x1x8x256xf32> to vector<8x256xf32>
    %363 = arith.mulf %360, %362 : vector<8x256xf32>
    %364 = arith.addf %345, %363 : vector<8x256xf32>
    %c241_i32_296 = arith.constant 241 : i32
    %365 = tpu.dynamic_rotate %281 by %c241_i32_296 dim 1 : vector<8x256xf32>, i32 -> vector<8x256xf32>
    %c2_297 = arith.constant 2 : index
    %c16_298 = arith.constant 16 : index
    %c0_299 = arith.constant 0 : index
    %c0_300 = arith.constant 0 : index
    %366 = vector.load %arg2[%c2_297, %c16_298, %c0_299, %c0_300] : memref<4x25x8x256xf32, #tpu.memory_space<vmem>>, vector<1x1x8x256xf32>
    %367 = vector.shape_cast %366 : vector<1x1x8x256xf32> to vector<8x256xf32>
    %368 = arith.mulf %365, %367 : vector<8x256xf32>
    %369 = arith.addf %349, %368 : vector<8x256xf32>
    %c240_i32_301 = arith.constant 240 : i32
    %370 = tpu.dynamic_rotate %281 by %c240_i32_301 dim 1 : vector<8x256xf32>, i32 -> vector<8x256xf32>
    %c2_302 = arith.constant 2 : index
    %c17_303 = arith.constant 17 : index
    %c0_304 = arith.constant 0 : index
    %c0_305 = arith.constant 0 : index
    %371 = vector.load %arg2[%c2_302, %c17_303, %c0_304, %c0_305] : memref<4x25x8x256xf32, #tpu.memory_space<vmem>>, vector<1x1x8x256xf32>
    %372 = vector.shape_cast %371 : vector<1x1x8x256xf32> to vector<8x256xf32>
    %373 = arith.mulf %370, %372 : vector<8x256xf32>
    %374 = arith.addf %354, %373 : vector<8x256xf32>
    %c239_i32_306 = arith.constant 239 : i32
    %375 = tpu.dynamic_rotate %281 by %c239_i32_306 dim 1 : vector<8x256xf32>, i32 -> vector<8x256xf32>
    %c2_307 = arith.constant 2 : index
    %c18_308 = arith.constant 18 : index
    %c0_309 = arith.constant 0 : index
    %c0_310 = arith.constant 0 : index
    %376 = vector.load %arg2[%c2_307, %c18_308, %c0_309, %c0_310] : memref<4x25x8x256xf32, #tpu.memory_space<vmem>>, vector<1x1x8x256xf32>
    %377 = vector.shape_cast %376 : vector<1x1x8x256xf32> to vector<8x256xf32>
    %378 = arith.mulf %375, %377 : vector<8x256xf32>
    %379 = arith.addf %359, %378 : vector<8x256xf32>
    %c238_i32_311 = arith.constant 238 : i32
    %380 = tpu.dynamic_rotate %281 by %c238_i32_311 dim 1 : vector<8x256xf32>, i32 -> vector<8x256xf32>
    %c2_312 = arith.constant 2 : index
    %c19_313 = arith.constant 19 : index
    %c0_314 = arith.constant 0 : index
    %c0_315 = arith.constant 0 : index
    %381 = vector.load %arg2[%c2_312, %c19_313, %c0_314, %c0_315] : memref<4x25x8x256xf32, #tpu.memory_space<vmem>>, vector<1x1x8x256xf32>
    %382 = vector.shape_cast %381 : vector<1x1x8x256xf32> to vector<8x256xf32>
    %383 = arith.mulf %380, %382 : vector<8x256xf32>
    %384 = arith.addf %364, %383 : vector<8x256xf32>
    %c226_i32_316 = arith.constant 226 : i32
    %385 = tpu.dynamic_rotate %281 by %c226_i32_316 dim 1 : vector<8x256xf32>, i32 -> vector<8x256xf32>
    %c2_317 = arith.constant 2 : index
    %c20_318 = arith.constant 20 : index
    %c0_319 = arith.constant 0 : index
    %c0_320 = arith.constant 0 : index
    %386 = vector.load %arg2[%c2_317, %c20_318, %c0_319, %c0_320] : memref<4x25x8x256xf32, #tpu.memory_space<vmem>>, vector<1x1x8x256xf32>
    %387 = vector.shape_cast %386 : vector<1x1x8x256xf32> to vector<8x256xf32>
    %388 = arith.mulf %385, %387 : vector<8x256xf32>
    %389 = arith.addf %369, %388 : vector<8x256xf32>
    %c225_i32_321 = arith.constant 225 : i32
    %390 = tpu.dynamic_rotate %281 by %c225_i32_321 dim 1 : vector<8x256xf32>, i32 -> vector<8x256xf32>
    %c2_322 = arith.constant 2 : index
    %c21_323 = arith.constant 21 : index
    %c0_324 = arith.constant 0 : index
    %c0_325 = arith.constant 0 : index
    %391 = vector.load %arg2[%c2_322, %c21_323, %c0_324, %c0_325] : memref<4x25x8x256xf32, #tpu.memory_space<vmem>>, vector<1x1x8x256xf32>
    %392 = vector.shape_cast %391 : vector<1x1x8x256xf32> to vector<8x256xf32>
    %393 = arith.mulf %390, %392 : vector<8x256xf32>
    %394 = arith.addf %374, %393 : vector<8x256xf32>
    %c224_i32_326 = arith.constant 224 : i32
    %395 = tpu.dynamic_rotate %281 by %c224_i32_326 dim 1 : vector<8x256xf32>, i32 -> vector<8x256xf32>
    %c2_327 = arith.constant 2 : index
    %c22_328 = arith.constant 22 : index
    %c0_329 = arith.constant 0 : index
    %c0_330 = arith.constant 0 : index
    %396 = vector.load %arg2[%c2_327, %c22_328, %c0_329, %c0_330] : memref<4x25x8x256xf32, #tpu.memory_space<vmem>>, vector<1x1x8x256xf32>
    %397 = vector.shape_cast %396 : vector<1x1x8x256xf32> to vector<8x256xf32>
    %398 = arith.mulf %395, %397 : vector<8x256xf32>
    %399 = arith.addf %379, %398 : vector<8x256xf32>
    %c223_i32_331 = arith.constant 223 : i32
    %400 = tpu.dynamic_rotate %281 by %c223_i32_331 dim 1 : vector<8x256xf32>, i32 -> vector<8x256xf32>
    %c2_332 = arith.constant 2 : index
    %c23_333 = arith.constant 23 : index
    %c0_334 = arith.constant 0 : index
    %c0_335 = arith.constant 0 : index
    %401 = vector.load %arg2[%c2_332, %c23_333, %c0_334, %c0_335] : memref<4x25x8x256xf32, #tpu.memory_space<vmem>>, vector<1x1x8x256xf32>
    %402 = vector.shape_cast %401 : vector<1x1x8x256xf32> to vector<8x256xf32>
    %403 = arith.mulf %400, %402 : vector<8x256xf32>
    %404 = arith.addf %384, %403 : vector<8x256xf32>
    %c222_i32_336 = arith.constant 222 : i32
    %405 = tpu.dynamic_rotate %281 by %c222_i32_336 dim 1 : vector<8x256xf32>, i32 -> vector<8x256xf32>
    %c2_337 = arith.constant 2 : index
    %c24_338 = arith.constant 24 : index
    %c0_339 = arith.constant 0 : index
    %c0_340 = arith.constant 0 : index
    %406 = vector.load %arg2[%c2_337, %c24_338, %c0_339, %c0_340] : memref<4x25x8x256xf32, #tpu.memory_space<vmem>>, vector<1x1x8x256xf32>
    %407 = vector.shape_cast %406 : vector<1x1x8x256xf32> to vector<8x256xf32>
    %408 = arith.mulf %405, %407 : vector<8x256xf32>
    %409 = arith.addf %389, %408 : vector<8x256xf32>
    %410 = arith.addf %409, %394 : vector<8x256xf32>
    %411 = arith.addf %399, %404 : vector<8x256xf32>
    %412 = arith.addf %410, %411 : vector<8x256xf32>
    %413 = vector.broadcast %286 : vector<8x1xf32> to vector<8x256xf32>
    %414 = arith.addf %412, %413 : vector<8x256xf32>
    %cst_341 = arith.constant 0.000000e+00 : f32
    %cst_342 = arith.constant 6.000000e+00 : f32
    %415 = vector.broadcast %cst_341 : f32 to vector<8x256xf32>
    %416 = arith.maximumf %415, %414 : vector<8x256xf32>
    %417 = vector.broadcast %cst_342 : f32 to vector<8x256xf32>
    %418 = arith.minimumf %417, %416 : vector<8x256xf32>
    %cst_343 = arith.constant dense<0.000000e+00> : vector<8x256xf32>
    %419 = tpu.matmul %284, %418, %cst_343 {dimension_numbers = #tpu.dot_dimension_numbers<[1], [0], [0], [1], [0, 0, 1, 1], [], []>} : vector<8x8xf32>, vector<8x256xf32>, vector<8x256xf32> -> vector<8x256xf32>
    %420 = vector.broadcast %287 : vector<8x1xf32> to vector<8x256xf32>
    %421 = arith.addf %419, %420 : vector<8x256xf32>
    %cst_344 = arith.constant 0.000000e+00 : f32
    %cst_345 = arith.constant 6.000000e+00 : f32
    %422 = vector.broadcast %cst_344 : f32 to vector<8x256xf32>
    %423 = arith.maximumf %422, %421 : vector<8x256xf32>
    %424 = vector.broadcast %cst_345 : f32 to vector<8x256xf32>
    %425 = arith.minimumf %424, %423 : vector<8x256xf32>
    %cst_346 = arith.constant dense<0.000000e+00> : vector<8x256xf32>
    %426 = tpu.matmul %285, %425, %cst_346 {dimension_numbers = #tpu.dot_dimension_numbers<[1], [0], [0], [1], [0, 0, 1, 1], [], []>} : vector<8x8xf32>, vector<8x256xf32>, vector<8x256xf32> -> vector<8x256xf32>
    %427 = vector.broadcast %288 : vector<8x1xf32> to vector<8x256xf32>
    %428 = arith.addf %426, %427 : vector<8x256xf32>
    %cst_347 = arith.constant 0.000000e+00 : f32
    %cst_348 = arith.constant 6.000000e+00 : f32
    %429 = vector.broadcast %cst_347 : f32 to vector<8x256xf32>
    %430 = arith.maximumf %429, %428 : vector<8x256xf32>
    %431 = vector.broadcast %cst_348 : f32 to vector<8x256xf32>
    %432 = arith.minimumf %431, %430 : vector<8x256xf32>
    %c34_i32_349 = arith.constant 34 : i32
    %433 = tpu.dynamic_rotate %432 by %c34_i32_349 dim 1 : vector<8x256xf32>, i32 -> vector<8x256xf32>
    %c3_350 = arith.constant 3 : index
    %c0_351 = arith.constant 0 : index
    %c0_352 = arith.constant 0 : index
    %c0_353 = arith.constant 0 : index
    %434 = vector.load %arg2[%c3_350, %c0_351, %c0_352, %c0_353] : memref<4x25x8x256xf32, #tpu.memory_space<vmem>>, vector<1x1x8x256xf32>
    %435 = vector.shape_cast %434 : vector<1x1x8x256xf32> to vector<8x256xf32>
    %436 = arith.mulf %433, %435 : vector<8x256xf32>
    %c33_i32_354 = arith.constant 33 : i32
    %437 = tpu.dynamic_rotate %432 by %c33_i32_354 dim 1 : vector<8x256xf32>, i32 -> vector<8x256xf32>
    %c3_355 = arith.constant 3 : index
    %c1_356 = arith.constant 1 : index
    %c0_357 = arith.constant 0 : index
    %c0_358 = arith.constant 0 : index
    %438 = vector.load %arg2[%c3_355, %c1_356, %c0_357, %c0_358] : memref<4x25x8x256xf32, #tpu.memory_space<vmem>>, vector<1x1x8x256xf32>
    %439 = vector.shape_cast %438 : vector<1x1x8x256xf32> to vector<8x256xf32>
    %440 = arith.mulf %437, %439 : vector<8x256xf32>
    %c32_i32_359 = arith.constant 32 : i32
    %441 = tpu.dynamic_rotate %432 by %c32_i32_359 dim 1 : vector<8x256xf32>, i32 -> vector<8x256xf32>
    %c3_360 = arith.constant 3 : index
    %c2_361 = arith.constant 2 : index
    %c0_362 = arith.constant 0 : index
    %c0_363 = arith.constant 0 : index
    %442 = vector.load %arg2[%c3_360, %c2_361, %c0_362, %c0_363] : memref<4x25x8x256xf32, #tpu.memory_space<vmem>>, vector<1x1x8x256xf32>
    %443 = vector.shape_cast %442 : vector<1x1x8x256xf32> to vector<8x256xf32>
    %444 = arith.mulf %441, %443 : vector<8x256xf32>
    %c31_i32_364 = arith.constant 31 : i32
    %445 = tpu.dynamic_rotate %432 by %c31_i32_364 dim 1 : vector<8x256xf32>, i32 -> vector<8x256xf32>
    %c3_365 = arith.constant 3 : index
    %c3_366 = arith.constant 3 : index
    %c0_367 = arith.constant 0 : index
    %c0_368 = arith.constant 0 : index
    %446 = vector.load %arg2[%c3_365, %c3_366, %c0_367, %c0_368] : memref<4x25x8x256xf32, #tpu.memory_space<vmem>>, vector<1x1x8x256xf32>
    %447 = vector.shape_cast %446 : vector<1x1x8x256xf32> to vector<8x256xf32>
    %448 = arith.mulf %445, %447 : vector<8x256xf32>
    %c30_i32_369 = arith.constant 30 : i32
    %449 = tpu.dynamic_rotate %432 by %c30_i32_369 dim 1 : vector<8x256xf32>, i32 -> vector<8x256xf32>
    %c3_370 = arith.constant 3 : index
    %c4_371 = arith.constant 4 : index
    %c0_372 = arith.constant 0 : index
    %c0_373 = arith.constant 0 : index
    %450 = vector.load %arg2[%c3_370, %c4_371, %c0_372, %c0_373] : memref<4x25x8x256xf32, #tpu.memory_space<vmem>>, vector<1x1x8x256xf32>
    %451 = vector.shape_cast %450 : vector<1x1x8x256xf32> to vector<8x256xf32>
    %452 = arith.mulf %449, %451 : vector<8x256xf32>
    %453 = arith.addf %436, %452 : vector<8x256xf32>
    %c18_i32_374 = arith.constant 18 : i32
    %454 = tpu.dynamic_rotate %432 by %c18_i32_374 dim 1 : vector<8x256xf32>, i32 -> vector<8x256xf32>
    %c3_375 = arith.constant 3 : index
    %c5_376 = arith.constant 5 : index
    %c0_377 = arith.constant 0 : index
    %c0_378 = arith.constant 0 : index
    %455 = vector.load %arg2[%c3_375, %c5_376, %c0_377, %c0_378] : memref<4x25x8x256xf32, #tpu.memory_space<vmem>>, vector<1x1x8x256xf32>
    %456 = vector.shape_cast %455 : vector<1x1x8x256xf32> to vector<8x256xf32>
    %457 = arith.mulf %454, %456 : vector<8x256xf32>
    %458 = arith.addf %440, %457 : vector<8x256xf32>
    %c17_i32_379 = arith.constant 17 : i32
    %459 = tpu.dynamic_rotate %432 by %c17_i32_379 dim 1 : vector<8x256xf32>, i32 -> vector<8x256xf32>
    %c3_380 = arith.constant 3 : index
    %c6_381 = arith.constant 6 : index
    %c0_382 = arith.constant 0 : index
    %c0_383 = arith.constant 0 : index
    %460 = vector.load %arg2[%c3_380, %c6_381, %c0_382, %c0_383] : memref<4x25x8x256xf32, #tpu.memory_space<vmem>>, vector<1x1x8x256xf32>
    %461 = vector.shape_cast %460 : vector<1x1x8x256xf32> to vector<8x256xf32>
    %462 = arith.mulf %459, %461 : vector<8x256xf32>
    %463 = arith.addf %444, %462 : vector<8x256xf32>
    %c16_i32_384 = arith.constant 16 : i32
    %464 = tpu.dynamic_rotate %432 by %c16_i32_384 dim 1 : vector<8x256xf32>, i32 -> vector<8x256xf32>
    %c3_385 = arith.constant 3 : index
    %c7_386 = arith.constant 7 : index
    %c0_387 = arith.constant 0 : index
    %c0_388 = arith.constant 0 : index
    %465 = vector.load %arg2[%c3_385, %c7_386, %c0_387, %c0_388] : memref<4x25x8x256xf32, #tpu.memory_space<vmem>>, vector<1x1x8x256xf32>
    %466 = vector.shape_cast %465 : vector<1x1x8x256xf32> to vector<8x256xf32>
    %467 = arith.mulf %464, %466 : vector<8x256xf32>
    %468 = arith.addf %448, %467 : vector<8x256xf32>
    %c15_i32_389 = arith.constant 15 : i32
    %469 = tpu.dynamic_rotate %432 by %c15_i32_389 dim 1 : vector<8x256xf32>, i32 -> vector<8x256xf32>
    %c3_390 = arith.constant 3 : index
    %c8_391 = arith.constant 8 : index
    %c0_392 = arith.constant 0 : index
    %c0_393 = arith.constant 0 : index
    %470 = vector.load %arg2[%c3_390, %c8_391, %c0_392, %c0_393] : memref<4x25x8x256xf32, #tpu.memory_space<vmem>>, vector<1x1x8x256xf32>
    %471 = vector.shape_cast %470 : vector<1x1x8x256xf32> to vector<8x256xf32>
    %472 = arith.mulf %469, %471 : vector<8x256xf32>
    %473 = arith.addf %453, %472 : vector<8x256xf32>
    %c14_i32_394 = arith.constant 14 : i32
    %474 = tpu.dynamic_rotate %432 by %c14_i32_394 dim 1 : vector<8x256xf32>, i32 -> vector<8x256xf32>
    %c3_395 = arith.constant 3 : index
    %c9_396 = arith.constant 9 : index
    %c0_397 = arith.constant 0 : index
    %c0_398 = arith.constant 0 : index
    %475 = vector.load %arg2[%c3_395, %c9_396, %c0_397, %c0_398] : memref<4x25x8x256xf32, #tpu.memory_space<vmem>>, vector<1x1x8x256xf32>
    %476 = vector.shape_cast %475 : vector<1x1x8x256xf32> to vector<8x256xf32>
    %477 = arith.mulf %474, %476 : vector<8x256xf32>
    %478 = arith.addf %458, %477 : vector<8x256xf32>
    %c2_i32_399 = arith.constant 2 : i32
    %479 = tpu.dynamic_rotate %432 by %c2_i32_399 dim 1 : vector<8x256xf32>, i32 -> vector<8x256xf32>
    %c3_400 = arith.constant 3 : index
    %c10_401 = arith.constant 10 : index
    %c0_402 = arith.constant 0 : index
    %c0_403 = arith.constant 0 : index
    %480 = vector.load %arg2[%c3_400, %c10_401, %c0_402, %c0_403] : memref<4x25x8x256xf32, #tpu.memory_space<vmem>>, vector<1x1x8x256xf32>
    %481 = vector.shape_cast %480 : vector<1x1x8x256xf32> to vector<8x256xf32>
    %482 = arith.mulf %479, %481 : vector<8x256xf32>
    %483 = arith.addf %463, %482 : vector<8x256xf32>
    %c1_i32_404 = arith.constant 1 : i32
    %484 = tpu.dynamic_rotate %432 by %c1_i32_404 dim 1 : vector<8x256xf32>, i32 -> vector<8x256xf32>
    %c3_405 = arith.constant 3 : index
    %c11_406 = arith.constant 11 : index
    %c0_407 = arith.constant 0 : index
    %c0_408 = arith.constant 0 : index
    %485 = vector.load %arg2[%c3_405, %c11_406, %c0_407, %c0_408] : memref<4x25x8x256xf32, #tpu.memory_space<vmem>>, vector<1x1x8x256xf32>
    %486 = vector.shape_cast %485 : vector<1x1x8x256xf32> to vector<8x256xf32>
    %487 = arith.mulf %484, %486 : vector<8x256xf32>
    %488 = arith.addf %468, %487 : vector<8x256xf32>
    %c3_409 = arith.constant 3 : index
    %c12_410 = arith.constant 12 : index
    %c0_411 = arith.constant 0 : index
    %c0_412 = arith.constant 0 : index
    %489 = vector.load %arg2[%c3_409, %c12_410, %c0_411, %c0_412] : memref<4x25x8x256xf32, #tpu.memory_space<vmem>>, vector<1x1x8x256xf32>
    %490 = vector.shape_cast %489 : vector<1x1x8x256xf32> to vector<8x256xf32>
    %491 = arith.mulf %432, %490 : vector<8x256xf32>
    %492 = arith.addf %473, %491 : vector<8x256xf32>
    %c255_i32_413 = arith.constant 255 : i32
    %493 = tpu.dynamic_rotate %432 by %c255_i32_413 dim 1 : vector<8x256xf32>, i32 -> vector<8x256xf32>
    %c3_414 = arith.constant 3 : index
    %c13_415 = arith.constant 13 : index
    %c0_416 = arith.constant 0 : index
    %c0_417 = arith.constant 0 : index
    %494 = vector.load %arg2[%c3_414, %c13_415, %c0_416, %c0_417] : memref<4x25x8x256xf32, #tpu.memory_space<vmem>>, vector<1x1x8x256xf32>
    %495 = vector.shape_cast %494 : vector<1x1x8x256xf32> to vector<8x256xf32>
    %496 = arith.mulf %493, %495 : vector<8x256xf32>
    %497 = arith.addf %478, %496 : vector<8x256xf32>
    %c254_i32_418 = arith.constant 254 : i32
    %498 = tpu.dynamic_rotate %432 by %c254_i32_418 dim 1 : vector<8x256xf32>, i32 -> vector<8x256xf32>
    %c3_419 = arith.constant 3 : index
    %c14_420 = arith.constant 14 : index
    %c0_421 = arith.constant 0 : index
    %c0_422 = arith.constant 0 : index
    %499 = vector.load %arg2[%c3_419, %c14_420, %c0_421, %c0_422] : memref<4x25x8x256xf32, #tpu.memory_space<vmem>>, vector<1x1x8x256xf32>
    %500 = vector.shape_cast %499 : vector<1x1x8x256xf32> to vector<8x256xf32>
    %501 = arith.mulf %498, %500 : vector<8x256xf32>
    %502 = arith.addf %483, %501 : vector<8x256xf32>
    %c242_i32_423 = arith.constant 242 : i32
    %503 = tpu.dynamic_rotate %432 by %c242_i32_423 dim 1 : vector<8x256xf32>, i32 -> vector<8x256xf32>
    %c3_424 = arith.constant 3 : index
    %c15_425 = arith.constant 15 : index
    %c0_426 = arith.constant 0 : index
    %c0_427 = arith.constant 0 : index
    %504 = vector.load %arg2[%c3_424, %c15_425, %c0_426, %c0_427] : memref<4x25x8x256xf32, #tpu.memory_space<vmem>>, vector<1x1x8x256xf32>
    %505 = vector.shape_cast %504 : vector<1x1x8x256xf32> to vector<8x256xf32>
    %506 = arith.mulf %503, %505 : vector<8x256xf32>
    %507 = arith.addf %488, %506 : vector<8x256xf32>
    %c241_i32_428 = arith.constant 241 : i32
    %508 = tpu.dynamic_rotate %432 by %c241_i32_428 dim 1 : vector<8x256xf32>, i32 -> vector<8x256xf32>
    %c3_429 = arith.constant 3 : index
    %c16_430 = arith.constant 16 : index
    %c0_431 = arith.constant 0 : index
    %c0_432 = arith.constant 0 : index
    %509 = vector.load %arg2[%c3_429, %c16_430, %c0_431, %c0_432] : memref<4x25x8x256xf32, #tpu.memory_space<vmem>>, vector<1x1x8x256xf32>
    %510 = vector.shape_cast %509 : vector<1x1x8x256xf32> to vector<8x256xf32>
    %511 = arith.mulf %508, %510 : vector<8x256xf32>
    %512 = arith.addf %492, %511 : vector<8x256xf32>
    %c240_i32_433 = arith.constant 240 : i32
    %513 = tpu.dynamic_rotate %432 by %c240_i32_433 dim 1 : vector<8x256xf32>, i32 -> vector<8x256xf32>
    %c3_434 = arith.constant 3 : index
    %c17_435 = arith.constant 17 : index
    %c0_436 = arith.constant 0 : index
    %c0_437 = arith.constant 0 : index
    %514 = vector.load %arg2[%c3_434, %c17_435, %c0_436, %c0_437] : memref<4x25x8x256xf32, #tpu.memory_space<vmem>>, vector<1x1x8x256xf32>
    %515 = vector.shape_cast %514 : vector<1x1x8x256xf32> to vector<8x256xf32>
    %516 = arith.mulf %513, %515 : vector<8x256xf32>
    %517 = arith.addf %497, %516 : vector<8x256xf32>
    %c239_i32_438 = arith.constant 239 : i32
    %518 = tpu.dynamic_rotate %432 by %c239_i32_438 dim 1 : vector<8x256xf32>, i32 -> vector<8x256xf32>
    %c3_439 = arith.constant 3 : index
    %c18_440 = arith.constant 18 : index
    %c0_441 = arith.constant 0 : index
    %c0_442 = arith.constant 0 : index
    %519 = vector.load %arg2[%c3_439, %c18_440, %c0_441, %c0_442] : memref<4x25x8x256xf32, #tpu.memory_space<vmem>>, vector<1x1x8x256xf32>
    %520 = vector.shape_cast %519 : vector<1x1x8x256xf32> to vector<8x256xf32>
    %521 = arith.mulf %518, %520 : vector<8x256xf32>
    %522 = arith.addf %502, %521 : vector<8x256xf32>
    %c238_i32_443 = arith.constant 238 : i32
    %523 = tpu.dynamic_rotate %432 by %c238_i32_443 dim 1 : vector<8x256xf32>, i32 -> vector<8x256xf32>
    %c3_444 = arith.constant 3 : index
    %c19_445 = arith.constant 19 : index
    %c0_446 = arith.constant 0 : index
    %c0_447 = arith.constant 0 : index
    %524 = vector.load %arg2[%c3_444, %c19_445, %c0_446, %c0_447] : memref<4x25x8x256xf32, #tpu.memory_space<vmem>>, vector<1x1x8x256xf32>
    %525 = vector.shape_cast %524 : vector<1x1x8x256xf32> to vector<8x256xf32>
    %526 = arith.mulf %523, %525 : vector<8x256xf32>
    %527 = arith.addf %507, %526 : vector<8x256xf32>
    %c226_i32_448 = arith.constant 226 : i32
    %528 = tpu.dynamic_rotate %432 by %c226_i32_448 dim 1 : vector<8x256xf32>, i32 -> vector<8x256xf32>
    %c3_449 = arith.constant 3 : index
    %c20_450 = arith.constant 20 : index
    %c0_451 = arith.constant 0 : index
    %c0_452 = arith.constant 0 : index
    %529 = vector.load %arg2[%c3_449, %c20_450, %c0_451, %c0_452] : memref<4x25x8x256xf32, #tpu.memory_space<vmem>>, vector<1x1x8x256xf32>
    %530 = vector.shape_cast %529 : vector<1x1x8x256xf32> to vector<8x256xf32>
    %531 = arith.mulf %528, %530 : vector<8x256xf32>
    %532 = arith.addf %512, %531 : vector<8x256xf32>
    %c225_i32_453 = arith.constant 225 : i32
    %533 = tpu.dynamic_rotate %432 by %c225_i32_453 dim 1 : vector<8x256xf32>, i32 -> vector<8x256xf32>
    %c3_454 = arith.constant 3 : index
    %c21_455 = arith.constant 21 : index
    %c0_456 = arith.constant 0 : index
    %c0_457 = arith.constant 0 : index
    %534 = vector.load %arg2[%c3_454, %c21_455, %c0_456, %c0_457] : memref<4x25x8x256xf32, #tpu.memory_space<vmem>>, vector<1x1x8x256xf32>
    %535 = vector.shape_cast %534 : vector<1x1x8x256xf32> to vector<8x256xf32>
    %536 = arith.mulf %533, %535 : vector<8x256xf32>
    %537 = arith.addf %517, %536 : vector<8x256xf32>
    %c224_i32_458 = arith.constant 224 : i32
    %538 = tpu.dynamic_rotate %432 by %c224_i32_458 dim 1 : vector<8x256xf32>, i32 -> vector<8x256xf32>
    %c3_459 = arith.constant 3 : index
    %c22_460 = arith.constant 22 : index
    %c0_461 = arith.constant 0 : index
    %c0_462 = arith.constant 0 : index
    %539 = vector.load %arg2[%c3_459, %c22_460, %c0_461, %c0_462] : memref<4x25x8x256xf32, #tpu.memory_space<vmem>>, vector<1x1x8x256xf32>
    %540 = vector.shape_cast %539 : vector<1x1x8x256xf32> to vector<8x256xf32>
    %541 = arith.mulf %538, %540 : vector<8x256xf32>
    %542 = arith.addf %522, %541 : vector<8x256xf32>
    %c223_i32_463 = arith.constant 223 : i32
    %543 = tpu.dynamic_rotate %432 by %c223_i32_463 dim 1 : vector<8x256xf32>, i32 -> vector<8x256xf32>
    %c3_464 = arith.constant 3 : index
    %c23_465 = arith.constant 23 : index
    %c0_466 = arith.constant 0 : index
    %c0_467 = arith.constant 0 : index
    %544 = vector.load %arg2[%c3_464, %c23_465, %c0_466, %c0_467] : memref<4x25x8x256xf32, #tpu.memory_space<vmem>>, vector<1x1x8x256xf32>
    %545 = vector.shape_cast %544 : vector<1x1x8x256xf32> to vector<8x256xf32>
    %546 = arith.mulf %543, %545 : vector<8x256xf32>
    %547 = arith.addf %527, %546 : vector<8x256xf32>
    %c222_i32_468 = arith.constant 222 : i32
    %548 = tpu.dynamic_rotate %432 by %c222_i32_468 dim 1 : vector<8x256xf32>, i32 -> vector<8x256xf32>
    %c3_469 = arith.constant 3 : index
    %c24_470 = arith.constant 24 : index
    %c0_471 = arith.constant 0 : index
    %c0_472 = arith.constant 0 : index
    %549 = vector.load %arg2[%c3_469, %c24_470, %c0_471, %c0_472] : memref<4x25x8x256xf32, #tpu.memory_space<vmem>>, vector<1x1x8x256xf32>
    %550 = vector.shape_cast %549 : vector<1x1x8x256xf32> to vector<8x256xf32>
    %551 = arith.mulf %548, %550 : vector<8x256xf32>
    %552 = arith.addf %532, %551 : vector<8x256xf32>
    %553 = arith.addf %552, %537 : vector<8x256xf32>
    %554 = arith.addf %542, %547 : vector<8x256xf32>
    %555 = arith.addf %553, %554 : vector<8x256xf32>
    %556 = vector.broadcast %289 : vector<8x1xf32> to vector<8x256xf32>
    %557 = arith.addf %555, %556 : vector<8x256xf32>
    %c0_473 = arith.constant 0 : index
    %c0_474 = arith.constant 0 : index
    %c0_475 = arith.constant 0 : index
    %558 = vector.load %arg4[%c0_473, %c0_474, %c0_475] : memref<1x8x256xf32, #tpu.memory_space<vmem>>, vector<1x8x256xf32>
    %559 = vector.shape_cast %558 : vector<1x8x256xf32> to vector<8x256xf32>
    %560 = vector.shape_cast %557 : vector<8x256xf32> to vector<1x8x256xf32>
    tpu.vector_store %arg4[%c0_473, %c0_474, %c0_475], %560 {strides = array<i32>} : memref<1x8x256xf32, #tpu.memory_space<vmem>>, vector<1x8x256xf32>,
    return
  }
  func.func @transform_0(%arg0: i32) -> (i32, i32, i32) {
    %c0_i32 = arith.constant 0 : i32
    %c0_i32_0 = arith.constant 0 : i32
    %c0_i32_1 = arith.constant 0 : i32
    return %arg0, %c0_i32, %c0_i32_0 : i32, i32, i32
  }
  func.func @transform_1(%arg0: i32) -> (i32, i32, i32, i32) {
    %c0_i32 = arith.constant 0 : i32
    %c0_i32_0 = arith.constant 0 : i32
    %c0_i32_1 = arith.constant 0 : i32
    %c0_i32_2 = arith.constant 0 : i32
    %c0_i32_3 = arith.constant 0 : i32
    return %c0_i32, %c0_i32_0, %c0_i32_1, %c0_i32_2 : i32, i32, i32, i32
  }
  func.func @transform_2(%arg0: i32) -> (i32, i32, i32) {
    %c0_i32 = arith.constant 0 : i32
    %c0_i32_0 = arith.constant 0 : i32
    %c0_i32_1 = arith.constant 0 : i32
    %c0_i32_2 = arith.constant 0 : i32
    return %c0_i32, %c0_i32_0, %c0_i32_1 : i32, i32, i32
  }
  func.func @transform_3(%arg0: i32) -> (i32, i32, i32) {
    %c0_i32 = arith.constant 0 : i32
    %c0_i32_0 = arith.constant 0 : i32
    %c0_i32_1 = arith.constant 0 : i32
    return %arg0, %c0_i32, %c0_i32_0 : i32, i32, i32
  }
}

</mosaic_0001>

<llo_original>
// kernel: shortcut_forward.1
$region0: #{shortcut_forward.1}
  #allocation0 [shape = 'u32[]', space=smem, size = 0x4, offset = 0x4, fixed_abs, tag = 'smem constant byte address 0x4 - core index']
  #allocation1 [shape = 'u32[72,128]{1,0:T(1,128)}', space=vmem, size = 0x9000, scoped, tag = 'internal scratch']
  %s0 = inlined_call_operand.vmem [shape: f32[2,8,256], index: 0, kind: input, shape index: {}]
  %s1 = inlined_call_operand.vmem [shape: f32[4,25,8,256], index: 1, kind: input, shape index: {}]
  %s2 = inlined_call_operand.vmem [shape: f32[2,8,128], index: 2, kind: input, shape index: {}]
  %s3 = inlined_call_operand.vmem [shape: f32[2,8,256], index: 3, kind: output, shape index: {}]
  %s4 = sld [smem:[#allocation0]]
  $region45: #{shortcut_forward.1} parent=0
    _
  %s6 = ssub.s32 1, %s4
  %s7 = scalar_select 0, %s6, %s4
  loop: start=0, step=1, limit=4
  $region2: #{shortcut_forward.1} parent=0 // loop_pre_header
    _
  $region3: #{shortcut_forward.1} parent=0 // loop_header
    %s9 = sphi 0, %s13
    %p10 = scmp.ge.s32.totalorder %s9, 4
    %s19 = sphi 0, %s21
    %s22 = sphi 0, %s19
    %s23 = sphi 0, %s22
    %s39 = sphi 0, %s23
    %s43 = sphi 0, %s43
    %s45 = sphi 0, %s43
    %s46 = sphi 0, %s45
    %s60 = sphi 0, %s46
    %s64 = sphi 0, %s64
    %s66 = sphi 0, %s64
    %s67 = sphi 0, %s66
    %s81 = sphi 0, %s67
    %s87 = sphi 0, %s89
    %s90 = sphi 0, %s87
    %s91 = sphi 0, %s90
    %s107 = sphi 0, %s91
  $region4: #{shortcut_forward.1} parent=0 // loop_header_branch
    %12 = sbr.rel (%p10) target = $region8
  $region5: #{shortcut_forward.1} parent=0 // loop_body
    %s14 = ssub.s32 %s9, 1
    %s15 = ssub.s32 %s9, 2
    %s16 = sadd.s32 %s9, 1
    %s17 = ssub.s32 %s9, %s16
    %p18 = scmp.eq.s32.totalorder %s17, 0
    %s20 = sadd.s32 %s19, 1
    %s21 = scalar_select %p18, %s19, %s20
    %p24 = pneg %p18
    %p25 = scmp.eq.s32.totalorder %s9, 1
    %p26 = por %p24, %p25
    %p27 = scmp.ne.s32.totalorder %s19, %s22
    %p28 = scmp.eq.s32.totalorder %s9, 0
    %p29 = por %p27, %p28
    %p30 = scmp.ne.s32.totalorder %s19, %s22
    %p31 = scmp.eq.s32.totalorder %s14, 1
    %p32 = por %p30, %p31
    %p33 = scmp.ne.s32.totalorder %s22, %s23
    %p34 = scmp.eq.s32.totalorder %s14, 0
    %p35 = por %p33, %p34
    %p36 = scmp.ne.s32.totalorder %s22, %s23
    %p37 = scmp.eq.s32.totalorder %s15, 1
    %p38 = por %p36, %p37
    %p40 = scmp.ne.s32.totalorder %s23, %s39
    %p41 = scmp.eq.s32.totalorder %s15, 0
    %p42 = por %p40, %p41
    %s44 = sadd.s32 %s43, 1
    %p47 = scmp.eq.s32.totalorder %s9, 1
    %p48 = scmp.ne.s32.totalorder %s43, %s45
    %p49 = scmp.eq.s32.totalorder %s9, 0
    %p50 = por %p48, %p49
    %p51 = scmp.ne.s32.totalorder %s43, %s45
    %p52 = scmp.eq.s32.totalorder %s14, 1
    %p53 = por %p51, %p52
    %p54 = scmp.ne.s32.totalorder %s45, %s46
    %p55 = scmp.eq.s32.totalorder %s14, 0
    %p56 = por %p54, %p55
    %p57 = scmp.ne.s32.totalorder %s45, %s46
    %p58 = scmp.eq.s32.totalorder %s15, 1
    %p59 = por %p57, %p58
    %p61 = scmp.ne.s32.totalorder %s46, %s60
    %p62 = scmp.eq.s32.totalorder %s15, 0
    %p63 = por %p61, %p62
    %s65 = sadd.s32 %s64, 1
    %p68 = scmp.eq.s32.totalorder %s9, 1
    %p69 = scmp.ne.s32.totalorder %s64, %s66
    %p70 = scmp.eq.s32.totalorder %s9, 0
    %p71 = por %p69, %p70
    %p72 = scmp.ne.s32.totalorder %s64, %s66
    %p73 = scmp.eq.s32.totalorder %s14, 1
    %p74 = por %p72, %p73
    %p75 = scmp.ne.s32.totalorder %s66, %s67
    %p76 = scmp.eq.s32.totalorder %s14, 0
    %p77 = por %p75, %p76
    %p78 = scmp.ne.s32.totalorder %s66, %s67
    %p79 = scmp.eq.s32.totalorder %s15, 1
    %p80 = por %p78, %p79
    %p82 = scmp.ne.s32.totalorder %s67, %s81
    %p83 = scmp.eq.s32.totalorder %s15, 0
    %p84 = por %p82, %p83
    %s85 = ssub.s32 %s9, %s16
    %p86 = scmp.eq.s32.totalorder %s85, 0
    %s88 = sadd.s32 %s87, 1
    %s89 = scalar_select %p86, %s87, %s88
    %p92 = pneg %p86
    %p93 = scmp.eq.s32.totalorder %s9, 1
    %p94 = por %p92, %p93
    %p95 = scmp.ne.s32.totalorder %s87, %s90
    %p96 = scmp.eq.s32.totalorder %s9, 0
    %p97 = por %p95, %p96
    %p98 = scmp.ne.s32.totalorder %s87, %s90
    %p99 = scmp.eq.s32.totalorder %s14, 1
    %p100 = por %p98, %p99
    %p101 = scmp.ne.s32.totalorder %s90, %s91
    %p102 = scmp.eq.s32.totalorder %s14, 0
    %p103 = por %p101, %p102
    %p104 = scmp.ne.s32.totalorder %s90, %s91
    %p105 = scmp.eq.s32.totalorder %s15, 1
    %p106 = por %p104, %p105
    %p108 = scmp.ne.s32.totalorder %s91, %s107
    %p109 = scmp.eq.s32.totalorder %s15, 0
    %p110 = por %p108, %p109
    %p111 = scmp.le.s32.totalorder 1, %s9
    %p112 = scmp.lt.s32.totalorder %s9, 3
    %p113 = pnand %p111, %p112
    %p114 = pneg %p113
    // Predicated region
    $region9: #{shortcut_forward.1} parent=5 // pred_check
      _
    $region10: #{shortcut_forward.1} parent=5 // pred_check_branch
      %116 = sbr.rel (%p113) target = $region12
    $region11: #{shortcut_forward.1} parent=5 // pred_region
      %s117 = ssub.s32 %s9, 1
      // Predicated region
      $region13: #{shortcut_forward.1} parent=11 // pred_check
        %p118 = pneg %p56
      $region14: #{shortcut_forward.1} parent=11 // pred_check_branch
        %120 = sbr.rel (%p118) target = $region16
      $region15: #{shortcut_forward.1} parent=11 // pred_region
        _
      $region16: #{shortcut_forward.1} parent=11 // pred_fallthru
        _
      // Predicated region
      $region17: #{shortcut_forward.1} parent=11 // pred_check
        %p121 = pneg %p77
      $region18: #{shortcut_forward.1} parent=11 // pred_check_branch
        %123 = sbr.rel (%p121) target = $region20
      $region19: #{shortcut_forward.1} parent=11 // pred_region
        _
      $region20: #{shortcut_forward.1} parent=11 // pred_fallthru
        _
    $region12: #{shortcut_forward.1} parent=5 // pred_fallthru
      _
    %p124 = scmp.lt.s32.totalorder %s9, 2
    // Predicated region
    $region21: #{shortcut_forward.1} parent=5 // pred_check
      %p125 = pneg %p124
    $region22: #{shortcut_forward.1} parent=5 // pred_check_branch
      %127 = sbr.rel (%p125) target = $region24
    $region23: #{shortcut_forward.1} parent=5 // pred_region
      // Predicated region
      $region25: #{shortcut_forward.1} parent=23 // pred_check
        %p128 = pneg %p29
      $region26: #{shortcut_forward.1} parent=23 // pred_check_branch
        %130 = sbr.rel (%p128) target = $region28
      $region27: #{shortcut_forward.1} parent=23 // pred_region
        %p131 = scmp.lt.s32.totalorder %s9, 1
        %s132 = scalar_select %p131, %s9, 1
        %s133 = smul.addr %s132, 2
        %s134 = smul.addr %s133, 8
        %s135 = scalar_lea.vmem %s0, %s134
      $region28: #{shortcut_forward.1} parent=23 // pred_fallthru
        _
    $region24: #{shortcut_forward.1} parent=5 // pred_fallthru
      _
    %p136 = scmp.le.s32.totalorder 1, %s9
    %p137 = scmp.lt.s32.totalorder %s9, 3
    %p138 = pnand %p136, %p137
    %p139 = pneg %p138
    // Predicated region
    $region29: #{shortcut_forward.1} parent=5 // pred_check
      _
    $region30: #{shortcut_forward.1} parent=5 // pred_check_branch
      %141 = sbr.rel (%p138) target = $region32
    $region31: #{shortcut_forward.1} parent=5 // pred_region
      %s142 = ssub.s32 %s9, 1
      %p143 = scmp.lt.s32.totalorder %s14, 1
      %s144 = scalar_select %p143, %s14, 1
      %s145 = smul.addr %s144, 2
      %s146 = smul.addr %s145, 8
      %s147 = scalar_lea.vmem %s0, %s146
      %p148 = pneg %p35
      %p149 = pneg %p32
      %p150 = pneg %p56
      %p151 = pneg %p53
      %p152 = pneg %p77
      %p153 = pneg %p74
      %p154 = pneg %p103
      %p155 = pneg %p100
      %p156 = scmp.lt.s32.totalorder %s14, 1
      %s157 = scalar_select %p156, %s14, 1
      %s158 = smul.addr %s157, 2
      %s159 = smul.addr %s158, 8
      %s160 = scalar_lea.vmem %s3, %s159
      %p161 = scmp.lt.s32.totalorder %s14, 1
      %s162 = scalar_select %p161, %s14, 1
      %s163 = smul.addr %s162, 2
      %s164 = smul.addr %s163, 8
      %s165 = scalar_lea.vmem %s0, %s164
      %p166 = scmp.lt.s32.totalorder %s14, 1
      %s167 = scalar_select %p166, %s14, 1
      %s168 = smul.addr %s167, 2
      %s169 = smul.addr %s168, 8
      %s170 = scalar_lea.vmem %s3, %s169
      %v171 = vld [vmem:[%s165] sm:$0xff]
      %v172 = vld [vmem:[%s165 + $0x8] sm:$0xff]
      %v173 = vld [vmem:[%s2] sm:$0xff]
      %174 = vrot.lane.b32.xlu0 %v171, 34
      %v175 = vpop.permute.xlu0 %174
      %176 = vrot.lane.b32.xlu0 %v172, 34
      %v177 = vpop.permute.xlu0 %176
      %v178 = vlaneseq
      %v179 = vand.u32 %v178, 127
      %vm180 = vcmp.lt.s32.totalorder %v179, 34
      %v181 = vsel %vm180, %v175, %v177
      %v182 = vsel %vm180, %v177, %v175
      %v183 = vld [vmem:[%s1] sm:$0xff]
      %v184 = vld [vmem:[%s1 + $0x8] sm:$0xff]
      %v185 = vmul.f32 %v182, %v183
      %v186 = vmul.f32 %v181, %v184
      %187 = vrot.lane.b32.xlu0 %v171, 33
      %v188 = vpop.permute.xlu0 %187
      %189 = vrot.lane.b32.xlu0 %v172, 33
      %v190 = vpop.permute.xlu0 %189
      %vm191 = vcmp.lt.s32.totalorder %v179, 33
      %v192 = vsel %vm191, %v188, %v190
      %v193 = vsel %vm191, %v190, %v188
      %s194 = scalar_lea.vmem %s1, 16
      %v195 = vld [vmem:[%s194] sm:$0xff]
      %v196 = vld [vmem:[%s194 + $0x8] sm:$0xff]
      %v197 = vmul.f32 %v193, %v195
      %v198 = vmul.f32 %v192, %v196
      %199 = vrot.lane.b32.xlu0 %v171, 32
      %v200 = vpop.permute.xlu0 %199
      %201 = vrot.lane.b32.xlu0 %v172, 32
      %v202 = vpop.permute.xlu0 %201
      %vm203 = vcmp.lt.s32.totalorder %v179, 32
      %v204 = vsel %vm203, %v200, %v202
      %v205 = vsel %vm203, %v202, %v200
      %s206 = scalar_lea.vmem %s1, 32
      %v207 = vld [vmem:[%s206] sm:$0xff]
      %v208 = vld [vmem:[%s206 + $0x8] sm:$0xff]
      %v209 = vmul.f32 %v205, %v207
      %v210 = vmul.f32 %v204, %v208
      %211 = vrot.lane.b32.xlu0 %v171, 31
      %v212 = vpop.permute.xlu0 %211
      %213 = vrot.lane.b32.xlu0 %v172, 31
      %v214 = vpop.permute.xlu0 %213
      %vm215 = vcmp.lt.s32.totalorder %v179, 31
      %v216 = vsel %vm215, %v212, %v214
      %v217 = vsel %vm215, %v214, %v212
      %s218 = scalar_lea.vmem %s1, 48
      %v219 = vld [vmem:[%s218] sm:$0xff]
      %v220 = vld [vmem:[%s218 + $0x8] sm:$0xff]
      %v221 = vmul.f32 %v217, %v219
      %v222 = vmul.f32 %v216, %v220
      %223 = vrot.lane.b32.xlu0 %v171, 30
      %v224 = vpop.permute.xlu0 %223
      %225 = vrot.lane.b32.xlu0 %v172, 30
      %v226 = vpop.permute.xlu0 %225
      %vm227 = vcmp.lt.s32.totalorder %v179, 30
      %v228 = vsel %vm227, %v224, %v226
      %v229 = vsel %vm227, %v226, %v224
      %s230 = scalar_lea.vmem %s1, 64
      %v231 = vld [vmem:[%s230] sm:$0xff]
      %v232 = vld [vmem:[%s230 + $0x8] sm:$0xff]
      %v233 = vmul.f32 %v229, %v231
      %v234 = vmul.f32 %v228, %v232
      %v235 = vadd.f32 %v185, %v233
      %v236 = vadd.f32 %v186, %v234
      %237 = vrot.lane.b32.xlu0 %v171, 18
      %v238 = vpop.permute.xlu0 %237
      %239 = vrot.lane.b32.xlu0 %v172, 18
      %v240 = vpop.permute.xlu0 %239
      %vm241 = vcmp.lt.s32.totalorder %v179, 18
      %v242 = vsel %vm241, %v238, %v240
      %v243 = vsel %vm241, %v240, %v238
      %s244 = scalar_lea.vmem %s1, 80
      %v245 = vld [vmem:[%s244] sm:$0xff]
      %v246 = vld [vmem:[%s244 + $0x8] sm:$0xff]
      %v247 = vmul.f32 %v243, %v245
      %v248 = vmul.f32 %v242, %v246
      %v249 = vadd.f32 %v197, %v247
      %v250 = vadd.f32 %v198, %v248
      %251 = vrot.lane.b32.xlu0 %v171, 17
      %v252 = vpop.permute.xlu0 %251
      %253 = vrot.lane.b32.xlu0 %v172, 17
      %v254 = vpop.permute.xlu0 %253
      %vm255 = vcmp.lt.s32.totalorder %v179, 17
      %v256 = vsel %vm255, %v252, %v254
      %v257 = vsel %vm255, %v254, %v252
      %s258 = scalar_lea.vmem %s1, 96
      %v259 = vld [vmem:[%s258] sm:$0xff]
      %v260 = vld [vmem:[%s258 + $0x8] sm:$0xff]
      %v261 = vmul.f32 %v257, %v259
      %v262 = vmul.f32 %v256, %v260
      %v263 = vadd.f32 %v209, %v261
      %v264 = vadd.f32 %v210, %v262
      %265 = vrot.lane.b32.xlu0 %v171, 16
      %v266 = vpop.permute.xlu0 %265
      %267 = vrot.lane.b32.xlu0 %v172, 16
      %v268 = vpop.permute.xlu0 %267
      %vm269 = vcmp.lt.s32.totalorder %v179, 16
      %v270 = vsel %vm269, %v266, %v268
      %v271 = vsel %vm269, %v268, %v266
      %s272 = scalar_lea.vmem %s1, 112
      %v273 = vld [vmem:[%s272] sm:$0xff]
      %v274 = vld [vmem:[%s272 + $0x8] sm:$0xff]
      %v275 = vmul.f32 %v271, %v273
      %v276 = vmul.f32 %v270, %v274
      %v277 = vadd.f32 %v221, %v275
      %v278 = vadd.f32 %v222, %v276
      %279 = vrot.lane.b32.xlu0 %v171, 15
      %v280 = vpop.permute.xlu0 %279
      %281 = vrot.lane.b32.xlu0 %v172, 15
      %v282 = vpop.permute.xlu0 %281
      %vm283 = vcmp.lt.s32.totalorder %v179, 15
      %v284 = vsel %vm283, %v280, %v282
      %v285 = vsel %vm283, %v282, %v280
      %s286 = scalar_lea.vmem %s1, 128
      %v287 = vld [vmem:[%s286] sm:$0xff]
      %v288 = vld [vmem:[%s286 + $0x8] sm:$0xff]
      %v289 = vmul.f32 %v285, %v287
      %v290 = vmul.f32 %v284, %v288
      %v291 = vadd.f32 %v235, %v289
      %v292 = vadd.f32 %v236, %v290
      %293 = vrot.lane.b32.xlu0 %v171, 14
      %v294 = vpop.permute.xlu0 %293
      %295 = vrot.lane.b32.xlu0 %v172, 14
      %v296 = vpop.permute.xlu0 %295
      %vm297 = vcmp.lt.s32.totalorder %v179, 14
      %v298 = vsel %vm297, %v294, %v296
      %v299 = vsel %vm297, %v296, %v294
      %s300 = scalar_lea.vmem %s1, 144
      %v301 = vld [vmem:[%s300] sm:$0xff]
      %v302 = vld [vmem:[%s300 + $0x8] sm:$0xff]
      %v303 = vmul.f32 %v299, %v301
      %v304 = vmul.f32 %v298, %v302
      %v305 = vadd.f32 %v249, %v303
      %v306 = vadd.f32 %v250, %v304
      %307 = vrot.lane.b32.xlu0 %v171, 2
      %v308 = vpop.permute.xlu0 %307
      %309 = vrot.lane.b32.xlu0 %v172, 2
      %v310 = vpop.permute.xlu0 %309
      %vm311 = vcmp.lt.s32.totalorder %v179, 2
      %v312 = vsel %vm311, %v308, %v310
      %v313 = vsel %vm311, %v310, %v308
      %s314 = scalar_lea.vmem %s1, 160
      %v315 = vld [vmem:[%s314] sm:$0xff]
      %v316 = vld [vmem:[%s314 + $0x8] sm:$0xff]
      %v317 = vmul.f32 %v313, %v315
      %v318 = vmul.f32 %v312, %v316
      %v319 = vadd.f32 %v263, %v317
      %v320 = vadd.f32 %v264, %v318
      %321 = vrot.lane.b32.xlu0 %v171, 1
      %v322 = vpop.permute.xlu0 %321
      %323 = vrot.lane.b32.xlu0 %v172, 1
      %v324 = vpop.permute.xlu0 %323
      %vm325 = vcmp.lt.s32.totalorder %v179, 1
      %v326 = vsel %vm325, %v322, %v324
      %v327 = vsel %vm325, %v324, %v322
      %s328 = scalar_lea.vmem %s1, 176
      %v329 = vld [vmem:[%s328] sm:$0xff]
      %v330 = vld [vmem:[%s328 + $0x8] sm:$0xff]
      %v331 = vmul.f32 %v327, %v329
      %v332 = vmul.f32 %v326, %v330
      %v333 = vadd.f32 %v277, %v331
      %v334 = vadd.f32 %v278, %v332
      %s335 = scalar_lea.vmem %s1, 192
      %v336 = vld [vmem:[%s335] sm:$0xff]
      %v337 = vld [vmem:[%s335 + $0x8] sm:$0xff]
      %v338 = vmul.f32 %v171, %v336
      %v339 = vmul.f32 %v172, %v337
      %v340 = vadd.f32 %v291, %v338
      %v341 = vadd.f32 %v292, %v339
      %342 = vrot.lane.b32.xlu0 %v171, 127
      %v343 = vpop.permute.xlu0 %342
      %344 = vrot.lane.b32.xlu0 %v172, 127
      %v345 = vpop.permute.xlu0 %344
      %vm346 = vcmp.lt.s32.totalorder %v179, 127
      %v347 = vsel %vm346, %v343, %v345
      %v348 = vsel %vm346, %v345, %v343
      %s349 = scalar_lea.vmem %s1, 208
      %v350 = vld [vmem:[%s349] sm:$0xff]
      %v351 = vld [vmem:[%s349 + $0x8] sm:$0xff]
      %v352 = vmul.f32 %v347, %v350
      %v353 = vmul.f32 %v348, %v351
      %v354 = vadd.f32 %v305, %v352
      %v355 = vadd.f32 %v306, %v353
      %356 = vrot.lane.b32.xlu0 %v171, 126
      %v357 = vpop.permute.xlu0 %356
      %358 = vrot.lane.b32.xlu0 %v172, 126
      %v359 = vpop.permute.xlu0 %358
      %vm360 = vcmp.lt.s32.totalorder %v179, 126
      %v361 = vsel %vm360, %v357, %v359
      %v362 = vsel %vm360, %v359, %v357
      %s363 = scalar_lea.vmem %s1, 224
      %v364 = vld [vmem:[%s363] sm:$0xff]
      %v365 = vld [vmem:[%s363 + $0x8] sm:$0xff]
      %v366 = vmul.f32 %v361, %v364
      %v367 = vmul.f32 %v362, %v365
      %v368 = vadd.f32 %v319, %v366
      %v369 = vadd.f32 %v320, %v367
      %370 = vrot.lane.b32.xlu0 %v171, 114
      %v371 = vpop.permute.xlu0 %370
      %372 = vrot.lane.b32.xlu0 %v172, 114
      %v373 = vpop.permute.xlu0 %372
      %vm374 = vcmp.lt.s32.totalorder %v179, 114
      %v375 = vsel %vm374, %v371, %v373
      %v376 = vsel %vm374, %v373, %v371
      %s377 = scalar_lea.vmem %s1, 240
      %v378 = vld [vmem:[%s377] sm:$0xff]
      %v379 = vld [vmem:[%s377 + $0x8] sm:$0xff]
      %v380 = vmul.f32 %v375, %v378
      %v381 = vmul.f32 %v376, %v379
      %v382 = vadd.f32 %v333, %v380
      %v383 = vadd.f32 %v334, %v381
      %384 = vrot.lane.b32.xlu0 %v171, 113
      %v385 = vpop.permute.xlu0 %384
      %386 = vrot.lane.b32.xlu0 %v172, 113
      %v387 = vpop.permute.xlu0 %386
      %vm388 = vcmp.lt.s32.totalorder %v179, 113
      %v389 = vsel %vm388, %v385, %v387
      %v390 = vsel %vm388, %v387, %v385
      %s391 = scalar_lea.vmem %s1, 256
      %v392 = vld [vmem:[%s391] sm:$0xff]
      %v393 = vld [vmem:[%s391 + $0x8] sm:$0xff]
      %v394 = vmul.f32 %v389, %v392
      %v395 = vmul.f32 %v390, %v393
      %v396 = vadd.f32 %v340, %v394
      %v397 = vadd.f32 %v341, %v395
      %398 = vrot.lane.b32.xlu0 %v171, 112
      %v399 = vpop.permute.xlu0 %398
      %400 = vrot.lane.b32.xlu0 %v172, 112
      %v401 = vpop.permute.xlu0 %400
      %vm402 = vcmp.lt.s32.totalorder %v179, 112
      %v403 = vsel %vm402, %v399, %v401
      %v404 = vsel %vm402, %v401, %v399
      %s405 = scalar_lea.vmem %s1, 272
      %v406 = vld [vmem:[%s405] sm:$0xff]
      %v407 = vld [vmem:[%s405 + $0x8] sm:$0xff]
      %v408 = vmul.f32 %v403, %v406
      %v409 = vmul.f32 %v404, %v407
      %v410 = vadd.f32 %v354, %v408
      %v411 = vadd.f32 %v355, %v409
      %412 = vrot.lane.b32.xlu0 %v171, 111
      %v413 = vpop.permute.xlu0 %412
      %414 = vrot.lane.b32.xlu0 %v172, 111
      %v415 = vpop.permute.xlu0 %414
      %vm416 = vcmp.lt.s32.totalorder %v179, 111
      %v417 = vsel %vm416, %v413, %v415
      %v418 = vsel %vm416, %v415, %v413
      %s419 = scalar_lea.vmem %s1, 288
      %v420 = vld [vmem:[%s419] sm:$0xff]
      %v421 = vld [vmem:[%s419 + $0x8] sm:$0xff]
      %v422 = vmul.f32 %v417, %v420
      %v423 = vmul.f32 %v418, %v421
      %v424 = vadd.f32 %v368, %v422
      %v425 = vadd.f32 %v369, %v423
      %426 = vrot.lane.b32.xlu0 %v171, 110
      %v427 = vpop.permute.xlu0 %426
      %428 = vrot.lane.b32.xlu0 %v172, 110
      %v429 = vpop.permute.xlu0 %428
      %vm430 = vcmp.lt.s32.totalorder %v179, 110
      %v431 = vsel %vm430, %v427, %v429
      %v432 = vsel %vm430, %v429, %v427
      %s433 = scalar_lea.vmem %s1, 304
      %v434 = vld [vmem:[%s433] sm:$0xff]
      %v435 = vld [vmem:[%s433 + $0x8] sm:$0xff]
      %v436 = vmul.f32 %v431, %v434
      %v437 = vmul.f32 %v432, %v435
      %v438 = vadd.f32 %v382, %v436
      %v439 = vadd.f32 %v383, %v437
      %440 = vrot.lane.b32.xlu0 %v171, 98
      %v441 = vpop.permute.xlu0 %440
      %442 = vrot.lane.b32.xlu0 %v172, 98
      %v443 = vpop.permute.xlu0 %442
      %vm444 = vcmp.lt.s32.totalorder %v179, 98
      %v445 = vsel %vm444, %v441, %v443
      %v446 = vsel %vm444, %v443, %v441
      %s447 = scalar_lea.vmem %s1, 320
      %v448 = vld [vmem:[%s447] sm:$0xff]
      %v449 = vld [vmem:[%s447 + $0x8] sm:$0xff]
      %v450 = vmul.f32 %v445, %v448
      %v451 = vmul.f32 %v446, %v449
      %v452 = vadd.f32 %v396, %v450
      %v453 = vadd.f32 %v397, %v451
      %454 = vrot.lane.b32.xlu0 %v171, 97
      %v455 = vpop.permute.xlu0 %454
      %456 = vrot.lane.b32.xlu0 %v172, 97
      %v457 = vpop.permute.xlu0 %456
      %vm458 = vcmp.lt.s32.totalorder %v179, 97
      %v459 = vsel %vm458, %v455, %v457
      %v460 = vsel %vm458, %v457, %v455
      %s461 = scalar_lea.vmem %s1, 336
      %v462 = vld [vmem:[%s461] sm:$0xff]
      %v463 = vld [vmem:[%s461 + $0x8] sm:$0xff]
      %v464 = vmul.f32 %v459, %v462
      %v465 = vmul.f32 %v460, %v463
      %v466 = vadd.f32 %v410, %v464
      %v467 = vadd.f32 %v411, %v465
      %468 = vrot.lane.b32.xlu0 %v171, 96
      %v469 = vpop.permute.xlu0 %468
      %470 = vrot.lane.b32.xlu0 %v172, 96
      %v471 = vpop.permute.xlu0 %470
      %vm472 = vcmp.lt.s32.totalorder %v179, 96
      %v473 = vsel %vm472, %v469, %v471
      %v474 = vsel %vm472, %v471, %v469
      %s475 = scalar_lea.vmem %s1, 352
      %v476 = vld [vmem:[%s475] sm:$0xff]
      %v477 = vld [vmem:[%s475 + $0x8] sm:$0xff]
      %v478 = vmul.f32 %v473, %v476
      %v479 = vmul.f32 %v474, %v477
      %v480 = vadd.f32 %v424, %v478
      %v481 = vadd.f32 %v425, %v479
      %482 = vrot.lane.b32.xlu0 %v171, 95
      %v483 = vpop.permute.xlu0 %482
      %484 = vrot.lane.b32.xlu0 %v172, 95
      %v485 = vpop.permute.xlu0 %484
      %vm486 = vcmp.lt.s32.totalorder %v179, 95
      %v487 = vsel %vm486, %v483, %v485
      %v488 = vsel %vm486, %v485, %v483
      %s489 = scalar_lea.vmem %s1, 368
      %v490 = vld [vmem:[%s489] sm:$0xff]
      %v491 = vld [vmem:[%s489 + $0x8] sm:$0xff]
      %v492 = vmul.f32 %v487, %v490
      %v493 = vmul.f32 %v488, %v491
      %v494 = vadd.f32 %v438, %v492
      %v495 = vadd.f32 %v439, %v493
      %496 = vrot.lane.b32.xlu0 %v171, 94
      %v497 = vpop.permute.xlu0 %496
      %498 = vrot.lane.b32.xlu0 %v172, 94
      %v499 = vpop.permute.xlu0 %498
      %vm500 = vcmp.lt.s32.totalorder %v179, 94
      %v501 = vsel %vm500, %v497, %v499
      %v502 = vsel %vm500, %v499, %v497
      %s503 = scalar_lea.vmem %s1, 384
      %v504 = vld [vmem:[%s503] sm:$0xff]
      %v505 = vld [vmem:[%s503 + $0x8] sm:$0xff]
      %v506 = vmul.f32 %v501, %v504
      %v507 = vmul.f32 %v502, %v505
      %v508 = vadd.f32 %v452, %v506
      %v509 = vadd.f32 %v453, %v507
      %v510 = vadd.f32 %v508, %v466
      %v511 = vadd.f32 %v509, %v467
      %v512 = vadd.f32 %v480, %v494
      %v513 = vadd.f32 %v481, %v495
      %v514 = vadd.f32 %v510, %v512
      %v515 = vadd.f32 %v511, %v513
      %517 = vset.pattern.permute.xlu0 16
      %518 = vperm.xlu0 %517, %v173
      %v519 = vpop.permute.xlu0 %518
      %v521 = vadd.f32 %v514, %v519
      %v522 = vadd.f32 %v515, %v519
      %v523 = vmax.f32 %v521, 0.0
      %v524 = vmax.f32 %v522, 0.0
      %v525 = vmin.f32 %v523, 6.0
      %v526 = vmin.f32 %v524, 6.0
      %527 = vset.pattern.permute.xlu0 17
      %528 = vperm.xlu0 %527, %v173
      %v529 = vpop.permute.xlu0 %528
      %vm531 = vcmask 64512
      %v532 = vsel %vm531, %v173, 0
      %534 = vmatpush.msra.mxu0 0.0
      %535 = vmatpush.msra.mxu0 0.0
      %536 = vmatpush.msra.mxu0 0.0
      %537 = vmatpush.msra.mxu0 0.0
      %538 = vmatpush.msra.mxu0 0.0
      %539 = vmatpush.msra.mxu0 0.0
      %540 = vmatpush.msra.mxu0 0.0
      %541 = vmatpush.msra.mxu0 0.0
      %542 = vmatpush.msra.mxu0 0.0
      %543 = vmatpush.msra.mxu0 0.0
      %544 = vmatpush.msra.mxu0 0.0
      %545 = vmatpush.msra.mxu0 0.0
      %546 = vmatpush.msra.mxu0 0.0
      %547 = vmatpush.msra.mxu0 0.0
      %548 = vmatpush.msra.mxu0 0.0
      %549 = vmatpush.msra.mxu0 %v525
      %550 = vmatmul.f32.gmra.mxu0 %v532
      %v551 = vpop.f32.mrf.mxu0
      %v552 = vadd.f32 %v529, %v551
      %553 = vdwg.mxu0
      %554 = vmatpush.msra.mxu0 0.0
      %555 = vmatpush.msra.mxu0 0.0
      %556 = vmatpush.msra.mxu0 0.0
      %557 = vmatpush.msra.mxu0 0.0
      %558 = vmatpush.msra.mxu0 0.0
      %559 = vmatpush.msra.mxu0 0.0
      %560 = vmatpush.msra.mxu0 0.0
      %561 = vmatpush.msra.mxu0 0.0
      %562 = vmatpush.msra.mxu0 0.0
      %563 = vmatpush.msra.mxu0 0.0
      %564 = vmatpush.msra.mxu0 0.0
      %565 = vmatpush.msra.mxu0 0.0
      %566 = vmatpush.msra.mxu0 0.0
      %567 = vmatpush.msra.mxu0 0.0
      %568 = vmatpush.msra.mxu0 0.0
      %569 = vmatpush.msra.mxu0 %v526
      %570 = vmatmul.f32.gmra.mxu0 %v532
      %v571 = vpop.f32.mrf.mxu0
      %v572 = vadd.f32 %v529, %v571
      %573 = vdwg.mxu0
      %v574 = vmax.f32 %v552, 0.0
      %v575 = vmax.f32 %v572, 0.0
      %v576 = vmin.f32 %v574, 6.0
      %v577 = vmin.f32 %v575, 6.0
      %578 = vset.pattern.permute.xlu0 18
      %579 = vperm.xlu0 %578, %v173
      %v580 = vpop.permute.xlu0 %579
      %582 = vrot.lane.b32.xlu0 %v173, 120
      %v583 = vpop.permute.xlu0 %582
      %v584 = vsel %vm531, %v583, 0
      %586 = vmatpush.msra.mxu0 0.0
      %587 = vmatpush.msra.mxu0 0.0
      %588 = vmatpush.msra.mxu0 0.0
      %589 = vmatpush.msra.mxu0 0.0
      %590 = vmatpush.msra.mxu0 0.0
      %591 = vmatpush.msra.mxu0 0.0
      %592 = vmatpush.msra.mxu0 0.0
      %593 = vmatpush.msra.mxu0 0.0
      %594 = vmatpush.msra.mxu0 0.0
      %595 = vmatpush.msra.mxu0 0.0
      %596 = vmatpush.msra.mxu0 0.0
      %597 = vmatpush.msra.mxu0 0.0
      %598 = vmatpush.msra.mxu0 0.0
      %599 = vmatpush.msra.mxu0 0.0
      %600 = vmatpush.msra.mxu0 0.0
      %601 = vmatpush.msra.mxu0 %v576
      %602 = vmatmul.f32.gmra.mxu0 %v584
      %v603 = vpop.f32.mrf.mxu0
      %v604 = vadd.f32 %v580, %v603
      %605 = vdwg.mxu0
      %606 = vmatpush.msra.mxu0 0.0
      %607 = vmatpush.msra.mxu0 0.0
      %608 = vmatpush.msra.mxu0 0.0
      %609 = vmatpush.msra.mxu0 0.0
      %610 = vmatpush.msra.mxu0 0.0
      %611 = vmatpush.msra.mxu0 0.0
      %612 = vmatpush.msra.mxu0 0.0
      %613 = vmatpush.msra.mxu0 0.0
      %614 = vmatpush.msra.mxu0 0.0
      %615 = vmatpush.msra.mxu0 0.0
      %616 = vmatpush.msra.mxu0 0.0
      %617 = vmatpush.msra.mxu0 0.0
      %618 = vmatpush.msra.mxu0 0.0
      %619 = vmatpush.msra.mxu0 0.0
      %620 = vmatpush.msra.mxu0 0.0
      %621 = vmatpush.msra.mxu0 %v577
      %622 = vmatmul.f32.gmra.mxu0 %v584
      %v623 = vpop.f32.mrf.mxu0
      %v624 = vadd.f32 %v580, %v623
      %625 = vdwg.mxu0
      %v626 = vmax.f32 %v604, 0.0
      %v627 = vmax.f32 %v624, 0.0
      %v628 = vmin.f32 %v626, 6.0
      %v629 = vmin.f32 %v627, 6.0
      %630 = vrot.lane.b32.xlu0 %v628, 34
      %v631 = vpop.permute.xlu0 %630
      %632 = vrot.lane.b32.xlu0 %v629, 34
      %v633 = vpop.permute.xlu0 %632
      %v634 = vsel %vm180, %v631, %v633
      %v635 = vsel %vm180, %v633, %v631
      %s636 = scalar_lea.vmem %s1, 400
      %v637 = vld [vmem:[%s636] sm:$0xff]
      %v638 = vld [vmem:[%s636 + $0x8] sm:$0xff]
      %v639 = vmul.f32 %v635, %v637
      %v640 = vmul.f32 %v634, %v638
      %641 = vrot.lane.b32.xlu0 %v628, 33
      %v642 = vpop.permute.xlu0 %641
      %643 = vrot.lane.b32.xlu0 %v629, 33
      %v644 = vpop.permute.xlu0 %643
      %v645 = vsel %vm191, %v642, %v644
      %v646 = vsel %vm191, %v644, %v642
      %s647 = scalar_lea.vmem %s1, 416
      %v648 = vld [vmem:[%s647] sm:$0xff]
      %v649 = vld [vmem:[%s647 + $0x8] sm:$0xff]
      %v650 = vmul.f32 %v646, %v648
      %v651 = vmul.f32 %v645, %v649
      %652 = vrot.lane.b32.xlu0 %v628, 32
      %v653 = vpop.permute.xlu0 %652
      %654 = vrot.lane.b32.xlu0 %v629, 32
      %v655 = vpop.permute.xlu0 %654
      %v656 = vsel %vm203, %v653, %v655
      %v657 = vsel %vm203, %v655, %v653
      %s658 = scalar_lea.vmem %s1, 432
      %v659 = vld [vmem:[%s658] sm:$0xff]
      %v660 = vld [vmem:[%s658 + $0x8] sm:$0xff]
      %v661 = vmul.f32 %v657, %v659
      %v662 = vmul.f32 %v656, %v660
      %663 = vrot.lane.b32.xlu0 %v628, 31
      %v664 = vpop.permute.xlu0 %663
      %665 = vrot.lane.b32.xlu0 %v629, 31
      %v666 = vpop.permute.xlu0 %665
      %v667 = vsel %vm215, %v664, %v666
      %v668 = vsel %vm215, %v666, %v664
      %s669 = scalar_lea.vmem %s1, 448
      %v670 = vld [vmem:[%s669] sm:$0xff]
      %v671 = vld [vmem:[%s669 + $0x8] sm:$0xff]
      %v672 = vmul.f32 %v668, %v670
      %v673 = vmul.f32 %v667, %v671
      %674 = vrot.lane.b32.xlu0 %v628, 30
      %v675 = vpop.permute.xlu0 %674
      %676 = vrot.lane.b32.xlu0 %v629, 30
      %v677 = vpop.permute.xlu0 %676
      %v678 = vsel %vm227, %v675, %v677
      %v679 = vsel %vm227, %v677, %v675
      %s680 = scalar_lea.vmem %s1, 464
      %v681 = vld [vmem:[%s680] sm:$0xff]
      %v682 = vld [vmem:[%s680 + $0x8] sm:$0xff]
      %v683 = vmul.f32 %v679, %v681
      %v684 = vmul.f32 %v678, %v682
      %v685 = vadd.f32 %v639, %v683
      %v686 = vadd.f32 %v640, %v684
      %687 = vrot.lane.b32.xlu0 %v628, 18
      %v688 = vpop.permute.xlu0 %687
      %689 = vrot.lane.b32.xlu0 %v629, 18
      %v690 = vpop.permute.xlu0 %689
      %v691 = vsel %vm241, %v688, %v690
      %v692 = vsel %vm241, %v690, %v688
      %s693 = scalar_lea.vmem %s1, 480
      %v694 = vld [vmem:[%s693] sm:$0xff]
      %v695 = vld [vmem:[%s693 + $0x8] sm:$0xff]
      %v696 = vmul.f32 %v692, %v694
      %v697 = vmul.f32 %v691, %v695
      %v698 = vadd.f32 %v650, %v696
      %v699 = vadd.f32 %v651, %v697
      %700 = vrot.lane.b32.xlu0 %v628, 17
      %v701 = vpop.permute.xlu0 %700
      %702 = vrot.lane.b32.xlu0 %v629, 17
      %v703 = vpop.permute.xlu0 %702
      %v704 = vsel %vm255, %v701, %v703
      %v705 = vsel %vm255, %v703, %v701
      %s706 = scalar_lea.vmem %s1, 496
      %v707 = vld [vmem:[%s706] sm:$0xff]
      %v708 = vld [vmem:[%s706 + $0x8] sm:$0xff]
      %v709 = vmul.f32 %v705, %v707
      %v710 = vmul.f32 %v704, %v708
      %v711 = vadd.f32 %v661, %v709
      %v712 = vadd.f32 %v662, %v710
      %713 = vrot.lane.b32.xlu0 %v628, 16
      %v714 = vpop.permute.xlu0 %713
      %715 = vrot.lane.b32.xlu0 %v629, 16
      %v716 = vpop.permute.xlu0 %715
      %v717 = vsel %vm269, %v714, %v716
      %v718 = vsel %vm269, %v716, %v714
      %s719 = scalar_lea.vmem %s1, 512
      %v720 = vld [vmem:[%s719] sm:$0xff]
      %v721 = vld [vmem:[%s719 + $0x8] sm:$0xff]
      %v722 = vmul.f32 %v718, %v720
      %v723 = vmul.f32 %v717, %v721
      %v724 = vadd.f32 %v672, %v722
      %v725 = vadd.f32 %v673, %v723
      %726 = vrot.lane.b32.xlu0 %v628, 15
      %v727 = vpop.permute.xlu0 %726
      %728 = vrot.lane.b32.xlu0 %v629, 15
      %v729 = vpop.permute.xlu0 %728
      %v730 = vsel %vm283, %v727, %v729
      %v731 = vsel %vm283, %v729, %v727
      %s732 = scalar_lea.vmem %s1, 528
      %v733 = vld [vmem:[%s732] sm:$0xff]
      %v734 = vld [vmem:[%s732 + $0x8] sm:$0xff]
      %v735 = vmul.f32 %v731, %v733
      %v736 = vmul.f32 %v730, %v734
      %v737 = vadd.f32 %v685, %v735
      %v738 = vadd.f32 %v686, %v736
      %739 = vrot.lane.b32.xlu0 %v628, 14
      %v740 = vpop.permute.xlu0 %739
      %741 = vrot.lane.b32.xlu0 %v629, 14
      %v742 = vpop.permute.xlu0 %741
      %v743 = vsel %vm297, %v740, %v742
      %v744 = vsel %vm297, %v742, %v740
      %s745 = scalar_lea.vmem %s1, 544
      %v746 = vld [vmem:[%s745] sm:$0xff]
      %v747 = vld [vmem:[%s745 + $0x8] sm:$0xff]
      %v748 = vmul.f32 %v744, %v746
      %v749 = vmul.f32 %v743, %v747
      %v750 = vadd.f32 %v698, %v748
      %v751 = vadd.f32 %v699, %v749
      %752 = vrot.lane.b32.xlu0 %v628, 2
      %v753 = vpop.permute.xlu0 %752
      %754 = vrot.lane.b32.xlu0 %v629, 2
      %v755 = vpop.permute.xlu0 %754
      %v756 = vsel %vm311, %v753, %v755
      %v757 = vsel %vm311, %v755, %v753
      %s758 = scalar_lea.vmem %s1, 560
      %v759 = vld [vmem:[%s758] sm:$0xff]
      %v760 = vld [vmem:[%s758 + $0x8] sm:$0xff]
      %v761 = vmul.f32 %v757, %v759
      %v762 = vmul.f32 %v756, %v760
      %v763 = vadd.f32 %v711, %v761
      %v764 = vadd.f32 %v712, %v762
      %765 = vrot.lane.b32.xlu0 %v628, 1
      %v766 = vpop.permute.xlu0 %765
      %767 = vrot.lane.b32.xlu0 %v629, 1
      %v768 = vpop.permute.xlu0 %767
      %v769 = vsel %vm325, %v766, %v768
      %v770 = vsel %vm325, %v768, %v766
      %s771 = scalar_lea.vmem %s1, 576
      %v772 = vld [vmem:[%s771] sm:$0xff]
      %v773 = vld [vmem:[%s771 + $0x8] sm:$0xff]
      %v774 = vmul.f32 %v770, %v772
      %v775 = vmul.f32 %v769, %v773
      %v776 = vadd.f32 %v724, %v774
      %v777 = vadd.f32 %v725, %v775
      %s778 = scalar_lea.vmem %s1, 592
      %v779 = vld [vmem:[%s778] sm:$0xff]
      %v780 = vld [vmem:[%s778 + $0x8] sm:$0xff]
      %v781 = vmul.f32 %v628, %v779
      %v782 = vmul.f32 %v629, %v780
      %v783 = vadd.f32 %v737, %v781
      %v784 = vadd.f32 %v738, %v782
      %785 = vrot.lane.b32.xlu0 %v628, 127
      %v786 = vpop.permute.xlu0 %785
      %787 = vrot.lane.b32.xlu0 %v629, 127
      %v788 = vpop.permute.xlu0 %787
      %v789 = vsel %vm346, %v786, %v788
      %v790 = vsel %vm346, %v788, %v786
      %s791 = scalar_lea.vmem %s1, 608
      %v792 = vld [vmem:[%s791] sm:$0xff]
      %v793 = vld [vmem:[%s791 + $0x8] sm:$0xff]
      %v794 = vmul.f32 %v789, %v792
      %v795 = vmul.f32 %v790, %v793
      %v796 = vadd.f32 %v750, %v794
      %v797 = vadd.f32 %v751, %v795
      %798 = vrot.lane.b32.xlu0 %v628, 126
      %v799 = vpop.permute.xlu0 %798
      %800 = vrot.lane.b32.xlu0 %v629, 126
      %v801 = vpop.permute.xlu0 %800
      %v802 = vsel %vm360, %v799, %v801
      %v803 = vsel %vm360, %v801, %v799
      %s804 = scalar_lea.vmem %s1, 624
      %v805 = vld [vmem:[%s804] sm:$0xff]
      %v806 = vld [vmem:[%s804 + $0x8] sm:$0xff]
      %v807 = vmul.f32 %v802, %v805
      %v808 = vmul.f32 %v803, %v806
      %v809 = vadd.f32 %v763, %v807
      %v810 = vadd.f32 %v764, %v808
      %811 = vrot.lane.b32.xlu0 %v628, 114
      %v812 = vpop.permute.xlu0 %811
      %813 = vrot.lane.b32.xlu0 %v629, 114
      %v814 = vpop.permute.xlu0 %813
      %v815 = vsel %vm374, %v812, %v814
      %v816 = vsel %vm374, %v814, %v812
      %s817 = scalar_lea.vmem %s1, 640
      %v818 = vld [vmem:[%s817] sm:$0xff]
      %v819 = vld [vmem:[%s817 + $0x8] sm:$0xff]
      %v820 = vmul.f32 %v815, %v818
      %v821 = vmul.f32 %v816, %v819
      %v822 = vadd.f32 %v776, %v820
      %v823 = vadd.f32 %v777, %v821
      %824 = vrot.lane.b32.xlu0 %v628, 113
      %v825 = vpop.permute.xlu0 %824
      %826 = vrot.lane.b32.xlu0 %v629, 113
      %v827 = vpop.permute.xlu0 %826
      %v828 = vsel %vm388, %v825, %v827
      %v829 = vsel %vm388, %v827, %v825
      %s830 = scalar_lea.vmem %s1, 656
      %v831 = vld [vmem:[%s830] sm:$0xff]
      %v832 = vld [vmem:[%s830 + $0x8] sm:$0xff]
      %v833 = vmul.f32 %v828, %v831
      %v834 = vmul.f32 %v829, %v832
      %v835 = vadd.f32 %v783, %v833
      %v836 = vadd.f32 %v784, %v834
      %837 = vrot.lane.b32.xlu0 %v628, 112
      %v838 = vpop.permute.xlu0 %837
      %839 = vrot.lane.b32.xlu0 %v629, 112
      %v840 = vpop.permute.xlu0 %839
      %v841 = vsel %vm402, %v838, %v840
      %v842 = vsel %vm402, %v840, %v838
      %s843 = scalar_lea.vmem %s1, 672
      %v844 = vld [vmem:[%s843] sm:$0xff]
      %v845 = vld [vmem:[%s843 + $0x8] sm:$0xff]
      %v846 = vmul.f32 %v841, %v844
      %v847 = vmul.f32 %v842, %v845
      %v848 = vadd.f32 %v796, %v846
      %v849 = vadd.f32 %v797, %v847
      %850 = vrot.lane.b32.xlu0 %v628, 111
      %v851 = vpop.permute.xlu0 %850
      %852 = vrot.lane.b32.xlu0 %v629, 111
      %v853 = vpop.permute.xlu0 %852
      %v854 = vsel %vm416, %v851, %v853
      %v855 = vsel %vm416, %v853, %v851
      %s856 = scalar_lea.vmem %s1, 688
      %v857 = vld [vmem:[%s856] sm:$0xff]
      %v858 = vld [vmem:[%s856 + $0x8] sm:$0xff]
      %v859 = vmul.f32 %v854, %v857
      %v860 = vmul.f32 %v855, %v858
      %v861 = vadd.f32 %v809, %v859
      %v862 = vadd.f32 %v810, %v860
      %863 = vrot.lane.b32.xlu0 %v628, 110
      %v864 = vpop.permute.xlu0 %863
      %865 = vrot.lane.b32.xlu0 %v629, 110
      %v866 = vpop.permute.xlu0 %865
      %v867 = vsel %vm430, %v864, %v866
      %v868 = vsel %vm430, %v866, %v864
      %s869 = scalar_lea.vmem %s1, 704
      %v870 = vld [vmem:[%s869] sm:$0xff]
      %v871 = vld [vmem:[%s869 + $0x8] sm:$0xff]
      %v872 = vmul.f32 %v867, %v870
      %v873 = vmul.f32 %v868, %v871
      %v874 = vadd.f32 %v822, %v872
      %v875 = vadd.f32 %v823, %v873
      %876 = vrot.lane.b32.xlu0 %v628, 98
      %v877 = vpop.permute.xlu0 %876
      %878 = vrot.lane.b32.xlu0 %v629, 98
      %v879 = vpop.permute.xlu0 %878
      %v880 = vsel %vm444, %v877, %v879
      %v881 = vsel %vm444, %v879, %v877
      %s882 = scalar_lea.vmem %s1, 720
      %v883 = vld [vmem:[%s882] sm:$0xff]
      %v884 = vld [vmem:[%s882 + $0x8] sm:$0xff]
      %v885 = vmul.f32 %v880, %v883
      %v886 = vmul.f32 %v881, %v884
      %v887 = vadd.f32 %v835, %v885
      %v888 = vadd.f32 %v836, %v886
      %889 = vrot.lane.b32.xlu0 %v628, 97
      %v890 = vpop.permute.xlu0 %889
      %891 = vrot.lane.b32.xlu0 %v629, 97
      %v892 = vpop.permute.xlu0 %891
      %v893 = vsel %vm458, %v890, %v892
      %v894 = vsel %vm458, %v892, %v890
      %s895 = scalar_lea.vmem %s1, 736
      %v896 = vld [vmem:[%s895] sm:$0xff]
      %v897 = vld [vmem:[%s895 + $0x8] sm:$0xff]
      %v898 = vmul.f32 %v893, %v896
      %v899 = vmul.f32 %v894, %v897
      %v900 = vadd.f32 %v848, %v898
      %v901 = vadd.f32 %v849, %v899
      %902 = vrot.lane.b32.xlu0 %v628, 96
      %v903 = vpop.permute.xlu0 %902
      %904 = vrot.lane.b32.xlu0 %v629, 96
      %v905 = vpop.permute.xlu0 %904
      %v906 = vsel %vm472, %v903, %v905
      %v907 = vsel %vm472, %v905, %v903
      %s908 = scalar_lea.vmem %s1, 752
      %v909 = vld [vmem:[%s908] sm:$0xff]
      %v910 = vld [vmem:[%s908 + $0x8] sm:$0xff]
      %v911 = vmul.f32 %v906, %v909
      %v912 = vmul.f32 %v907, %v910
      %v913 = vadd.f32 %v861, %v911
      %v914 = vadd.f32 %v862, %v912
      %915 = vrot.lane.b32.xlu0 %v628, 95
      %v916 = vpop.permute.xlu0 %915
      %917 = vrot.lane.b32.xlu0 %v629, 95
      %v918 = vpop.permute.xlu0 %917
      %v919 = vsel %vm486, %v916, %v918
      %v920 = vsel %vm486, %v918, %v916
      %s921 = scalar_lea.vmem %s1, 768
      %v922 = vld [vmem:[%s921] sm:$0xff]
      %v923 = vld [vmem:[%s921 + $0x8] sm:$0xff]
      %v924 = vmul.f32 %v919, %v922
      %v925 = vmul.f32 %v920, %v923
      %v926 = vadd.f32 %v874, %v924
      %v927 = vadd.f32 %v875, %v925
      %928 = vrot.lane.b32.xlu0 %v628, 94
      %v929 = vpop.permute.xlu0 %928
      %930 = vrot.lane.b32.xlu0 %v629, 94
      %v931 = vpop.permute.xlu0 %930
      %v932 = vsel %vm500, %v929, %v931
      %v933 = vsel %vm500, %v931, %v929
      %s934 = scalar_lea.vmem %s1, 784
      %v935 = vld [vmem:[%s934] sm:$0xff]
      %v936 = vld [vmem:[%s934 + $0x8] sm:$0xff]
      %v937 = vmul.f32 %v932, %v935
      %v938 = vmul.f32 %v933, %v936
      %v939 = vadd.f32 %v887, %v937
      %v940 = vadd.f32 %v888, %v938
      %v941 = vadd.f32 %v939, %v900
      %v942 = vadd.f32 %v940, %v901
      %v943 = vadd.f32 %v913, %v926
      %v944 = vadd.f32 %v914, %v927
      %v945 = vadd.f32 %v941, %v943
      %v946 = vadd.f32 %v942, %v944
      %947 = vset.pattern.permute.xlu0 19
      %948 = vperm.xlu0 %947, %v173
      %v949 = vpop.permute.xlu0 %948
      %v951 = vadd.f32 %v945, %v949
      %v952 = vadd.f32 %v946, %v949
      %v953 = vmax.f32 %v951, 0.0
      %v954 = vmax.f32 %v952, 0.0
      %v955 = vmin.f32 %v953, 6.0
      %v956 = vmin.f32 %v954, 6.0
      %s957 = scalar_lea.vmem %s2, 8
      %v958 = vld [vmem:[%s957] sm:$0xff]
      %959 = vrot.lane.b32.xlu0 %v955, 34
      %v960 = vpop.permute.xlu0 %959
      %961 = vrot.lane.b32.xlu0 %v956, 34
      %v962 = vpop.permute.xlu0 %961
      %v963 = vsel %vm180, %v960, %v962
      %v964 = vsel %vm180, %v962, %v960
      %s965 = scalar_lea.vmem %s1, 800
      %v966 = vld [vmem:[%s965] sm:$0xff]
      %v967 = vld [vmem:[%s965 + $0x8] sm:$0xff]
      %v968 = vmul.f32 %v964, %v966
      %v969 = vmul.f32 %v963, %v967
      %970 = vrot.lane.b32.xlu0 %v955, 33
      %v971 = vpop.permute.xlu0 %970
      %972 = vrot.lane.b32.xlu0 %v956, 33
      %v973 = vpop.permute.xlu0 %972
      %v974 = vsel %vm191, %v971, %v973
      %v975 = vsel %vm191, %v973, %v971
      %s976 = scalar_lea.vmem %s1, 816
      %v977 = vld [vmem:[%s976] sm:$0xff]
      %v978 = vld [vmem:[%s976 + $0x8] sm:$0xff]
      %v979 = vmul.f32 %v975, %v977
      %v980 = vmul.f32 %v974, %v978
      %981 = vrot.lane.b32.xlu0 %v955, 32
      %v982 = vpop.permute.xlu0 %981
      %983 = vrot.lane.b32.xlu0 %v956, 32
      %v984 = vpop.permute.xlu0 %983
      %v985 = vsel %vm203, %v982, %v984
      %v986 = vsel %vm203, %v984, %v982
      %s987 = scalar_lea.vmem %s1, 832
      %v988 = vld [vmem:[%s987] sm:$0xff]
      %v989 = vld [vmem:[%s987 + $0x8] sm:$0xff]
      %v990 = vmul.f32 %v986, %v988
      %v991 = vmul.f32 %v985, %v989
      %992 = vrot.lane.b32.xlu0 %v955, 31
      %v993 = vpop.permute.xlu0 %992
      %994 = vrot.lane.b32.xlu0 %v956, 31
      %v995 = vpop.permute.xlu0 %994
      %v996 = vsel %vm215, %v993, %v995
      %v997 = vsel %vm215, %v995, %v993
      %s998 = scalar_lea.vmem %s1, 848
      %v999 = vld [vmem:[%s998] sm:$0xff]
      %v1000 = vld [vmem:[%s998 + $0x8] sm:$0xff]
      %v1001 = vmul.f32 %v997, %v999
      %v1002 = vmul.f32 %v996, %v1000
      %1003 = vrot.lane.b32.xlu0 %v955, 30
      %v1004 = vpop.permute.xlu0 %1003
      %1005 = vrot.lane.b32.xlu0 %v956, 30
      %v1006 = vpop.permute.xlu0 %1005
      %v1007 = vsel %vm227, %v1004, %v1006
      %v1008 = vsel %vm227, %v1006, %v1004
      %s1009 = scalar_lea.vmem %s1, 864
      %v1010 = vld [vmem:[%s1009] sm:$0xff]
      %v1011 = vld [vmem:[%s1009 + $0x8] sm:$0xff]
      %v1012 = vmul.f32 %v1008, %v1010
      %v1013 = vmul.f32 %v1007, %v1011
      %v1014 = vadd.f32 %v968, %v1012
      %v1015 = vadd.f32 %v969, %v1013
      %1016 = vrot.lane.b32.xlu0 %v955, 18
      %v1017 = vpop.permute.xlu0 %1016
      %1018 = vrot.lane.b32.xlu0 %v956, 18
      %v1019 = vpop.permute.xlu0 %1018
      %v1020 = vsel %vm241, %v1017, %v1019
      %v1021 = vsel %vm241, %v1019, %v1017
      %s1022 = scalar_lea.vmem %s1, 880
      %v1023 = vld [vmem:[%s1022] sm:$0xff]
      %v1024 = vld [vmem:[%s1022 + $0x8] sm:$0xff]
      %v1025 = vmul.f32 %v1021, %v1023
      %v1026 = vmul.f32 %v1020, %v1024
      %v1027 = vadd.f32 %v979, %v1025
      %v1028 = vadd.f32 %v980, %v1026
      %1029 = vrot.lane.b32.xlu0 %v955, 17
      %v1030 = vpop.permute.xlu0 %1029
      %1031 = vrot.lane.b32.xlu0 %v956, 17
      %v1032 = vpop.permute.xlu0 %1031
      %v1033 = vsel %vm255, %v1030, %v1032
      %v1034 = vsel %vm255, %v1032, %v1030
      %s1035 = scalar_lea.vmem %s1, 896
      %v1036 = vld [vmem:[%s1035] sm:$0xff]
      %v1037 = vld [vmem:[%s1035 + $0x8] sm:$0xff]
      %v1038 = vmul.f32 %v1034, %v1036
      %v1039 = vmul.f32 %v1033, %v1037
      %v1040 = vadd.f32 %v990, %v1038
      %v1041 = vadd.f32 %v991, %v1039
      %1042 = vrot.lane.b32.xlu0 %v955, 16
      %v1043 = vpop.permute.xlu0 %1042
      %1044 = vrot.lane.b32.xlu0 %v956, 16
      %v1045 = vpop.permute.xlu0 %1044
      %v1046 = vsel %vm269, %v1043, %v1045
      %v1047 = vsel %vm269, %v1045, %v1043
      %s1048 = scalar_lea.vmem %s1, 912
      %v1049 = vld [vmem:[%s1048] sm:$0xff]
      %v1050 = vld [vmem:[%s1048 + $0x8] sm:$0xff]
      %v1051 = vmul.f32 %v1047, %v1049
      %v1052 = vmul.f32 %v1046, %v1050
      %v1053 = vadd.f32 %v1001, %v1051
      %v1054 = vadd.f32 %v1002, %v1052
      %1055 = vrot.lane.b32.xlu0 %v955, 15
      %v1056 = vpop.permute.xlu0 %1055
      %1057 = vrot.lane.b32.xlu0 %v956, 15
      %v1058 = vpop.permute.xlu0 %1057
      %v1059 = vsel %vm283, %v1056, %v1058
      %v1060 = vsel %vm283, %v1058, %v1056
      %s1061 = scalar_lea.vmem %s1, 928
      %v1062 = vld [vmem:[%s1061] sm:$0xff]
      %v1063 = vld [vmem:[%s1061 + $0x8] sm:$0xff]
      %v1064 = vmul.f32 %v1060, %v1062
      %v1065 = vmul.f32 %v1059, %v1063
      %v1066 = vadd.f32 %v1014, %v1064
      %v1067 = vadd.f32 %v1015, %v1065
      %1068 = vrot.lane.b32.xlu0 %v955, 14
      %v1069 = vpop.permute.xlu0 %1068
      %1070 = vrot.lane.b32.xlu0 %v956, 14
      %v1071 = vpop.permute.xlu0 %1070
      %v1072 = vsel %vm297, %v1069, %v1071
      %v1073 = vsel %vm297, %v1071, %v1069
      %s1074 = scalar_lea.vmem %s1, 944
      %v1075 = vld [vmem:[%s1074] sm:$0xff]
      %v1076 = vld [vmem:[%s1074 + $0x8] sm:$0xff]
      %v1077 = vmul.f32 %v1073, %v1075
      %v1078 = vmul.f32 %v1072, %v1076
      %v1079 = vadd.f32 %v1027, %v1077
      %v1080 = vadd.f32 %v1028, %v1078
      %1081 = vrot.lane.b32.xlu0 %v955, 2
      %v1082 = vpop.permute.xlu0 %1081
      %1083 = vrot.lane.b32.xlu0 %v956, 2
      %v1084 = vpop.permute.xlu0 %1083
      %v1085 = vsel %vm311, %v1082, %v1084
      %v1086 = vsel %vm311, %v1084, %v1082
      %s1087 = scalar_lea.vmem %s1, 960
      %v1088 = vld [vmem:[%s1087] sm:$0xff]
      %v1089 = vld [vmem:[%s1087 + $0x8] sm:$0xff]
      %v1090 = vmul.f32 %v1086, %v1088
      %v1091 = vmul.f32 %v1085, %v1089
      %v1092 = vadd.f32 %v1040, %v1090
      %v1093 = vadd.f32 %v1041, %v1091
      %1094 = vrot.lane.b32.xlu0 %v955, 1
      %v1095 = vpop.permute.xlu0 %1094
      %1096 = vrot.lane.b32.xlu0 %v956, 1
      %v1097 = vpop.permute.xlu0 %1096
      %v1098 = vsel %vm325, %v1095, %v1097
      %v1099 = vsel %vm325, %v1097, %v1095
      %s1100 = scalar_lea.vmem %s1, 976
      %v1101 = vld [vmem:[%s1100] sm:$0xff]
      %v1102 = vld [vmem:[%s1100 + $0x8] sm:$0xff]
      %v1103 = vmul.f32 %v1099, %v1101
      %v1104 = vmul.f32 %v1098, %v1102
      %v1105 = vadd.f32 %v1053, %v1103
      %v1106 = vadd.f32 %v1054, %v1104
      %s1107 = scalar_lea.vmem %s1, 992
      %v1108 = vld [vmem:[%s1107] sm:$0xff]
      %v1109 = vld [vmem:[%s1107 + $0x8] sm:$0xff]
      %v1110 = vmul.f32 %v955, %v1108
      %v1111 = vmul.f32 %v956, %v1109
      %v1112 = vadd.f32 %v1066, %v1110
      %v1113 = vadd.f32 %v1067, %v1111
      %1114 = vrot.lane.b32.xlu0 %v955, 127
      %v1115 = vpop.permute.xlu0 %1114
      %1116 = vrot.lane.b32.xlu0 %v956, 127
      %v1117 = vpop.permute.xlu0 %1116
      %v1118 = vsel %vm346, %v1115, %v1117
      %v1119 = vsel %vm346, %v1117, %v1115
      %s1120 = scalar_lea.vmem %s1, 1008
      %v1121 = vld [vmem:[%s1120] sm:$0xff]
      %v1122 = vld [vmem:[%s1120 + $0x8] sm:$0xff]
      %v1123 = vmul.f32 %v1118, %v1121
      %v1124 = vmul.f32 %v1119, %v1122
      %v1125 = vadd.f32 %v1079, %v1123
      %v1126 = vadd.f32 %v1080, %v1124
      %1127 = vrot.lane.b32.xlu0 %v955, 126
      %v1128 = vpop.permute.xlu0 %1127
      %1129 = vrot.lane.b32.xlu0 %v956, 126
      %v1130 = vpop.permute.xlu0 %1129
      %v1131 = vsel %vm360, %v1128, %v1130
      %v1132 = vsel %vm360, %v1130, %v1128
      %s1133 = scalar_lea.vmem %s1, 1024
      %v1134 = vld [vmem:[%s1133] sm:$0xff]
      %v1135 = vld [vmem:[%s1133 + $0x8] sm:$0xff]
      %v1136 = vmul.f32 %v1131, %v1134
      %v1137 = vmul.f32 %v1132, %v1135
      %v1138 = vadd.f32 %v1092, %v1136
      %v1139 = vadd.f32 %v1093, %v1137
      %1140 = vrot.lane.b32.xlu0 %v955, 114
      %v1141 = vpop.permute.xlu0 %1140
      %1142 = vrot.lane.b32.xlu0 %v956, 114
      %v1143 = vpop.permute.xlu0 %1142
      %v1144 = vsel %vm374, %v1141, %v1143
      %v1145 = vsel %vm374, %v1143, %v1141
      %s1146 = scalar_lea.vmem %s1, 1040
      %v1147 = vld [vmem:[%s1146] sm:$0xff]
      %v1148 = vld [vmem:[%s1146 + $0x8] sm:$0xff]
      %v1149 = vmul.f32 %v1144, %v1147
      %v1150 = vmul.f32 %v1145, %v1148
      %v1151 = vadd.f32 %v1105, %v1149
      %v1152 = vadd.f32 %v1106, %v1150
      %1153 = vrot.lane.b32.xlu0 %v955, 113
      %v1154 = vpop.permute.xlu0 %1153
      %1155 = vrot.lane.b32.xlu0 %v956, 113
      %v1156 = vpop.permute.xlu0 %1155
      %v1157 = vsel %vm388, %v1154, %v1156
      %v1158 = vsel %vm388, %v1156, %v1154
      %s1159 = scalar_lea.vmem %s1, 1056
      %v1160 = vld [vmem:[%s1159] sm:$0xff]
      %v1161 = vld [vmem:[%s1159 + $0x8] sm:$0xff]
      %v1162 = vmul.f32 %v1157, %v1160
      %v1163 = vmul.f32 %v1158, %v1161
      %v1164 = vadd.f32 %v1112, %v1162
      %v1165 = vadd.f32 %v1113, %v1163
      %1166 = vrot.lane.b32.xlu0 %v955, 112
      %v1167 = vpop.permute.xlu0 %1166
      %1168 = vrot.lane.b32.xlu0 %v956, 112
      %v1169 = vpop.permute.xlu0 %1168
      %v1170 = vsel %vm402, %v1167, %v1169
      %v1171 = vsel %vm402, %v1169, %v1167
      %s1172 = scalar_lea.vmem %s1, 1072
      %v1173 = vld [vmem:[%s1172] sm:$0xff]
      %v1174 = vld [vmem:[%s1172 + $0x8] sm:$0xff]
      %v1175 = vmul.f32 %v1170, %v1173
      %v1176 = vmul.f32 %v1171, %v1174
      %v1177 = vadd.f32 %v1125, %v1175
      %v1178 = vadd.f32 %v1126, %v1176
      %1179 = vrot.lane.b32.xlu0 %v955, 111
      %v1180 = vpop.permute.xlu0 %1179
      %1181 = vrot.lane.b32.xlu0 %v956, 111
      %v1182 = vpop.permute.xlu0 %1181
      %v1183 = vsel %vm416, %v1180, %v1182
      %v1184 = vsel %vm416, %v1182, %v1180
      %s1185 = scalar_lea.vmem %s1, 1088
      %v1186 = vld [vmem:[%s1185] sm:$0xff]
      %v1187 = vld [vmem:[%s1185 + $0x8] sm:$0xff]
      %v1188 = vmul.f32 %v1183, %v1186
      %v1189 = vmul.f32 %v1184, %v1187
      %v1190 = vadd.f32 %v1138, %v1188
      %v1191 = vadd.f32 %v1139, %v1189
      %1192 = vrot.lane.b32.xlu0 %v955, 110
      %v1193 = vpop.permute.xlu0 %1192
      %1194 = vrot.lane.b32.xlu0 %v956, 110
      %v1195 = vpop.permute.xlu0 %1194
      %v1196 = vsel %vm430, %v1193, %v1195
      %v1197 = vsel %vm430, %v1195, %v1193
      %s1198 = scalar_lea.vmem %s1, 1104
      %v1199 = vld [vmem:[%s1198] sm:$0xff]
      %v1200 = vld [vmem:[%s1198 + $0x8] sm:$0xff]
      %v1201 = vmul.f32 %v1196, %v1199
      %v1202 = vmul.f32 %v1197, %v1200
      %v1203 = vadd.f32 %v1151, %v1201
      %v1204 = vadd.f32 %v1152, %v1202
      %1205 = vrot.lane.b32.xlu0 %v955, 98
      %v1206 = vpop.permute.xlu0 %1205
      %1207 = vrot.lane.b32.xlu0 %v956, 98
      %v1208 = vpop.permute.xlu0 %1207
      %v1209 = vsel %vm444, %v1206, %v1208
      %v1210 = vsel %vm444, %v1208, %v1206
      %s1211 = scalar_lea.vmem %s1, 1120
      %v1212 = vld [vmem:[%s1211] sm:$0xff]
      %v1213 = vld [vmem:[%s1211 + $0x8] sm:$0xff]
      %v1214 = vmul.f32 %v1209, %v1212
      %v1215 = vmul.f32 %v1210, %v1213
      %v1216 = vadd.f32 %v1164, %v1214
      %v1217 = vadd.f32 %v1165, %v1215
      %1218 = vrot.lane.b32.xlu0 %v955, 97
      %v1219 = vpop.permute.xlu0 %1218
      %1220 = vrot.lane.b32.xlu0 %v956, 97
      %v1221 = vpop.permute.xlu0 %1220
      %v1222 = vsel %vm458, %v1219, %v1221
      %v1223 = vsel %vm458, %v1221, %v1219
      %s1224 = scalar_lea.vmem %s1, 1136
      %v1225 = vld [vmem:[%s1224] sm:$0xff]
      %v1226 = vld [vmem:[%s1224 + $0x8] sm:$0xff]
      %v1227 = vmul.f32 %v1222, %v1225
      %v1228 = vmul.f32 %v1223, %v1226
      %v1229 = vadd.f32 %v1177, %v1227
      %v1230 = vadd.f32 %v1178, %v1228
      %1231 = vrot.lane.b32.xlu0 %v955, 96
      %v1232 = vpop.permute.xlu0 %1231
      %1233 = vrot.lane.b32.xlu0 %v956, 96
      %v1234 = vpop.permute.xlu0 %1233
      %v1235 = vsel %vm472, %v1232, %v1234
      %v1236 = vsel %vm472, %v1234, %v1232
      %s1237 = scalar_lea.vmem %s1, 1152
      %v1238 = vld [vmem:[%s1237] sm:$0xff]
      %v1239 = vld [vmem:[%s1237 + $0x8] sm:$0xff]
      %v1240 = vmul.f32 %v1235, %v1238
      %v1241 = vmul.f32 %v1236, %v1239
      %v1242 = vadd.f32 %v1190, %v1240
      %v1243 = vadd.f32 %v1191, %v1241
      %1244 = vrot.lane.b32.xlu0 %v955, 95
      %v1245 = vpop.permute.xlu0 %1244
      %1246 = vrot.lane.b32.xlu0 %v956, 95
      %v1247 = vpop.permute.xlu0 %1246
      %v1248 = vsel %vm486, %v1245, %v1247
      %v1249 = vsel %vm486, %v1247, %v1245
      %s1250 = scalar_lea.vmem %s1, 1168
      %v1251 = vld [vmem:[%s1250] sm:$0xff]
      %v1252 = vld [vmem:[%s1250 + $0x8] sm:$0xff]
      %v1253 = vmul.f32 %v1248, %v1251
      %v1254 = vmul.f32 %v1249, %v1252
      %v1255 = vadd.f32 %v1203, %v1253
      %v1256 = vadd.f32 %v1204, %v1254
      %1257 = vrot.lane.b32.xlu0 %v955, 94
      %v1258 = vpop.permute.xlu0 %1257
      %1259 = vrot.lane.b32.xlu0 %v956, 94
      %v1260 = vpop.permute.xlu0 %1259
      %v1261 = vsel %vm500, %v1258, %v1260
      %v1262 = vsel %vm500, %v1260, %v1258
      %s1263 = scalar_lea.vmem %s1, 1184
      %v1264 = vld [vmem:[%s1263] sm:$0xff]
      %v1265 = vld [vmem:[%s1263 + $0x8] sm:$0xff]
      %v1266 = vmul.f32 %v1261, %v1264
      %v1267 = vmul.f32 %v1262, %v1265
      %v1268 = vadd.f32 %v1216, %v1266
      %v1269 = vadd.f32 %v1217, %v1267
      %v1270 = vadd.f32 %v1268, %v1229
      %v1271 = vadd.f32 %v1269, %v1230
      %v1272 = vadd.f32 %v1242, %v1255
      %v1273 = vadd.f32 %v1243, %v1256
      %v1274 = vadd.f32 %v1270, %v1272
      %v1275 = vadd.f32 %v1271, %v1273
      %1277 = vset.pattern.permute.xlu0 16
      %1278 = vperm.xlu0 %1277, %v958
      %v1279 = vpop.permute.xlu0 %1278
      %v1281 = vadd.f32 %v1274, %v1279
      %v1282 = vadd.f32 %v1275, %v1279
      %v1283 = vmax.f32 %v1281, 0.0
      %v1284 = vmax.f32 %v1282, 0.0
      %v1285 = vmin.f32 %v1283, 6.0
      %v1286 = vmin.f32 %v1284, 6.0
      %1287 = vset.pattern.permute.xlu0 17
      %1288 = vperm.xlu0 %1287, %v958
      %v1289 = vpop.permute.xlu0 %1288
      %v1291 = vsel %vm531, %v958, 0
      %1293 = vmatpush.msra.mxu0 0.0
      %1294 = vmatpush.msra.mxu0 0.0
      %1295 = vmatpush.msra.mxu0 0.0
      %1296 = vmatpush.msra.mxu0 0.0
      %1297 = vmatpush.msra.mxu0 0.0
      %1298 = vmatpush.msra.mxu0 0.0
      %1299 = vmatpush.msra.mxu0 0.0
      %1300 = vmatpush.msra.mxu0 0.0
      %1301 = vmatpush.msra.mxu0 0.0
      %1302 = vmatpush.msra.mxu0 0.0
      %1303 = vmatpush.msra.mxu0 0.0
      %1304 = vmatpush.msra.mxu0 0.0
      %1305 = vmatpush.msra.mxu0 0.0
      %1306 = vmatpush.msra.mxu0 0.0
      %1307 = vmatpush.msra.mxu0 0.0
      %1308 = vmatpush.msra.mxu0 %v1285
      %1309 = vmatmul.f32.gmra.mxu0 %v1291
      %v1310 = vpop.f32.mrf.mxu0
      %v1311 = vadd.f32 %v1289, %v1310
      %1312 = vdwg.mxu0
      %1313 = vmatpush.msra.mxu0 0.0
      %1314 = vmatpush.msra.mxu0 0.0
      %1315 = vmatpush.msra.mxu0 0.0
      %1316 = vmatpush.msra.mxu0 0.0
      %1317 = vmatpush.msra.mxu0 0.0
      %1318 = vmatpush.msra.mxu0 0.0
      %1319 = vmatpush.msra.mxu0 0.0
      %1320 = vmatpush.msra.mxu0 0.0
      %1321 = vmatpush.msra.mxu0 0.0
      %1322 = vmatpush.msra.mxu0 0.0
      %1323 = vmatpush.msra.mxu0 0.0
      %1324 = vmatpush.msra.mxu0 0.0
      %1325 = vmatpush.msra.mxu0 0.0
      %1326 = vmatpush.msra.mxu0 0.0
      %1327 = vmatpush.msra.mxu0 0.0
      %1328 = vmatpush.msra.mxu0 %v1286
      %1329 = vmatmul.f32.gmra.mxu0 %v1291
      %v1330 = vpop.f32.mrf.mxu0
      %v1331 = vadd.f32 %v1289, %v1330
      %1332 = vdwg.mxu0
      %v1333 = vmax.f32 %v1311, 0.0
      %v1334 = vmax.f32 %v1331, 0.0
      %v1335 = vmin.f32 %v1333, 6.0
      %v1336 = vmin.f32 %v1334, 6.0
      %1337 = vset.pattern.permute.xlu0 18
      %1338 = vperm.xlu0 %1337, %v958
      %v1339 = vpop.permute.xlu0 %1338
      %1341 = vrot.lane.b32.xlu0 %v958, 120
      %v1342 = vpop.permute.xlu0 %1341
      %v1343 = vsel %vm531, %v1342, 0
      %1345 = vmatpush.msra.mxu0 0.0
      %1346 = vmatpush.msra.mxu0 0.0
      %1347 = vmatpush.msra.mxu0 0.0
      %1348 = vmatpush.msra.mxu0 0.0
      %1349 = vmatpush.msra.mxu0 0.0
      %1350 = vmatpush.msra.mxu0 0.0
      %1351 = vmatpush.msra.mxu0 0.0
      %1352 = vmatpush.msra.mxu0 0.0
      %1353 = vmatpush.msra.mxu0 0.0
      %1354 = vmatpush.msra.mxu0 0.0
      %1355 = vmatpush.msra.mxu0 0.0
      %1356 = vmatpush.msra.mxu0 0.0
      %1357 = vmatpush.msra.mxu0 0.0
      %1358 = vmatpush.msra.mxu0 0.0
      %1359 = vmatpush.msra.mxu0 0.0
      %1360 = vmatpush.msra.mxu0 %v1335
      %1361 = vmatmul.f32.gmra.mxu0 %v1343
      %v1362 = vpop.f32.mrf.mxu0
      %v1363 = vadd.f32 %v1339, %v1362
      %1364 = vdwg.mxu0
      %1365 = vmatpush.msra.mxu0 0.0
      %1366 = vmatpush.msra.mxu0 0.0
      %1367 = vmatpush.msra.mxu0 0.0
      %1368 = vmatpush.msra.mxu0 0.0
      %1369 = vmatpush.msra.mxu0 0.0
      %1370 = vmatpush.msra.mxu0 0.0
      %1371 = vmatpush.msra.mxu0 0.0
      %1372 = vmatpush.msra.mxu0 0.0
      %1373 = vmatpush.msra.mxu0 0.0
      %1374 = vmatpush.msra.mxu0 0.0
      %1375 = vmatpush.msra.mxu0 0.0
      %1376 = vmatpush.msra.mxu0 0.0
      %1377 = vmatpush.msra.mxu0 0.0
      %1378 = vmatpush.msra.mxu0 0.0
      %1379 = vmatpush.msra.mxu0 0.0
      %1380 = vmatpush.msra.mxu0 %v1336
      %1381 = vmatmul.f32.gmra.mxu0 %v1343
      %v1382 = vpop.f32.mrf.mxu0
      %v1383 = vadd.f32 %v1339, %v1382
      %1384 = vdwg.mxu0
      %v1385 = vmax.f32 %v1363, 0.0
      %v1386 = vmax.f32 %v1383, 0.0
      %v1387 = vmin.f32 %v1385, 6.0
      %v1388 = vmin.f32 %v1386, 6.0
      %1389 = vrot.lane.b32.xlu0 %v1387, 34
      %v1390 = vpop.permute.xlu0 %1389
      %1391 = vrot.lane.b32.xlu0 %v1388, 34
      %v1392 = vpop.permute.xlu0 %1391
      %v1393 = vsel %vm180, %v1390, %v1392
      %v1394 = vsel %vm180, %v1392, %v1390
      %s1395 = scalar_lea.vmem %s1, 1200
      %v1396 = vld [vmem:[%s1395] sm:$0xff]
      %v1397 = vld [vmem:[%s1395 + $0x8] sm:$0xff]
      %v1398 = vmul.f32 %v1394, %v1396
      %v1399 = vmul.f32 %v1393, %v1397
      %1400 = vrot.lane.b32.xlu0 %v1387, 33
      %v1401 = vpop.permute.xlu0 %1400
      %1402 = vrot.lane.b32.xlu0 %v1388, 33
      %v1403 = vpop.permute.xlu0 %1402
      %v1404 = vsel %vm191, %v1401, %v1403
      %v1405 = vsel %vm191, %v1403, %v1401
      %s1406 = scalar_lea.vmem %s1, 1216
      %v1407 = vld [vmem:[%s1406] sm:$0xff]
      %v1408 = vld [vmem:[%s1406 + $0x8] sm:$0xff]
      %v1409 = vmul.f32 %v1405, %v1407
      %v1410 = vmul.f32 %v1404, %v1408
      %1411 = vrot.lane.b32.xlu0 %v1387, 32
      %v1412 = vpop.permute.xlu0 %1411
      %1413 = vrot.lane.b32.xlu0 %v1388, 32
      %v1414 = vpop.permute.xlu0 %1413
      %v1415 = vsel %vm203, %v1412, %v1414
      %v1416 = vsel %vm203, %v1414, %v1412
      %s1417 = scalar_lea.vmem %s1, 1232
      %v1418 = vld [vmem:[%s1417] sm:$0xff]
      %v1419 = vld [vmem:[%s1417 + $0x8] sm:$0xff]
      %v1420 = vmul.f32 %v1416, %v1418
      %v1421 = vmul.f32 %v1415, %v1419
      %1422 = vrot.lane.b32.xlu0 %v1387, 31
      %v1423 = vpop.permute.xlu0 %1422
      %1424 = vrot.lane.b32.xlu0 %v1388, 31
      %v1425 = vpop.permute.xlu0 %1424
      %v1426 = vsel %vm215, %v1423, %v1425
      %v1427 = vsel %vm215, %v1425, %v1423
      %s1428 = scalar_lea.vmem %s1, 1248
      %v1429 = vld [vmem:[%s1428] sm:$0xff]
      %v1430 = vld [vmem:[%s1428 + $0x8] sm:$0xff]
      %v1431 = vmul.f32 %v1427, %v1429
      %v1432 = vmul.f32 %v1426, %v1430
      %1433 = vrot.lane.b32.xlu0 %v1387, 30
      %v1434 = vpop.permute.xlu0 %1433
      %1435 = vrot.lane.b32.xlu0 %v1388, 30
      %v1436 = vpop.permute.xlu0 %1435
      %v1437 = vsel %vm227, %v1434, %v1436
      %v1438 = vsel %vm227, %v1436, %v1434
      %s1439 = scalar_lea.vmem %s1, 1264
      %v1440 = vld [vmem:[%s1439] sm:$0xff]
      %v1441 = vld [vmem:[%s1439 + $0x8] sm:$0xff]
      %v1442 = vmul.f32 %v1438, %v1440
      %v1443 = vmul.f32 %v1437, %v1441
      %v1444 = vadd.f32 %v1398, %v1442
      %v1445 = vadd.f32 %v1399, %v1443
      %1446 = vrot.lane.b32.xlu0 %v1387, 18
      %v1447 = vpop.permute.xlu0 %1446
      %1448 = vrot.lane.b32.xlu0 %v1388, 18
      %v1449 = vpop.permute.xlu0 %1448
      %v1450 = vsel %vm241, %v1447, %v1449
      %v1451 = vsel %vm241, %v1449, %v1447
      %s1452 = scalar_lea.vmem %s1, 1280
      %v1453 = vld [vmem:[%s1452] sm:$0xff]
      %v1454 = vld [vmem:[%s1452 + $0x8] sm:$0xff]
      %v1455 = vmul.f32 %v1451, %v1453
      %v1456 = vmul.f32 %v1450, %v1454
      %v1457 = vadd.f32 %v1409, %v1455
      %v1458 = vadd.f32 %v1410, %v1456
      %1459 = vrot.lane.b32.xlu0 %v1387, 17
      %v1460 = vpop.permute.xlu0 %1459
      %1461 = vrot.lane.b32.xlu0 %v1388, 17
      %v1462 = vpop.permute.xlu0 %1461
      %v1463 = vsel %vm255, %v1460, %v1462
      %v1464 = vsel %vm255, %v1462, %v1460
      %s1465 = scalar_lea.vmem %s1, 1296
      %v1466 = vld [vmem:[%s1465] sm:$0xff]
      %v1467 = vld [vmem:[%s1465 + $0x8] sm:$0xff]
      %v1468 = vmul.f32 %v1464, %v1466
      %v1469 = vmul.f32 %v1463, %v1467
      %v1470 = vadd.f32 %v1420, %v1468
      %v1471 = vadd.f32 %v1421, %v1469
      %1472 = vrot.lane.b32.xlu0 %v1387, 16
      %v1473 = vpop.permute.xlu0 %1472
      %1474 = vrot.lane.b32.xlu0 %v1388, 16
      %v1475 = vpop.permute.xlu0 %1474
      %v1476 = vsel %vm269, %v1473, %v1475
      %v1477 = vsel %vm269, %v1475, %v1473
      %s1478 = scalar_lea.vmem %s1, 1312
      %v1479 = vld [vmem:[%s1478] sm:$0xff]
      %v1480 = vld [vmem:[%s1478 + $0x8] sm:$0xff]
      %v1481 = vmul.f32 %v1477, %v1479
      %v1482 = vmul.f32 %v1476, %v1480
      %v1483 = vadd.f32 %v1431, %v1481
      %v1484 = vadd.f32 %v1432, %v1482
      %1485 = vrot.lane.b32.xlu0 %v1387, 15
      %v1486 = vpop.permute.xlu0 %1485
      %1487 = vrot.lane.b32.xlu0 %v1388, 15
      %v1488 = vpop.permute.xlu0 %1487
      %v1489 = vsel %vm283, %v1486, %v1488
      %v1490 = vsel %vm283, %v1488, %v1486
      %s1491 = scalar_lea.vmem %s1, 1328
      %v1492 = vld [vmem:[%s1491] sm:$0xff]
      %v1493 = vld [vmem:[%s1491 + $0x8] sm:$0xff]
      %v1494 = vmul.f32 %v1490, %v1492
      %v1495 = vmul.f32 %v1489, %v1493
      %v1496 = vadd.f32 %v1444, %v1494
      %v1497 = vadd.f32 %v1445, %v1495
      %1498 = vrot.lane.b32.xlu0 %v1387, 14
      %v1499 = vpop.permute.xlu0 %1498
      %1500 = vrot.lane.b32.xlu0 %v1388, 14
      %v1501 = vpop.permute.xlu0 %1500
      %v1502 = vsel %vm297, %v1499, %v1501
      %v1503 = vsel %vm297, %v1501, %v1499
      %s1504 = scalar_lea.vmem %s1, 1344
      %v1505 = vld [vmem:[%s1504] sm:$0xff]
      %v1506 = vld [vmem:[%s1504 + $0x8] sm:$0xff]
      %v1507 = vmul.f32 %v1503, %v1505
      %v1508 = vmul.f32 %v1502, %v1506
      %v1509 = vadd.f32 %v1457, %v1507
      %v1510 = vadd.f32 %v1458, %v1508
      %1511 = vrot.lane.b32.xlu0 %v1387, 2
      %v1512 = vpop.permute.xlu0 %1511
      %1513 = vrot.lane.b32.xlu0 %v1388, 2
      %v1514 = vpop.permute.xlu0 %1513
      %v1515 = vsel %vm311, %v1512, %v1514
      %v1516 = vsel %vm311, %v1514, %v1512
      %s1517 = scalar_lea.vmem %s1, 1360
      %v1518 = vld [vmem:[%s1517] sm:$0xff]
      %v1519 = vld [vmem:[%s1517 + $0x8] sm:$0xff]
      %v1520 = vmul.f32 %v1516, %v1518
      %v1521 = vmul.f32 %v1515, %v1519
      %v1522 = vadd.f32 %v1470, %v1520
      %v1523 = vadd.f32 %v1471, %v1521
      %1524 = vrot.lane.b32.xlu0 %v1387, 1
      %v1525 = vpop.permute.xlu0 %1524
      %1526 = vrot.lane.b32.xlu0 %v1388, 1
      %v1527 = vpop.permute.xlu0 %1526
      %v1528 = vsel %vm325, %v1525, %v1527
      %v1529 = vsel %vm325, %v1527, %v1525
      %s1530 = scalar_lea.vmem %s1, 1376
      %v1531 = vld [vmem:[%s1530] sm:$0xff]
      %v1532 = vld [vmem:[%s1530 + $0x8] sm:$0xff]
      %v1533 = vmul.f32 %v1529, %v1531
      %v1534 = vmul.f32 %v1528, %v1532
      %v1535 = vadd.f32 %v1483, %v1533
      %v1536 = vadd.f32 %v1484, %v1534
      %s1537 = scalar_lea.vmem %s1, 1392
      %v1538 = vld [vmem:[%s1537] sm:$0xff]
      %v1539 = vld [vmem:[%s1537 + $0x8] sm:$0xff]
      %v1540 = vmul.f32 %v1387, %v1538
      %v1541 = vmul.f32 %v1388, %v1539
      %v1542 = vadd.f32 %v1496, %v1540
      %v1543 = vadd.f32 %v1497, %v1541
      %1544 = vrot.lane.b32.xlu0 %v1387, 127
      %v1545 = vpop.permute.xlu0 %1544
      %1546 = vrot.lane.b32.xlu0 %v1388, 127
      %v1547 = vpop.permute.xlu0 %1546
      %v1548 = vsel %vm346, %v1545, %v1547
      %v1549 = vsel %vm346, %v1547, %v1545
      %s1550 = scalar_lea.vmem %s1, 1408
      %v1551 = vld [vmem:[%s1550] sm:$0xff]
      %v1552 = vld [vmem:[%s1550 + $0x8] sm:$0xff]
      %v1553 = vmul.f32 %v1548, %v1551
      %v1554 = vmul.f32 %v1549, %v1552
      %v1555 = vadd.f32 %v1509, %v1553
      %v1556 = vadd.f32 %v1510, %v1554
      %1557 = vrot.lane.b32.xlu0 %v1387, 126
      %v1558 = vpop.permute.xlu0 %1557
      %1559 = vrot.lane.b32.xlu0 %v1388, 126
      %v1560 = vpop.permute.xlu0 %1559
      %v1561 = vsel %vm360, %v1558, %v1560
      %v1562 = vsel %vm360, %v1560, %v1558
      %s1563 = scalar_lea.vmem %s1, 1424
      %v1564 = vld [vmem:[%s1563] sm:$0xff]
      %v1565 = vld [vmem:[%s1563 + $0x8] sm:$0xff]
      %v1566 = vmul.f32 %v1561, %v1564
      %v1567 = vmul.f32 %v1562, %v1565
      %v1568 = vadd.f32 %v1522, %v1566
      %v1569 = vadd.f32 %v1523, %v1567
      %1570 = vrot.lane.b32.xlu0 %v1387, 114
      %v1571 = vpop.permute.xlu0 %1570
      %1572 = vrot.lane.b32.xlu0 %v1388, 114
      %v1573 = vpop.permute.xlu0 %1572
      %v1574 = vsel %vm374, %v1571, %v1573
      %v1575 = vsel %vm374, %v1573, %v1571
      %s1576 = scalar_lea.vmem %s1, 1440
      %v1577 = vld [vmem:[%s1576] sm:$0xff]
      %v1578 = vld [vmem:[%s1576 + $0x8] sm:$0xff]
      %v1579 = vmul.f32 %v1574, %v1577
      %v1580 = vmul.f32 %v1575, %v1578
      %v1581 = vadd.f32 %v1535, %v1579
      %v1582 = vadd.f32 %v1536, %v1580
      %1583 = vrot.lane.b32.xlu0 %v1387, 113
      %v1584 = vpop.permute.xlu0 %1583
      %1585 = vrot.lane.b32.xlu0 %v1388, 113
      %v1586 = vpop.permute.xlu0 %1585
      %v1587 = vsel %vm388, %v1584, %v1586
      %v1588 = vsel %vm388, %v1586, %v1584
      %s1589 = scalar_lea.vmem %s1, 1456
      %v1590 = vld [vmem:[%s1589] sm:$0xff]
      %v1591 = vld [vmem:[%s1589 + $0x8] sm:$0xff]
      %v1592 = vmul.f32 %v1587, %v1590
      %v1593 = vmul.f32 %v1588, %v1591
      %v1594 = vadd.f32 %v1542, %v1592
      %v1595 = vadd.f32 %v1543, %v1593
      %1596 = vrot.lane.b32.xlu0 %v1387, 112
      %v1597 = vpop.permute.xlu0 %1596
      %1598 = vrot.lane.b32.xlu0 %v1388, 112
      %v1599 = vpop.permute.xlu0 %1598
      %v1600 = vsel %vm402, %v1597, %v1599
      %v1601 = vsel %vm402, %v1599, %v1597
      %s1602 = scalar_lea.vmem %s1, 1472
      %v1603 = vld [vmem:[%s1602] sm:$0xff]
      %v1604 = vld [vmem:[%s1602 + $0x8] sm:$0xff]
      %v1605 = vmul.f32 %v1600, %v1603
      %v1606 = vmul.f32 %v1601, %v1604
      %v1607 = vadd.f32 %v1555, %v1605
      %v1608 = vadd.f32 %v1556, %v1606
      %1609 = vrot.lane.b32.xlu0 %v1387, 111
      %v1610 = vpop.permute.xlu0 %1609
      %1611 = vrot.lane.b32.xlu0 %v1388, 111
      %v1612 = vpop.permute.xlu0 %1611
      %v1613 = vsel %vm416, %v1610, %v1612
      %v1614 = vsel %vm416, %v1612, %v1610
      %s1615 = scalar_lea.vmem %s1, 1488
      %v1616 = vld [vmem:[%s1615] sm:$0xff]
      %v1617 = vld [vmem:[%s1615 + $0x8] sm:$0xff]
      %v1618 = vmul.f32 %v1613, %v1616
      %v1619 = vmul.f32 %v1614, %v1617
      %v1620 = vadd.f32 %v1568, %v1618
      %v1621 = vadd.f32 %v1569, %v1619
      %1622 = vrot.lane.b32.xlu0 %v1387, 110
      %v1623 = vpop.permute.xlu0 %1622
      %1624 = vrot.lane.b32.xlu0 %v1388, 110
      %v1625 = vpop.permute.xlu0 %1624
      %v1626 = vsel %vm430, %v1623, %v1625
      %v1627 = vsel %vm430, %v1625, %v1623
      %s1628 = scalar_lea.vmem %s1, 1504
      %v1629 = vld [vmem:[%s1628] sm:$0xff]
      %v1630 = vld [vmem:[%s1628 + $0x8] sm:$0xff]
      %v1631 = vmul.f32 %v1626, %v1629
      %v1632 = vmul.f32 %v1627, %v1630
      %v1633 = vadd.f32 %v1581, %v1631
      %v1634 = vadd.f32 %v1582, %v1632
      %1635 = vrot.lane.b32.xlu0 %v1387, 98
      %v1636 = vpop.permute.xlu0 %1635
      %1637 = vrot.lane.b32.xlu0 %v1388, 98
      %v1638 = vpop.permute.xlu0 %1637
      %v1639 = vsel %vm444, %v1636, %v1638
      %v1640 = vsel %vm444, %v1638, %v1636
      %s1641 = scalar_lea.vmem %s1, 1520
      %v1642 = vld [vmem:[%s1641] sm:$0xff]
      %v1643 = vld [vmem:[%s1641 + $0x8] sm:$0xff]
      %v1644 = vmul.f32 %v1639, %v1642
      %v1645 = vmul.f32 %v1640, %v1643
      %v1646 = vadd.f32 %v1594, %v1644
      %v1647 = vadd.f32 %v1595, %v1645
      %1648 = vrot.lane.b32.xlu0 %v1387, 97
      %v1649 = vpop.permute.xlu0 %1648
      %1650 = vrot.lane.b32.xlu0 %v1388, 97
      %v1651 = vpop.permute.xlu0 %1650
      %v1652 = vsel %vm458, %v1649, %v1651
      %v1653 = vsel %vm458, %v1651, %v1649
      %s1654 = scalar_lea.vmem %s1, 1536
      %v1655 = vld [vmem:[%s1654] sm:$0xff]
      %v1656 = vld [vmem:[%s1654 + $0x8] sm:$0xff]
      %v1657 = vmul.f32 %v1652, %v1655
      %v1658 = vmul.f32 %v1653, %v1656
      %v1659 = vadd.f32 %v1607, %v1657
      %v1660 = vadd.f32 %v1608, %v1658
      %1661 = vrot.lane.b32.xlu0 %v1387, 96
      %v1662 = vpop.permute.xlu0 %1661
      %1663 = vrot.lane.b32.xlu0 %v1388, 96
      %v1664 = vpop.permute.xlu0 %1663
      %v1665 = vsel %vm472, %v1662, %v1664
      %v1666 = vsel %vm472, %v1664, %v1662
      %s1667 = scalar_lea.vmem %s1, 1552
      %v1668 = vld [vmem:[%s1667] sm:$0xff]
      %v1669 = vld [vmem:[%s1667 + $0x8] sm:$0xff]
      %v1670 = vmul.f32 %v1665, %v1668
      %v1671 = vmul.f32 %v1666, %v1669
      %v1672 = vadd.f32 %v1620, %v1670
      %v1673 = vadd.f32 %v1621, %v1671
      %1674 = vrot.lane.b32.xlu0 %v1387, 95
      %v1675 = vpop.permute.xlu0 %1674
      %1676 = vrot.lane.b32.xlu0 %v1388, 95
      %v1677 = vpop.permute.xlu0 %1676
      %v1678 = vsel %vm486, %v1675, %v1677
      %v1679 = vsel %vm486, %v1677, %v1675
      %s1680 = scalar_lea.vmem %s1, 1568
      %v1681 = vld [vmem:[%s1680] sm:$0xff]
      %v1682 = vld [vmem:[%s1680 + $0x8] sm:$0xff]
      %v1683 = vmul.f32 %v1678, %v1681
      %v1684 = vmul.f32 %v1679, %v1682
      %v1685 = vadd.f32 %v1633, %v1683
      %v1686 = vadd.f32 %v1634, %v1684
      %1687 = vrot.lane.b32.xlu0 %v1387, 94
      %v1688 = vpop.permute.xlu0 %1687
      %1689 = vrot.lane.b32.xlu0 %v1388, 94
      %v1690 = vpop.permute.xlu0 %1689
      %v1691 = vsel %vm500, %v1688, %v1690
      %v1692 = vsel %vm500, %v1690, %v1688
      %s1693 = scalar_lea.vmem %s1, 1584
      %v1694 = vld [vmem:[%s1693] sm:$0xff]
      %v1695 = vld [vmem:[%s1693 + $0x8] sm:$0xff]
      %v1696 = vmul.f32 %v1691, %v1694
      %v1697 = vmul.f32 %v1692, %v1695
      %v1698 = vadd.f32 %v1646, %v1696
      %v1699 = vadd.f32 %v1647, %v1697
      %v1700 = vadd.f32 %v1698, %v1659
      %v1701 = vadd.f32 %v1699, %v1660
      %v1702 = vadd.f32 %v1672, %v1685
      %v1703 = vadd.f32 %v1673, %v1686
      %v1704 = vadd.f32 %v1700, %v1702
      %v1705 = vadd.f32 %v1701, %v1703
      %1706 = vset.pattern.permute.xlu0 19
      %1707 = vperm.xlu0 %1706, %v958
      %v1708 = vpop.permute.xlu0 %1707
      %v1710 = vadd.f32 %v1704, %v1708
      %v1711 = vadd.f32 %v1705, %v1708
      %1712 = vst [vmem:[%s170] sm:$0xff] %v1710
      %1713 = vst [vmem:[%s170 + $0x8] sm:$0xff] %v1711
      %p1714 = scmp.lt.s32.totalorder %s14, 1
      %s1715 = scalar_select %p1714, %s14, 1
      %s1716 = smul.addr %s1715, 2
      %s1717 = smul.addr %s1716, 8
      %s1718 = scalar_lea.vmem %s3, %s1717
      // Predicated region
      $region33: #{shortcut_forward.1} parent=31 // pred_check
        %p1719 = pneg %p100
      $region34: #{shortcut_forward.1} parent=31 // pred_check_branch
        %1721 = sbr.rel (%p1719) target = $region36
      $region35: #{shortcut_forward.1} parent=31 // pred_region
        _
      $region36: #{shortcut_forward.1} parent=31 // pred_fallthru
        _
    $region32: #{shortcut_forward.1} parent=5 // pred_fallthru
      _
    %p1722 = scmp.le.s32.totalorder 2, %s9
    // Predicated region
    $region37: #{shortcut_forward.1} parent=5 // pred_check
      %p1723 = pneg %p1722
    $region38: #{shortcut_forward.1} parent=5 // pred_check_branch
      %1725 = sbr.rel (%p1723) target = $region40
    $region39: #{shortcut_forward.1} parent=5 // pred_region
      %s1726 = ssub.s32 %s9, 2
      // Predicated region
      $region41: #{shortcut_forward.1} parent=39 // pred_check
        %p1727 = pneg %p106
      $region42: #{shortcut_forward.1} parent=39 // pred_check_branch
        %1729 = sbr.rel (%p1727) target = $region44
      $region43: #{shortcut_forward.1} parent=39 // pred_region
        %p1730 = scmp.lt.s32.totalorder %s15, 1
        %s1731 = scalar_select %p1730, %s15, 1
        %s1732 = smul.addr %s1731, 2
        %s1733 = smul.addr %s1732, 8
        %s1734 = scalar_lea.vmem %s3, %s1733
      $region44: #{shortcut_forward.1} parent=39 // pred_fallthru
        _
    $region40: #{shortcut_forward.1} parent=5 // pred_fallthru
      _
  $region6: #{shortcut_forward.1} parent=0 // loop_footer
    %s13 = sadd.s32 1, %s9
  $region7: #{shortcut_forward.1} parent=0 // loop_footer_branch
    %8 = sbr.rel target = $region3
  $region8: #{shortcut_forward.1} parent=0 // loop_exit
    _

</llo_original>
